<compile_context>
chip_gen: v6e
topology: v6e:2x2x1
jax: 0.10.0
libtpu: 0.0.40
codegen_flags: <defaults>
</compile_context>

<pallas_src>
import functools

import jax
import jax.numpy as jnp
from jax.experimental import pallas as pl
from jax.experimental.pallas import tpu as pltpu

FEAT_NUM = 32          # input_size (synthetic, module default)
NB_CLASS = 10
H1, H2, H3 = 500, 500, 2000            # logical (PyTorch) hidden sizes
H1P, H2P, H3P = 512, 512, 2048         # lane-aligned padded hidden sizes
OUT_PAD = 128                          # lane-dense padded output width


def _round_up(x, m):
    return (x + m - 1) // m * m


def _mlp_kernel(x_ref,
                w1_ref, b1_ref,
                w2_ref, b2_ref,
                w3_ref, b3_ref,
                w4_ref, b4_ref,
                o_ref):
    """Fused 4-layer MLP on one batch tile.

    Weights are bf16 and VMEM-resident across all grid steps; every matmul
    accumulates in f32 on the MXU, bias+ReLU run in f32 on the VPU, and the
    activation is cast back to bf16 before the next MXU pass."""
    h = x_ref[...]                                                  # (Bt, F) bf16

    h = jnp.dot(h, w1_ref[...], preferred_element_type=jnp.float32) + b1_ref[...]
    h = jnp.maximum(h, 0.0).astype(jnp.bfloat16)

    h = jnp.dot(h, w2_ref[...], preferred_element_type=jnp.float32) + b2_ref[...]
    h = jnp.maximum(h, 0.0).astype(jnp.bfloat16)

    h = jnp.dot(h, w3_ref[...], preferred_element_type=jnp.float32) + b3_ref[...]
    h = jnp.maximum(h, 0.0).astype(jnp.bfloat16)

    out = jnp.dot(h, w4_ref[...], preferred_element_type=jnp.float32) + b4_ref[...]
    o_ref[...] = out.astype(o_ref.dtype)


@functools.partial(jax.jit, static_argnames=("nb_class", "block_b"))
def salakhnet_forward(x, padded_params, nb_class=NB_CLASS, block_b=256):
    """x: (B, FEAT_NUM) float32 -> logits (B, nb_class) float32."""
    (w1, b1), (w2, b2), (w3, b3), (w4, b4) = padded_params
    B, F = x.shape

    # Batch tile: up to `block_b` rows, always a multiple of 8 sublanes.
    bt = min(block_b, _round_up(B, 8))
    b_pad = _round_up(B, bt)

    x_p = jnp.zeros((b_pad, F), jnp.bfloat16).at[:B, :].set(x.astype(jnp.bfloat16))

    def resident(shape):
        # Same block every grid step -> stays VMEM-resident, DMA'd once.
        return pl.BlockSpec(shape, lambda i: (0, 0))

    flops = 2 * b_pad * (F * H1P + H1P * H2P + H2P * H3P + H3P * OUT_PAD)
    bytes_accessed = (
        x_p.size * 2                                   # bf16 activations in
        + sum(int(w.size) * 2 + int(b.size) * 4        # bf16 weights + f32 biases
              for (w, b) in padded_params)
        + b_pad * OUT_PAD * 4                          # f32 logits out
    )

    out_padded = pl.pallas_call(
        _mlp_kernel,
        out_shape=jax.ShapeDtypeStruct((b_pad, OUT_PAD), jnp.float32),
        grid=(b_pad // bt,),
        in_specs=[
            pl.BlockSpec((bt, F), lambda i: (i, 0)),
            resident(w1.shape), resident(b1.shape),
            resident(w2.shape), resident(b2.shape),
            resident(w3.shape), resident(b3.shape),
            resident(w4.shape), resident(b4.shape),
        ],
        out_specs=pl.BlockSpec((bt, OUT_PAD), lambda i: (i, 0)),
        compiler_params=pltpu.CompilerParams(
            dimension_semantics=("parallel",),
            vmem_limit_bytes=32 * 1024 * 1024,
        ),
        cost_estimate=pl.CostEstimate(
            flops=flops, transcendentals=0, bytes_accessed=bytes_accessed),
    )(x_p, w1, b1, w2, b2, w3, b3, w4, b4)

    return out_padded[:B, :nb_class]


def init_params(key, input_size=FEAT_NUM, nb_class=NB_CLASS):
    """Deterministic PyTorch-style init: U(-1/sqrt(fan_in), 1/sqrt(fan_in)).
    Weights stored as (in, out) — i.e. transposed vs. nn.Linear storage."""
    dims = [(input_size, H1), (H1, H2), (H2, H3), (H3, nb_class)]
    params = []
    for (fan_in, fan_out) in dims:
        key, kw, kb = jax.random.split(key, 3)
        bound = 1.0 / jnp.sqrt(jnp.float32(fan_in))
        w = jax.random.uniform(kw, (fan_in, fan_out), jnp.float32, -bound, bound)
        b = jax.random.uniform(kb, (1, fan_out), jnp.float32, -bound, bound)
        params.append((w, b))
    return params


def prepare_params(params, input_size=FEAT_NUM):
    """Zero-pad to lane-aligned shapes and cast weights to bf16.
    Padded rows/cols are exactly zero, so valid outputs are unchanged."""
    dims_pad = [(input_size, H1P), (H1P, H2P), (H2P, H3P), (H3P, OUT_PAD)]
    padded = []
    for (w, b), (din, dout) in zip(params, dims_pad):
        wp = jnp.zeros((din, dout), jnp.bfloat16)
        wp = wp.at[: w.shape[0], : w.shape[1]].set(w.astype(jnp.bfloat16))
        bp = jnp.zeros((1, dout), jnp.float32)
        bp = bp.at[:, : b.shape[1]].set(b)
        padded.append((wp, bp))
    return tuple(padded)


def _reference_forward_f32(x, params):
    h = x
    for i, (w, b) in enumerate(params):
        h = h @ w + b
        if i < len(params) - 1:
            h = jnp.maximum(h, 0.0)
    return h


def _reference_forward_bf16(x, params):
    """Same bf16-weight / f32-accumulate arithmetic as the kernel."""
    h = x.astype(jnp.bfloat16)
    for i, (w, b) in enumerate(params):
        h = jnp.dot(h, w.astype(jnp.bfloat16),
                    preferred_element_type=jnp.float32) + b
        if i < len(params) - 1:
            h = jnp.maximum(h, 0.0).astype(jnp.bfloat16)
    return h


if __name__ == "__main__":
    key = jax.random.PRNGKey(0)
    key, kx = jax.random.split(key)

    B = 2
    x = jax.random.normal(kx, (B, FEAT_NUM), jnp.float32)

    params = init_params(key)                 # unpadded f32 (in, out) weights
    padded_params = prepare_params(params)    # padded bf16 weights, f32 biases

    out = salakhnet_forward(x, padded_params)
    out = jax.block_until_ready(out)
    assert out.shape == (B, NB_CLASS), out.shape

    # Bit-for-bit-ish check against a JAX reference doing the same bf16 math.
    ref_bf16 = _reference_forward_bf16(x, params)
    assert jnp.allclose(out, ref_bf16, atol=2e-3, rtol=2e-3), "mismatch vs bf16 reference"

    # Loose check against the full-f32 PyTorch-equivalent forward.
    ref_f32 = _reference_forward_f32(x, params)
    assert jnp.allclose(out, ref_f32, atol=5e-2, rtol=5e-2), "mismatch vs f32 reference"

    print("KERNEL_OK")
</pallas_src>

<mosaic_0001>
module attributes {stable_mosaic.version = 11 : i64} {
  func.func @_mlp_kernel(%arg0: i32, %arg1: memref<8x32xbf16, #tpu.memory_space<vmem>>, %arg2: memref<32x512xbf16, #tpu.memory_space<vmem>>, %arg3: memref<1x512xf32, #tpu.memory_space<vmem>>, %arg4: memref<512x512xbf16, #tpu.memory_space<vmem>>, %arg5: memref<1x512xf32, #tpu.memory_space<vmem>>, %arg6: memref<512x2048xbf16, #tpu.memory_space<vmem>>, %arg7: memref<1x2048xf32, #tpu.memory_space<vmem>>, %arg8: memref<2048x128xbf16, #tpu.memory_space<vmem>>, %arg9: memref<1x128xf32, #tpu.memory_space<vmem>>, %arg10: memref<8x128xf32, #tpu.memory_space<vmem>>) attributes {dimension_semantics = [#tpu.dimension_semantics<parallel>], iteration_bounds = array<i64: 1>, scalar_prefetch = 0 : i64, scratch_operands = 0 : i64, tpu.core_type = #tpu.core_type<tc>, window_params = [{transform_indices = @transform_0, window_bounds = array<i64: 8, 32>}, {pipeline_mode = #tpu.pipeline_mode<synchronous>, transform_indices = @transform_1, window_bounds = array<i64: 32, 512>}, {pipeline_mode = #tpu.pipeline_mode<synchronous>, transform_indices = @transform_2, window_bounds = array<i64: 1, 512>}, {pipeline_mode = #tpu.pipeline_mode<synchronous>, transform_indices = @transform_3, window_bounds = array<i64: 512, 512>}, {pipeline_mode = #tpu.pipeline_mode<synchronous>, transform_indices = @transform_4, window_bounds = array<i64: 1, 512>}, {pipeline_mode = #tpu.pipeline_mode<synchronous>, transform_indices = @transform_5, window_bounds = array<i64: 512, 2048>}, {pipeline_mode = #tpu.pipeline_mode<synchronous>, transform_indices = @transform_6, window_bounds = array<i64: 1, 2048>}, {pipeline_mode = #tpu.pipeline_mode<synchronous>, transform_indices = @transform_7, window_bounds = array<i64: 2048, 128>}, {pipeline_mode = #tpu.pipeline_mode<synchronous>, transform_indices = @transform_8, window_bounds = array<i64: 1, 128>}, {transform_indices = @transform_9, window_bounds = array<i64: 8, 128>}]} {
    %c0 = arith.constant 0 : index
    %c0_0 = arith.constant 0 : index
    %0 = vector.load %arg1[%c0, %c0_0] : memref<8x32xbf16, #tpu.memory_space<vmem>>, vector<8x32xbf16>
    %c0_1 = arith.constant 0 : index
    %c0_2 = arith.constant 0 : index
    %1 = vector.load %arg2[%c0_1, %c0_2] : memref<32x512xbf16, #tpu.memory_space<vmem>>, vector<32x512xbf16>
    %cst = arith.constant dense<0.000000e+00> : vector<8x512xf32>
    %2 = tpu.matmul %0, %1, %cst {dimension_numbers = #tpu.dot_dimension_numbers<[1], [0], [0], [1], [0, 0, 1, 1], [], []>} : vector<8x32xbf16>, vector<32x512xbf16>, vector<8x512xf32> -> vector<8x512xf32>
    %c0_3 = arith.constant 0 : index
    %c0_4 = arith.constant 0 : index
    %3 = vector.load %arg3[%c0_3, %c0_4] : memref<1x512xf32, #tpu.memory_space<vmem>>, vector<1x512xf32>
    %4 = vector.broadcast %3 : vector<1x512xf32> to vector<8x512xf32>
    %5 = arith.addf %2, %4 : vector<8x512xf32>
    %cst_5 = arith.constant 0.000000e+00 : f32
    %6 = vector.broadcast %cst_5 : f32 to vector<8x512xf32>
    %7 = arith.maximumf %5, %6 : vector<8x512xf32>
    %8 = arith.truncf %7 : vector<8x512xf32> to vector<8x512xbf16>
    %c0_6 = arith.constant 0 : index
    %c0_7 = arith.constant 0 : index
    %9 = vector.load %arg4[%c0_6, %c0_7] : memref<512x512xbf16, #tpu.memory_space<vmem>>, vector<512x512xbf16>
    %cst_8 = arith.constant dense<0.000000e+00> : vector<8x512xf32>
    %10 = tpu.matmul %8, %9, %cst_8 {dimension_numbers = #tpu.dot_dimension_numbers<[1], [0], [0], [1], [0, 0, 1, 1], [], []>} : vector<8x512xbf16>, vector<512x512xbf16>, vector<8x512xf32> -> vector<8x512xf32>
    %c0_9 = arith.constant 0 : index
    %c0_10 = arith.constant 0 : index
    %11 = vector.load %arg5[%c0_9, %c0_10] : memref<1x512xf32, #tpu.memory_space<vmem>>, vector<1x512xf32>
    %12 = vector.broadcast %11 : vector<1x512xf32> to vector<8x512xf32>
    %13 = arith.addf %10, %12 : vector<8x512xf32>
    %cst_11 = arith.constant 0.000000e+00 : f32
    %14 = vector.broadcast %cst_11 : f32 to vector<8x512xf32>
    %15 = arith.maximumf %13, %14 : vector<8x512xf32>
    %16 = arith.truncf %15 : vector<8x512xf32> to vector<8x512xbf16>
    %c0_12 = arith.constant 0 : index
    %c0_13 = arith.constant 0 : index
    %17 = vector.load %arg6[%c0_12, %c0_13] : memref<512x2048xbf16, #tpu.memory_space<vmem>>, vector<512x2048xbf16>
    %cst_14 = arith.constant dense<0.000000e+00> : vector<8x2048xf32>
    %18 = tpu.matmul %16, %17, %cst_14 {dimension_numbers = #tpu.dot_dimension_numbers<[1], [0], [0], [1], [0, 0, 1, 1], [], []>} : vector<8x512xbf16>, vector<512x2048xbf16>, vector<8x2048xf32> -> vector<8x2048xf32>
    %c0_15 = arith.constant 0 : index
    %c0_16 = arith.constant 0 : index
    %19 = vector.load %arg7[%c0_15, %c0_16] : memref<1x2048xf32, #tpu.memory_space<vmem>>, vector<1x2048xf32>
    %20 = vector.broadcast %19 : vector<1x2048xf32> to vector<8x2048xf32>
    %21 = arith.addf %18, %20 : vector<8x2048xf32>
    %cst_17 = arith.constant 0.000000e+00 : f32
    %22 = vector.broadcast %cst_17 : f32 to vector<8x2048xf32>
    %23 = arith.maximumf %21, %22 : vector<8x2048xf32>
    %24 = arith.truncf %23 : vector<8x2048xf32> to vector<8x2048xbf16>
    %c0_18 = arith.constant 0 : index
    %c0_19 = arith.constant 0 : index
    %25 = vector.load %arg8[%c0_18, %c0_19] : memref<2048x128xbf16, #tpu.memory_space<vmem>>, vector<2048x128xbf16>
    %cst_20 = arith.constant dense<0.000000e+00> : vector<8x128xf32>
    %26 = tpu.matmul %24, %25, %cst_20 {dimension_numbers = #tpu.dot_dimension_numbers<[1], [0], [0], [1], [0, 0, 1, 1], [], []>} : vector<8x2048xbf16>, vector<2048x128xbf16>, vector<8x128xf32> -> vector<8x128xf32>
    %c0_21 = arith.constant 0 : index
    %c0_22 = arith.constant 0 : index
    %27 = vector.load %arg9[%c0_21, %c0_22] : memref<1x128xf32, #tpu.memory_space<vmem>>, vector<1x128xf32>
    %28 = vector.broadcast %27 : vector<1x128xf32> to vector<8x128xf32>
    %29 = arith.addf %26, %28 : vector<8x128xf32>
    %c0_23 = arith.constant 0 : index
    %c0_24 = arith.constant 0 : index
    %30 = vector.load %arg10[%c0_23, %c0_24] : memref<8x128xf32, #tpu.memory_space<vmem>>, vector<8x128xf32>
    tpu.vector_store %arg10[%c0_23, %c0_24], %29 {strides = array<i32>} : memref<8x128xf32, #tpu.memory_space<vmem>>, vector<8x128xf32>,
    return
  }
  func.func @transform_0(%arg0: i32) -> (i32, i32) {
    %c0_i32 = arith.constant 0 : i32
    %c0_i32_0 = arith.constant 0 : i32
    return %arg0, %c0_i32 : i32, i32
  }
  func.func @transform_1(%arg0: i32) -> (i32, i32) {
    %c0_i32 = arith.constant 0 : i32
    %c0_i32_0 = arith.constant 0 : i32
    %c0_i32_1 = arith.constant 0 : i32
    return %c0_i32, %c0_i32_0 : i32, i32
  }
  func.func @transform_2(%arg0: i32) -> (i32, i32) {
    %c0_i32 = arith.constant 0 : i32
    %c0_i32_0 = arith.constant 0 : i32
    %c0_i32_1 = arith.constant 0 : i32
    return %c0_i32, %c0_i32_0 : i32, i32
  }
  func.func @transform_3(%arg0: i32) -> (i32, i32) {
    %c0_i32 = arith.constant 0 : i32
    %c0_i32_0 = arith.constant 0 : i32
    %c0_i32_1 = arith.constant 0 : i32
    return %c0_i32, %c0_i32_0 : i32, i32
  }
  func.func @transform_4(%arg0: i32) -> (i32, i32) {
    %c0_i32 = arith.constant 0 : i32
    %c0_i32_0 = arith.constant 0 : i32
    %c0_i32_1 = arith.constant 0 : i32
    return %c0_i32, %c0_i32_0 : i32, i32
  }
  func.func @transform_5(%arg0: i32) -> (i32, i32) {
    %c0_i32 = arith.constant 0 : i32
    %c0_i32_0 = arith.constant 0 : i32
    %c0_i32_1 = arith.constant 0 : i32
    return %c0_i32, %c0_i32_0 : i32, i32
  }
  func.func @transform_6(%arg0: i32) -> (i32, i32) {
    %c0_i32 = arith.constant 0 : i32
    %c0_i32_0 = arith.constant 0 : i32
    %c0_i32_1 = arith.constant 0 : i32
    return %c0_i32, %c0_i32_0 : i32, i32
  }
  func.func @transform_7(%arg0: i32) -> (i32, i32) {
    %c0_i32 = arith.constant 0 : i32
    %c0_i32_0 = arith.constant 0 : i32
    %c0_i32_1 = arith.constant 0 : i32
    return %c0_i32, %c0_i32_0 : i32, i32
  }
  func.func @transform_8(%arg0: i32) -> (i32, i32) {
    %c0_i32 = arith.constant 0 : i32
    %c0_i32_0 = arith.constant 0 : i32
    %c0_i32_1 = arith.constant 0 : i32
    return %c0_i32, %c0_i32_0 : i32, i32
  }
  func.func @transform_9(%arg0: i32) -> (i32, i32) {
    %c0_i32 = arith.constant 0 : i32
    %c0_i32_0 = arith.constant 0 : i32
    return %arg0, %c0_i32 : i32, i32
  }
}

</mosaic_0001>

<llo_original>
// kernel: salakhnet_forward.1
$region0: #{salakhnet_forward.1}
  #allocation0 [shape = 'u32[]', space=smem, size = 0x4, offset = 0x4, fixed_abs, tag = 'smem constant byte address 0x4 - core index']
  #allocation1 [shape = 'u32[144,128]{1,0:T(1,128)}', space=vmem, size = 0x12000, scoped, tag = 'internal scratch']
  %s0 = inlined_call_operand.vmem [shape: bf16[8,32], index: 0, kind: input, shape index: {}]
  %s1 = inlined_call_operand.hbm [shape: bf16[32,512], index: 1, kind: input, shape index: {}]
  %s2 = inlined_call_operand.hbm [shape: f32[1,512], index: 2, kind: input, shape index: {}]
  %s3 = inlined_call_operand.hbm [shape: bf16[512,512], index: 3, kind: input, shape index: {}]
  %s4 = inlined_call_operand.hbm [shape: f32[1,512], index: 4, kind: input, shape index: {}]
  %s5 = inlined_call_operand.hbm [shape: bf16[512,2048], index: 5, kind: input, shape index: {}]
  %s6 = inlined_call_operand.hbm [shape: f32[1,2048], index: 6, kind: input, shape index: {}]
  %s7 = inlined_call_operand.hbm [shape: bf16[2048,128], index: 7, kind: input, shape index: {}]
  %s8 = inlined_call_operand.hbm [shape: f32[1,128], index: 8, kind: input, shape index: {}]
  %s9 = inlined_call_operand.vmem [shape: f32[8,128], index: 9, kind: output, shape index: {}]
  %s10 = sld [smem:[#allocation0]]
  $region78: #{salakhnet_forward.1} parent=0
    _
  %s12 = ssub.s32 1, %s10
  %s13 = scalar_select 0, %s12, %s10
  $region1: #{salakhnet_forward.1} parent=0
    #allocation2 [shape = 'u8[32768]{0}', space=vmem, size = 0x8000, scoped, tag = 'input window, operand 1, single buffered']
    #allocation3 [shape = 's32[1]{0}', space=sflag, size = 0x4, scoped, tag = 'scoped memory for salakhnet_forward.1']
    #allocation4 [shape = 'u8[2048]{0}', space=vmem, size = 0x800, scoped, tag = 'input window, operand 2, single buffered']
    #allocation5 [shape = 's32[1]{0}', space=sflag, size = 0x4, scoped, tag = 'scoped memory for salakhnet_forward.1']
    #allocation6 [shape = 'u8[524288]{0}', space=vmem, size = 0x80000, scoped, tag = 'input window, operand 3, single buffered']
    #allocation7 [shape = 'u8[2048]{0}', space=vmem, size = 0x800, scoped, tag = 'input window, operand 4, single buffered']
    #allocation8 [shape = 's32[1]{0}', space=sflag, size = 0x4, scoped, tag = 'scoped memory for salakhnet_forward.1']
    #allocation9 [shape = 'u8[2097152]{0}', space=vmem, size = 0x200000, scoped, tag = 'input window, operand 5, single buffered']
    #allocation10 [shape = 'u8[8192]{0}', space=vmem, size = 0x2000, scoped, tag = 'input window, operand 6, single buffered']
    #allocation11 [shape = 's32[1]{0}', space=sflag, size = 0x4, scoped, tag = 'scoped memory for salakhnet_forward.1']
    #allocation12 [shape = 'u8[524288]{0}', space=vmem, size = 0x80000, scoped, tag = 'input window, operand 7, single buffered']
    #allocation13 [shape = 'u8[512]{0}', space=vmem, size = 0x400, scoped, tag = 'input window, operand 8, single buffered']
    #allocation14 [shape = 's32[1]{0}', space=sflag, size = 0x4, scoped, tag = 'scoped memory for salakhnet_forward.1']
    %14 = vsyncpa [#allocation3], 0
    %15 = vsyncpa [#allocation5], 0
    %16 = vsyncpa [#allocation8], 0
    %17 = vsyncpa [#allocation11], 0
    %18 = vsyncpa [#allocation14], 0
    // Predicated region
    $region2: #{salakhnet_forward.1} parent=1 // pred_check
      _
    $region3: #{salakhnet_forward.1} parent=1 // pred_check_branch
      %20 = sbr.rel (0) target = $region5
    $region4: #{salakhnet_forward.1} parent=1 // pred_region
      _
    $region5: #{salakhnet_forward.1} parent=1 // pred_fallthru
      _
    // Predicated region
    $region6: #{salakhnet_forward.1} parent=1 // pred_check
      _
    $region7: #{salakhnet_forward.1} parent=1 // pred_check_branch
      %22 = sbr.rel (0) target = $region9
    $region8: #{salakhnet_forward.1} parent=1 // pred_region
      %s24 = ssub.s32 1024, 1024
      %25 = vsyncadd [#allocation3], %s24
      %s26 = sshll.u32 [#allocation2], 4
      %s27 = int_to_ptr.vmem [resolvable:$true] %s26
      %32 = dma.hbm_to_vmem [thread:$0]  %s1, 1024, %s27, [#allocation3], 256, 256, 16
    $region9: #{salakhnet_forward.1} parent=1 // pred_fallthru
      _
    // Predicated region
    $region10: #{salakhnet_forward.1} parent=1 // pred_check
      _
    $region11: #{salakhnet_forward.1} parent=1 // pred_check_branch
      %34 = sbr.rel (0) target = $region13
    $region12: #{salakhnet_forward.1} parent=1 // pred_region
      %s36 = ssub.s32 64, 64
      %37 = vsyncadd [#allocation5], %s36
      %s39 = sshll.u32 [#allocation4], 4
      %s40 = int_to_ptr.vmem [resolvable:$true] %s39
      %42 = dma.hbm_to_vmem [thread:$0]  %s2, 64, %s40, [#allocation5]
    $region13: #{salakhnet_forward.1} parent=1 // pred_fallthru
      _
    // Predicated region
    $region14: #{salakhnet_forward.1} parent=1 // pred_check
      _
    $region15: #{salakhnet_forward.1} parent=1 // pred_check_branch
      %44 = sbr.rel (0) target = $region17
    $region16: #{salakhnet_forward.1} parent=1 // pred_region
      %s46 = ssub.s32 16384, 16384
      %47 = vsyncadd [#allocation5], %s46
      %s48 = sshll.u32 [#allocation6], 4
      %s49 = int_to_ptr.vmem [resolvable:$true] %s48
      %54 = dma.hbm_to_vmem [thread:$0]  %s3, 16384, %s49, [#allocation5], 256, 256, 16
    $region17: #{salakhnet_forward.1} parent=1 // pred_fallthru
      _
    // Predicated region
    $region18: #{salakhnet_forward.1} parent=1 // pred_check
      _
    $region19: #{salakhnet_forward.1} parent=1 // pred_check_branch
      %56 = sbr.rel (0) target = $region21
    $region20: #{salakhnet_forward.1} parent=1 // pred_region
      %s58 = ssub.s32 64, 64
      %59 = vsyncadd [#allocation8], %s58
      %s61 = sshll.u32 [#allocation7], 4
      %s62 = int_to_ptr.vmem [resolvable:$true] %s61
      %64 = dma.hbm_to_vmem [thread:$0]  %s4, 64, %s62, [#allocation8]
    $region21: #{salakhnet_forward.1} parent=1 // pred_fallthru
      _
    // Predicated region
    $region22: #{salakhnet_forward.1} parent=1 // pred_check
      _
    $region23: #{salakhnet_forward.1} parent=1 // pred_check_branch
      %66 = sbr.rel (0) target = $region25
    $region24: #{salakhnet_forward.1} parent=1 // pred_region
      %s68 = ssub.s32 65536, 65536
      %69 = vsyncadd [#allocation8], %s68
      %s70 = sshll.u32 [#allocation9], 4
      %s71 = int_to_ptr.vmem [resolvable:$true] %s70
      %76 = dma.hbm_to_vmem [thread:$0]  %s5, 65536, %s71, [#allocation8], 1024, 1024, 64
    $region25: #{salakhnet_forward.1} parent=1 // pred_fallthru
      _
    // Predicated region
    $region26: #{salakhnet_forward.1} parent=1 // pred_check
      _
    $region27: #{salakhnet_forward.1} parent=1 // pred_check_branch
      %78 = sbr.rel (0) target = $region29
    $region28: #{salakhnet_forward.1} parent=1 // pred_region
      %s80 = ssub.s32 256, 256
      %81 = vsyncadd [#allocation11], %s80
      %s83 = sshll.u32 [#allocation10], 4
      %s84 = int_to_ptr.vmem [resolvable:$true] %s83
      %86 = dma.hbm_to_vmem [thread:$0]  %s6, 256, %s84, [#allocation11]
    $region29: #{salakhnet_forward.1} parent=1 // pred_fallthru
      _
    // Predicated region
    $region30: #{salakhnet_forward.1} parent=1 // pred_check
      _
    $region31: #{salakhnet_forward.1} parent=1 // pred_check_branch
      %88 = sbr.rel (0) target = $region33
    $region32: #{salakhnet_forward.1} parent=1 // pred_region
      %s90 = ssub.s32 16384, 16384
      %91 = vsyncadd [#allocation11], %s90
      %s92 = sshll.u32 [#allocation12], 4
      %s93 = int_to_ptr.vmem [resolvable:$true] %s92
      %98 = dma.hbm_to_vmem [thread:$0]  %s7, 16384, %s93, [#allocation11], 64, 64, 4
    $region33: #{salakhnet_forward.1} parent=1 // pred_fallthru
      _
    // Predicated region
    $region34: #{salakhnet_forward.1} parent=1 // pred_check
      _
    $region35: #{salakhnet_forward.1} parent=1 // pred_check_branch
      %100 = sbr.rel (0) target = $region37
    $region36: #{salakhnet_forward.1} parent=1 // pred_region
      %s102 = ssub.s32 16, 16
      %103 = vsyncadd [#allocation14], %s102
      %s105 = sshll.u32 [#allocation13], 4
      %s106 = int_to_ptr.vmem [resolvable:$true] %s105
      %108 = dma.hbm_to_vmem [thread:$0]  %s8, 16, %s106, [#allocation14]
    $region37: #{salakhnet_forward.1} parent=1 // pred_fallthru
      _
    // Predicated region
    $region38: #{salakhnet_forward.1} parent=1 // pred_check
      _
    $region39: #{salakhnet_forward.1} parent=1 // pred_check_branch
      %110 = sbr.rel (0) target = $region41
    $region40: #{salakhnet_forward.1} parent=1 // pred_region
      %111 = dma.done [#allocation3], 1024
    $region41: #{salakhnet_forward.1} parent=1 // pred_fallthru
      _
    // Predicated region
    $region42: #{salakhnet_forward.1} parent=1 // pred_check
      _
    $region43: #{salakhnet_forward.1} parent=1 // pred_check_branch
      %113 = sbr.rel (0) target = $region45
    $region44: #{salakhnet_forward.1} parent=1 // pred_region
      %114 = dma.done [#allocation5], 64
    $region45: #{salakhnet_forward.1} parent=1 // pred_fallthru
      _
    // Predicated region
    $region46: #{salakhnet_forward.1} parent=1 // pred_check
      _
    $region47: #{salakhnet_forward.1} parent=1 // pred_check_branch
      %116 = sbr.rel (0) target = $region49
    $region48: #{salakhnet_forward.1} parent=1 // pred_region
      %117 = dma.done [#allocation5], 16384
    $region49: #{salakhnet_forward.1} parent=1 // pred_fallthru
      _
    // Predicated region
    $region50: #{salakhnet_forward.1} parent=1 // pred_check
      _
    $region51: #{salakhnet_forward.1} parent=1 // pred_check_branch
      %119 = sbr.rel (0) target = $region53
    $region52: #{salakhnet_forward.1} parent=1 // pred_region
      %120 = dma.done [#allocation8], 64
    $region53: #{salakhnet_forward.1} parent=1 // pred_fallthru
      _
    // Predicated region
    $region54: #{salakhnet_forward.1} parent=1 // pred_check
      _
    $region55: #{salakhnet_forward.1} parent=1 // pred_check_branch
      %122 = sbr.rel (0) target = $region57
    $region56: #{salakhnet_forward.1} parent=1 // pred_region
      %123 = dma.done [#allocation8], 65536
    $region57: #{salakhnet_forward.1} parent=1 // pred_fallthru
      _
    // Predicated region
    $region58: #{salakhnet_forward.1} parent=1 // pred_check
      _
    $region59: #{salakhnet_forward.1} parent=1 // pred_check_branch
      %125 = sbr.rel (0) target = $region61
    $region60: #{salakhnet_forward.1} parent=1 // pred_region
      %126 = dma.done [#allocation11], 256
    $region61: #{salakhnet_forward.1} parent=1 // pred_fallthru
      _
    // Predicated region
    $region62: #{salakhnet_forward.1} parent=1 // pred_check
      _
    $region63: #{salakhnet_forward.1} parent=1 // pred_check_branch
      %128 = sbr.rel (0) target = $region65
    $region64: #{salakhnet_forward.1} parent=1 // pred_region
      %129 = dma.done [#allocation11], 16384
    $region65: #{salakhnet_forward.1} parent=1 // pred_fallthru
      _
    // Predicated region
    $region66: #{salakhnet_forward.1} parent=1 // pred_check
      _
    $region67: #{salakhnet_forward.1} parent=1 // pred_check_branch
      %131 = sbr.rel (0) target = $region69
    $region68: #{salakhnet_forward.1} parent=1 // pred_region
      %132 = dma.done [#allocation14], 16
    $region69: #{salakhnet_forward.1} parent=1 // pred_fallthru
      _
    %v134 = vld [vmem:[%s0] sm:$0xf]
    %v135 = vld [vmem:[#allocation2] sm:$0xff]
    %v136 = vld [vmem:[#allocation2 + $0x8] sm:$0xff]
    %v137 = vld [vmem:[#allocation2 + $0x10] sm:$0xff]
    %v138 = vld [vmem:[#allocation2 + $0x18] sm:$0xff]
    %v139 = vld [vmem:[#allocation2 + $0x20] sm:$0xff]
    %v140 = vld [vmem:[#allocation2 + $0x28] sm:$0xff]
    %v141 = vld [vmem:[#allocation2 + $0x30] sm:$0xff]
    %v142 = vld [vmem:[#allocation2 + $0x38] sm:$0xff]
    %v143 = vld [vmem:[#allocation4] sm:$0xf]
    %v145 = vlaneseq
    %v146 = vshrl.u32 %v145, 7
    %v147 = vsub.s32 0, %v146
    %v148 = vrot.slane %v143, %v147
    %v149 = vlaneseq
    %v150 = vshrl.u32 %v149, 7
    %v151 = vsub.s32 1, %v150
    %v152 = vrot.slane %v143, %v151
    %v153 = vlaneseq
    %v154 = vshrl.u32 %v153, 7
    %v155 = vsub.s32 2, %v154
    %v156 = vrot.slane %v143, %v155
    %v157 = vlaneseq
    %v158 = vshrl.u32 %v157, 7
    %v159 = vsub.s32 3, %v158
    %v160 = vrot.slane %v143, %v159
    %v173 = vunpack.c.l.b16 %v135
    %v174 = vunpack.c.h.b16 %v135
    %v175 = vunpack.c.l.b16 %v136
    %v176 = vunpack.c.h.b16 %v136
    %v177 = vunpack.c.l.b16 %v137
    %v178 = vunpack.c.h.b16 %v137
    %v179 = vunpack.c.l.b16 %v138
    %v180 = vunpack.c.h.b16 %v138
    %v181 = vunpack.c.l.b16 %v139
    %v182 = vunpack.c.h.b16 %v139
    %v183 = vunpack.c.l.b16 %v140
    %v184 = vunpack.c.h.b16 %v140
    %v185 = vunpack.c.l.b16 %v141
    %v186 = vunpack.c.h.b16 %v141
    %v187 = vunpack.c.l.b16 %v142
    %v188 = vunpack.c.h.b16 %v142
    %v189 = vpack.c.b16 %v177, %v173
    %v190 = vpack.c.b16 %v178, %v174
    %v191 = vpack.c.b16 %v179, %v175
    %v192 = vpack.c.b16 %v180, %v176
    %v193 = vpack.c.b16 %v185, %v181
    %v194 = vpack.c.b16 %v186, %v182
    %v195 = vpack.c.b16 %v187, %v183
    %v196 = vpack.c.b16 %v188, %v184
    %vm205 = vcmask 261120
    %v207 = vsel %vm205, %v134, 0
    %209 = vmatprep.subr.bf16.mxu0 0
    %210 = vmatpush1.bf16.msra.mxu0 0
    %211 = vmatprep.subr.bf16.mxu0 0
    %212 = vmatpush1.bf16.msra.mxu0 0
    %213 = vmatprep.subr.bf16.mxu0 0
    %214 = vmatpush1.bf16.msra.mxu0 0
    %215 = vmatprep.subr.bf16.mxu0 0
    %216 = vmatpush1.bf16.msra.mxu0 0
    %217 = vmatprep.subr.bf16.mxu0 0
    %218 = vmatpush1.bf16.msra.mxu0 0
    %219 = vmatprep.subr.bf16.mxu0 0
    %220 = vmatpush1.bf16.msra.mxu0 0
    %221 = vmatprep.subr.bf16.mxu0 %v194
    %222 = vmatpush1.bf16.msra.mxu0 %v193
    %223 = vmatprep.subr.bf16.mxu0 %v190
    %224 = vmatpush1.bf16.msra.mxu0 %v189
    %225 = vmatprep.subr.bf16.mxu0 0
    %226 = vmatpush2.bf16.msra.mxu0 0
    %227 = vmatprep.subr.bf16.mxu0 0
    %228 = vmatpush2.bf16.msra.mxu0 0
    %229 = vmatprep.subr.bf16.mxu0 0
    %230 = vmatpush2.bf16.msra.mxu0 0
    %231 = vmatprep.subr.bf16.mxu0 0
    %232 = vmatpush2.bf16.msra.mxu0 0
    %233 = vmatprep.subr.bf16.mxu0 0
    %234 = vmatpush2.bf16.msra.mxu0 0
    %235 = vmatprep.subr.bf16.mxu0 0
    %236 = vmatpush2.bf16.msra.mxu0 0
    %237 = vmatprep.subr.bf16.mxu0 0
    %238 = vmatpush2.bf16.msra.mxu0 0
    %239 = vmatprep.subr.bf16.mxu0 0
    %240 = vmatpush2.bf16.msra.mxu0 0
    %241 = vmatprep.mubr.bf16.mxu0 0
    %242 = vmatmul.mubr.bf16.gmra.mxu0 %v207
    %v243 = vpop.f32.mrf.mxu0
    %v244 = vadd.f32 %v148, %v243
    %v245 = vpop.f32.mrf.mxu0
    %v246 = vadd.f32 %v152, %v245
    %v247 = vpop.f32.mrf.mxu0
    %v248 = vpop.f32.mrf.mxu0
    %249 = vdwg.mxu0
    %250 = vmatprep.subr.bf16.mxu0 0
    %251 = vmatpush1.bf16.msra.mxu0 0
    %252 = vmatprep.subr.bf16.mxu0 0
    %253 = vmatpush1.bf16.msra.mxu0 0
    %254 = vmatprep.subr.bf16.mxu0 0
    %255 = vmatpush1.bf16.msra.mxu0 0
    %256 = vmatprep.subr.bf16.mxu0 0
    %257 = vmatpush1.bf16.msra.mxu0 0
    %258 = vmatprep.subr.bf16.mxu0 0
    %259 = vmatpush1.bf16.msra.mxu0 0
    %260 = vmatprep.subr.bf16.mxu0 0
    %261 = vmatpush1.bf16.msra.mxu0 0
    %262 = vmatprep.subr.bf16.mxu0 %v196
    %263 = vmatpush1.bf16.msra.mxu0 %v195
    %264 = vmatprep.subr.bf16.mxu0 %v192
    %265 = vmatpush1.bf16.msra.mxu0 %v191
    %266 = vmatprep.subr.bf16.mxu0 0
    %267 = vmatpush2.bf16.msra.mxu0 0
    %268 = vmatprep.subr.bf16.mxu0 0
    %269 = vmatpush2.bf16.msra.mxu0 0
    %270 = vmatprep.subr.bf16.mxu0 0
    %271 = vmatpush2.bf16.msra.mxu0 0
    %272 = vmatprep.subr.bf16.mxu0 0
    %273 = vmatpush2.bf16.msra.mxu0 0
    %274 = vmatprep.subr.bf16.mxu0 0
    %275 = vmatpush2.bf16.msra.mxu0 0
    %276 = vmatprep.subr.bf16.mxu0 0
    %277 = vmatpush2.bf16.msra.mxu0 0
    %278 = vmatprep.subr.bf16.mxu0 0
    %279 = vmatpush2.bf16.msra.mxu0 0
    %280 = vmatprep.subr.bf16.mxu0 0
    %281 = vmatpush2.bf16.msra.mxu0 0
    %282 = vmatprep.mubr.bf16.mxu0 0
    %283 = vmatmul.mubr.bf16.gmra.mxu0 %v207
    %v284 = vpop.f32.mrf.mxu0
    %v285 = vadd.f32 %v156, %v284
    %v286 = vpop.f32.mrf.mxu0
    %v287 = vadd.f32 %v160, %v286
    %v288 = vpop.f32.mrf.mxu0
    %v289 = vpop.f32.mrf.mxu0
    %290 = vdwg.mxu0
    %v291 = vmax.f32 %v244, 0.0
    %v292 = vmax.f32 %v246, 0.0
    %v293 = vmax.f32 %v285, 0.0
    %v294 = vmax.f32 %v287, 0.0
    %v295 = vpack.c.bf16 %v291, %v291
    %v296 = vpack.c.bf16 %v292, %v292
    %v297 = vpack.c.bf16 %v293, %v293
    %v298 = vpack.c.bf16 %v294, %v294
    %v299 = vld [vmem:[#allocation6] sm:$0xff]
    %v300 = vld [vmem:[#allocation6 + $0x8] sm:$0xff]
    %v301 = vld [vmem:[#allocation6 + $0x10] sm:$0xff]
    %v302 = vld [vmem:[#allocation6 + $0x18] sm:$0xff]
    %v303 = vld [vmem:[#allocation6 + $0x20] sm:$0xff]
    %v304 = vld [vmem:[#allocation6 + $0x28] sm:$0xff]
    %v305 = vld [vmem:[#allocation6 + $0x30] sm:$0xff]
    %v306 = vld [vmem:[#allocation6 + $0x38] sm:$0xff]
    %v307 = vld [vmem:[#allocation6 + $0x40] sm:$0xff]
    %v308 = vld [vmem:[#allocation6 + $0x48] sm:$0xff]
    %v309 = vld [vmem:[#allocation6 + $0x50] sm:$0xff]
    %v310 = vld [vmem:[#allocation6 + $0x58] sm:$0xff]
    %v311 = vld [vmem:[#allocation6 + $0x60] sm:$0xff]
    %v312 = vld [vmem:[#allocation6 + $0x68] sm:$0xff]
    %v313 = vld [vmem:[#allocation6 + $0x70] sm:$0xff]
    %v314 = vld [vmem:[#allocation6 + $0x78] sm:$0xff]
    %v315 = vld [vmem:[#allocation6 + $0x80] sm:$0xff]
    %v316 = vld [vmem:[#allocation6 + $0x88] sm:$0xff]
    %v317 = vld [vmem:[#allocation6 + $0x90] sm:$0xff]
    %v318 = vld [vmem:[#allocation6 + $0x98] sm:$0xff]
    %v319 = vld [vmem:[#allocation6 + $0xa0] sm:$0xff]
    %v320 = vld [vmem:[#allocation6 + $0xa8] sm:$0xff]
    %v321 = vld [vmem:[#allocation6 + $0xb0] sm:$0xff]
    %v322 = vld [vmem:[#allocation6 + $0xb8] sm:$0xff]
    %v323 = vld [vmem:[#allocation6 + $0xc0] sm:$0xff]
    %v324 = vld [vmem:[#allocation6 + $0xc8] sm:$0xff]
    %v325 = vld [vmem:[#allocation6 + $0xd0] sm:$0xff]
    %v326 = vld [vmem:[#allocation6 + $0xd8] sm:$0xff]
    %v327 = vld [vmem:[#allocation6 + $0xe0] sm:$0xff]
    %v328 = vld [vmem:[#allocation6 + $0xe8] sm:$0xff]
    %v329 = vld [vmem:[#allocation6 + $0xf0] sm:$0xff]
    %v330 = vld [vmem:[#allocation6 + $0xf8] sm:$0xff]
    %v331 = vld [vmem:[#allocation6 + $0x100] sm:$0xff]
    %v332 = vld [vmem:[#allocation6 + $0x108] sm:$0xff]
    %v333 = vld [vmem:[#allocation6 + $0x110] sm:$0xff]
    %v334 = vld [vmem:[#allocation6 + $0x118] sm:$0xff]
    %v335 = vld [vmem:[#allocation6 + $0x120] sm:$0xff]
    %v336 = vld [vmem:[#allocation6 + $0x128] sm:$0xff]
    %v337 = vld [vmem:[#allocation6 + $0x130] sm:$0xff]
    %v338 = vld [vmem:[#allocation6 + $0x138] sm:$0xff]
    %v339 = vld [vmem:[#allocation6 + $0x140] sm:$0xff]
    %v340 = vld [vmem:[#allocation6 + $0x148] sm:$0xff]
    %v341 = vld [vmem:[#allocation6 + $0x150] sm:$0xff]
    %v342 = vld [vmem:[#allocation6 + $0x158] sm:$0xff]
    %v343 = vld [vmem:[#allocation6 + $0x160] sm:$0xff]
    %v344 = vld [vmem:[#allocation6 + $0x168] sm:$0xff]
    %v345 = vld [vmem:[#allocation6 + $0x170] sm:$0xff]
    %v346 = vld [vmem:[#allocation6 + $0x178] sm:$0xff]
    %v347 = vld [vmem:[#allocation6 + $0x180] sm:$0xff]
    %v348 = vld [vmem:[#allocation6 + $0x188] sm:$0xff]
    %v349 = vld [vmem:[#allocation6 + $0x190] sm:$0xff]
    %v350 = vld [vmem:[#allocation6 + $0x198] sm:$0xff]
    %v351 = vld [vmem:[#allocation6 + $0x1a0] sm:$0xff]
    %v352 = vld [vmem:[#allocation6 + $0x1a8] sm:$0xff]
    %v353 = vld [vmem:[#allocation6 + $0x1b0] sm:$0xff]
    %v354 = vld [vmem:[#allocation6 + $0x1b8] sm:$0xff]
    %v355 = vld [vmem:[#allocation6 + $0x1c0] sm:$0xff]
    %v356 = vld [vmem:[#allocation6 + $0x1c8] sm:$0xff]
    %v357 = vld [vmem:[#allocation6 + $0x1d0] sm:$0xff]
    %v358 = vld [vmem:[#allocation6 + $0x1d8] sm:$0xff]
    %v359 = vld [vmem:[#allocation6 + $0x1e0] sm:$0xff]
    %v360 = vld [vmem:[#allocation6 + $0x1e8] sm:$0xff]
    %v361 = vld [vmem:[#allocation6 + $0x1f0] sm:$0xff]
    %v362 = vld [vmem:[#allocation6 + $0x1f8] sm:$0xff]
    %v363 = vld [vmem:[#allocation6 + $0x200] sm:$0xff]
    %v364 = vld [vmem:[#allocation6 + $0x208] sm:$0xff]
    %v365 = vld [vmem:[#allocation6 + $0x210] sm:$0xff]
    %v366 = vld [vmem:[#allocation6 + $0x218] sm:$0xff]
    %v367 = vld [vmem:[#allocation6 + $0x220] sm:$0xff]
    %v368 = vld [vmem:[#allocation6 + $0x228] sm:$0xff]
    %v369 = vld [vmem:[#allocation6 + $0x230] sm:$0xff]
    %v370 = vld [vmem:[#allocation6 + $0x238] sm:$0xff]
    %v371 = vld [vmem:[#allocation6 + $0x240] sm:$0xff]
    %v372 = vld [vmem:[#allocation6 + $0x248] sm:$0xff]
    %v373 = vld [vmem:[#allocation6 + $0x250] sm:$0xff]
    %v374 = vld [vmem:[#allocation6 + $0x258] sm:$0xff]
    %v375 = vld [vmem:[#allocation6 + $0x260] sm:$0xff]
    %v376 = vld [vmem:[#allocation6 + $0x268] sm:$0xff]
    %v377 = vld [vmem:[#allocation6 + $0x270] sm:$0xff]
    %v378 = vld [vmem:[#allocation6 + $0x278] sm:$0xff]
    %v379 = vld [vmem:[#allocation6 + $0x280] sm:$0xff]
    %v380 = vld [vmem:[#allocation6 + $0x288] sm:$0xff]
    %v381 = vld [vmem:[#allocation6 + $0x290] sm:$0xff]
    %v382 = vld [vmem:[#allocation6 + $0x298] sm:$0xff]
    %v383 = vld [vmem:[#allocation6 + $0x2a0] sm:$0xff]
    %v384 = vld [vmem:[#allocation6 + $0x2a8] sm:$0xff]
    %v385 = vld [vmem:[#allocation6 + $0x2b0] sm:$0xff]
    %v386 = vld [vmem:[#allocation6 + $0x2b8] sm:$0xff]
    %v387 = vld [vmem:[#allocation6 + $0x2c0] sm:$0xff]
    %v388 = vld [vmem:[#allocation6 + $0x2c8] sm:$0xff]
    %v389 = vld [vmem:[#allocation6 + $0x2d0] sm:$0xff]
    %v390 = vld [vmem:[#allocation6 + $0x2d8] sm:$0xff]
    %v391 = vld [vmem:[#allocation6 + $0x2e0] sm:$0xff]
    %v392 = vld [vmem:[#allocation6 + $0x2e8] sm:$0xff]
    %v393 = vld [vmem:[#allocation6 + $0x2f0] sm:$0xff]
    %v394 = vld [vmem:[#allocation6 + $0x2f8] sm:$0xff]
    %v395 = vld [vmem:[#allocation6 + $0x300] sm:$0xff]
    %v396 = vld [vmem:[#allocation6 + $0x308] sm:$0xff]
    %v397 = vld [vmem:[#allocation6 + $0x310] sm:$0xff]
    %v398 = vld [vmem:[#allocation6 + $0x318] sm:$0xff]
    %v399 = vld [vmem:[#allocation6 + $0x320] sm:$0xff]
    %v400 = vld [vmem:[#allocation6 + $0x328] sm:$0xff]
    %v401 = vld [vmem:[#allocation6 + $0x330] sm:$0xff]
    %v402 = vld [vmem:[#allocation6 + $0x338] sm:$0xff]
    %v403 = vld [vmem:[#allocation6 + $0x340] sm:$0xff]
    %v404 = vld [vmem:[#allocation6 + $0x348] sm:$0xff]
    %v405 = vld [vmem:[#allocation6 + $0x350] sm:$0xff]
    %v406 = vld [vmem:[#allocation6 + $0x358] sm:$0xff]
    %v407 = vld [vmem:[#allocation6 + $0x360] sm:$0xff]
    %v408 = vld [vmem:[#allocation6 + $0x368] sm:$0xff]
    %v409 = vld [vmem:[#allocation6 + $0x370] sm:$0xff]
    %v410 = vld [vmem:[#allocation6 + $0x378] sm:$0xff]
    %v411 = vld [vmem:[#allocation6 + $0x380] sm:$0xff]
    %v412 = vld [vmem:[#allocation6 + $0x388] sm:$0xff]
    %v413 = vld [vmem:[#allocation6 + $0x390] sm:$0xff]
    %v414 = vld [vmem:[#allocation6 + $0x398] sm:$0xff]
    %v415 = vld [vmem:[#allocation6 + $0x3a0] sm:$0xff]
    %v416 = vld [vmem:[#allocation6 + $0x3a8] sm:$0xff]
    %v417 = vld [vmem:[#allocation6 + $0x3b0] sm:$0xff]
    %v418 = vld [vmem:[#allocation6 + $0x3b8] sm:$0xff]
    %v419 = vld [vmem:[#allocation6 + $0x3c0] sm:$0xff]
    %v420 = vld [vmem:[#allocation6 + $0x3c8] sm:$0xff]
    %v421 = vld [vmem:[#allocation6 + $0x3d0] sm:$0xff]
    %v422 = vld [vmem:[#allocation6 + $0x3d8] sm:$0xff]
    %v423 = vld [vmem:[#allocation6 + $0x3e0] sm:$0xff]
    %v424 = vld [vmem:[#allocation6 + $0x3e8] sm:$0xff]
    %v425 = vld [vmem:[#allocation6 + $0x3f0] sm:$0xff]
    %v426 = vld [vmem:[#allocation6 + $0x3f8] sm:$0xff]
    %v427 = vld [vmem:[#allocation7] sm:$0xf]
    %v429 = vlaneseq
    %v430 = vshrl.u32 %v429, 7
    %v431 = vsub.s32 0, %v430
    %v432 = vrot.slane %v427, %v431
    %v433 = vlaneseq
    %v434 = vshrl.u32 %v433, 7
    %v435 = vsub.s32 1, %v434
    %v436 = vrot.slane %v427, %v435
    %v437 = vlaneseq
    %v438 = vshrl.u32 %v437, 7
    %v439 = vsub.s32 2, %v438
    %v440 = vrot.slane %v427, %v439
    %v441 = vlaneseq
    %v442 = vshrl.u32 %v441, 7
    %v443 = vsub.s32 3, %v442
    %v444 = vrot.slane %v427, %v443
    %v577 = vunpack.c.l.b16 %v299
    %v578 = vunpack.c.h.b16 %v299
    %v579 = vunpack.c.l.b16 %v300
    %v580 = vunpack.c.h.b16 %v300
    %v581 = vunpack.c.l.b16 %v301
    %v582 = vunpack.c.h.b16 %v301
    %v583 = vunpack.c.l.b16 %v302
    %v584 = vunpack.c.h.b16 %v302
    %v585 = vunpack.c.l.b16 %v303
    %v586 = vunpack.c.h.b16 %v303
    %v587 = vunpack.c.l.b16 %v304
    %v588 = vunpack.c.h.b16 %v304
    %v589 = vunpack.c.l.b16 %v305
    %v590 = vunpack.c.h.b16 %v305
    %v591 = vunpack.c.l.b16 %v306
    %v592 = vunpack.c.h.b16 %v306
    %v593 = vunpack.c.l.b16 %v307
    %v594 = vunpack.c.h.b16 %v307
    %v595 = vunpack.c.l.b16 %v308
    %v596 = vunpack.c.h.b16 %v308
    %v597 = vunpack.c.l.b16 %v309
    %v598 = vunpack.c.h.b16 %v309
    %v599 = vunpack.c.l.b16 %v310
    %v600 = vunpack.c.h.b16 %v310
    %v601 = vunpack.c.l.b16 %v311
    %v602 = vunpack.c.h.b16 %v311
    %v603 = vunpack.c.l.b16 %v312
    %v604 = vunpack.c.h.b16 %v312
    %v605 = vunpack.c.l.b16 %v313
    %v606 = vunpack.c.h.b16 %v313
    %v607 = vunpack.c.l.b16 %v314
    %v608 = vunpack.c.h.b16 %v314
    %v609 = vunpack.c.l.b16 %v315
    %v610 = vunpack.c.h.b16 %v315
    %v611 = vunpack.c.l.b16 %v316
    %v612 = vunpack.c.h.b16 %v316
    %v613 = vunpack.c.l.b16 %v317
    %v614 = vunpack.c.h.b16 %v317
    %v615 = vunpack.c.l.b16 %v318
    %v616 = vunpack.c.h.b16 %v318
    %v617 = vunpack.c.l.b16 %v319
    %v618 = vunpack.c.h.b16 %v319
    %v619 = vunpack.c.l.b16 %v320
    %v620 = vunpack.c.h.b16 %v320
    %v621 = vunpack.c.l.b16 %v321
    %v622 = vunpack.c.h.b16 %v321
    %v623 = vunpack.c.l.b16 %v322
    %v624 = vunpack.c.h.b16 %v322
    %v625 = vunpack.c.l.b16 %v323
    %v626 = vunpack.c.h.b16 %v323
    %v627 = vunpack.c.l.b16 %v324
    %v628 = vunpack.c.h.b16 %v324
    %v629 = vunpack.c.l.b16 %v325
    %v630 = vunpack.c.h.b16 %v325
    %v631 = vunpack.c.l.b16 %v326
    %v632 = vunpack.c.h.b16 %v326
    %v633 = vunpack.c.l.b16 %v327
    %v634 = vunpack.c.h.b16 %v327
    %v635 = vunpack.c.l.b16 %v328
    %v636 = vunpack.c.h.b16 %v328
    %v637 = vunpack.c.l.b16 %v329
    %v638 = vunpack.c.h.b16 %v329
    %v639 = vunpack.c.l.b16 %v330
    %v640 = vunpack.c.h.b16 %v330
    %v641 = vunpack.c.l.b16 %v331
    %v642 = vunpack.c.h.b16 %v331
    %v643 = vunpack.c.l.b16 %v332
    %v644 = vunpack.c.h.b16 %v332
    %v645 = vunpack.c.l.b16 %v333
    %v646 = vunpack.c.h.b16 %v333
    %v647 = vunpack.c.l.b16 %v334
    %v648 = vunpack.c.h.b16 %v334
    %v649 = vunpack.c.l.b16 %v335
    %v650 = vunpack.c.h.b16 %v335
    %v651 = vunpack.c.l.b16 %v336
    %v652 = vunpack.c.h.b16 %v336
    %v653 = vunpack.c.l.b16 %v337
    %v654 = vunpack.c.h.b16 %v337
    %v655 = vunpack.c.l.b16 %v338
    %v656 = vunpack.c.h.b16 %v338
    %v657 = vunpack.c.l.b16 %v339
    %v658 = vunpack.c.h.b16 %v339
    %v659 = vunpack.c.l.b16 %v340
    %v660 = vunpack.c.h.b16 %v340
    %v661 = vunpack.c.l.b16 %v341
    %v662 = vunpack.c.h.b16 %v341
    %v663 = vunpack.c.l.b16 %v342
    %v664 = vunpack.c.h.b16 %v342
    %v665 = vunpack.c.l.b16 %v343
    %v666 = vunpack.c.h.b16 %v343
    %v667 = vunpack.c.l.b16 %v344
    %v668 = vunpack.c.h.b16 %v344
    %v669 = vunpack.c.l.b16 %v345
    %v670 = vunpack.c.h.b16 %v345
    %v671 = vunpack.c.l.b16 %v346
    %v672 = vunpack.c.h.b16 %v346
    %v673 = vunpack.c.l.b16 %v347
    %v674 = vunpack.c.h.b16 %v347
    %v675 = vunpack.c.l.b16 %v348
    %v676 = vunpack.c.h.b16 %v348
    %v677 = vunpack.c.l.b16 %v349
    %v678 = vunpack.c.h.b16 %v349
    %v679 = vunpack.c.l.b16 %v350
    %v680 = vunpack.c.h.b16 %v350
    %v681 = vunpack.c.l.b16 %v351
    %v682 = vunpack.c.h.b16 %v351
    %v683 = vunpack.c.l.b16 %v352
    %v684 = vunpack.c.h.b16 %v352
    %v685 = vunpack.c.l.b16 %v353
    %v686 = vunpack.c.h.b16 %v353
    %v687 = vunpack.c.l.b16 %v354
    %v688 = vunpack.c.h.b16 %v354
    %v689 = vunpack.c.l.b16 %v355
    %v690 = vunpack.c.h.b16 %v355
    %v691 = vunpack.c.l.b16 %v356
    %v692 = vunpack.c.h.b16 %v356
    %v693 = vunpack.c.l.b16 %v357
    %v694 = vunpack.c.h.b16 %v357
    %v695 = vunpack.c.l.b16 %v358
    %v696 = vunpack.c.h.b16 %v358
    %v697 = vunpack.c.l.b16 %v359
    %v698 = vunpack.c.h.b16 %v359
    %v699 = vunpack.c.l.b16 %v360
    %v700 = vunpack.c.h.b16 %v360
    %v701 = vunpack.c.l.b16 %v361
    %v702 = vunpack.c.h.b16 %v361
    %v703 = vunpack.c.l.b16 %v362
    %v704 = vunpack.c.h.b16 %v362
    %v705 = vunpack.c.l.b16 %v363
    %v706 = vunpack.c.h.b16 %v363
    %v707 = vunpack.c.l.b16 %v364
    %v708 = vunpack.c.h.b16 %v364
    %v709 = vunpack.c.l.b16 %v365
    %v710 = vunpack.c.h.b16 %v365
    %v711 = vunpack.c.l.b16 %v366
    %v712 = vunpack.c.h.b16 %v366
    %v713 = vunpack.c.l.b16 %v367
    %v714 = vunpack.c.h.b16 %v367
    %v715 = vunpack.c.l.b16 %v368
    %v716 = vunpack.c.h.b16 %v368
    %v717 = vunpack.c.l.b16 %v369
    %v718 = vunpack.c.h.b16 %v369
    %v719 = vunpack.c.l.b16 %v370
    %v720 = vunpack.c.h.b16 %v370
    %v721 = vunpack.c.l.b16 %v371
    %v722 = vunpack.c.h.b16 %v371
    %v723 = vunpack.c.l.b16 %v372
    %v724 = vunpack.c.h.b16 %v372
    %v725 = vunpack.c.l.b16 %v373
    %v726 = vunpack.c.h.b16 %v373
    %v727 = vunpack.c.l.b16 %v374
    %v728 = vunpack.c.h.b16 %v374
    %v729 = vunpack.c.l.b16 %v375
    %v730 = vunpack.c.h.b16 %v375
    %v731 = vunpack.c.l.b16 %v376
    %v732 = vunpack.c.h.b16 %v376
    %v733 = vunpack.c.l.b16 %v377
    %v734 = vunpack.c.h.b16 %v377
    %v735 = vunpack.c.l.b16 %v378
    %v736 = vunpack.c.h.b16 %v378
    %v737 = vunpack.c.l.b16 %v379
    %v738 = vunpack.c.h.b16 %v379
    %v739 = vunpack.c.l.b16 %v380
    %v740 = vunpack.c.h.b16 %v380
    %v741 = vunpack.c.l.b16 %v381
    %v742 = vunpack.c.h.b16 %v381
    %v743 = vunpack.c.l.b16 %v382
    %v744 = vunpack.c.h.b16 %v382
    %v745 = vunpack.c.l.b16 %v383
    %v746 = vunpack.c.h.b16 %v383
    %v747 = vunpack.c.l.b16 %v384
    %v748 = vunpack.c.h.b16 %v384
    %v749 = vunpack.c.l.b16 %v385
    %v750 = vunpack.c.h.b16 %v385
    %v751 = vunpack.c.l.b16 %v386
    %v752 = vunpack.c.h.b16 %v386
    %v753 = vunpack.c.l.b16 %v387
    %v754 = vunpack.c.h.b16 %v387
    %v755 = vunpack.c.l.b16 %v388
    %v756 = vunpack.c.h.b16 %v388
    %v757 = vunpack.c.l.b16 %v389
    %v758 = vunpack.c.h.b16 %v389
    %v759 = vunpack.c.l.b16 %v390
    %v760 = vunpack.c.h.b16 %v390
    %v761 = vunpack.c.l.b16 %v391
    %v762 = vunpack.c.h.b16 %v391
    %v763 = vunpack.c.l.b16 %v392
    %v764 = vunpack.c.h.b16 %v392
    %v765 = vunpack.c.l.b16 %v393
    %v766 = vunpack.c.h.b16 %v393
    %v767 = vunpack.c.l.b16 %v394
    %v768 = vunpack.c.h.b16 %v394
    %v769 = vunpack.c.l.b16 %v395
    %v770 = vunpack.c.h.b16 %v395
    %v771 = vunpack.c.l.b16 %v396
    %v772 = vunpack.c.h.b16 %v396
    %v773 = vunpack.c.l.b16 %v397
    %v774 = vunpack.c.h.b16 %v397
    %v775 = vunpack.c.l.b16 %v398
    %v776 = vunpack.c.h.b16 %v398
    %v777 = vunpack.c.l.b16 %v399
    %v778 = vunpack.c.h.b16 %v399
    %v779 = vunpack.c.l.b16 %v400
    %v780 = vunpack.c.h.b16 %v400
    %v781 = vunpack.c.l.b16 %v401
    %v782 = vunpack.c.h.b16 %v401
    %v783 = vunpack.c.l.b16 %v402
    %v784 = vunpack.c.h.b16 %v402
    %v785 = vunpack.c.l.b16 %v403
    %v786 = vunpack.c.h.b16 %v403
    %v787 = vunpack.c.l.b16 %v404
    %v788 = vunpack.c.h.b16 %v404
    %v789 = vunpack.c.l.b16 %v405
    %v790 = vunpack.c.h.b16 %v405
    %v791 = vunpack.c.l.b16 %v406
    %v792 = vunpack.c.h.b16 %v406
    %v793 = vunpack.c.l.b16 %v407
    %v794 = vunpack.c.h.b16 %v407
    %v795 = vunpack.c.l.b16 %v408
    %v796 = vunpack.c.h.b16 %v408
    %v797 = vunpack.c.l.b16 %v409
    %v798 = vunpack.c.h.b16 %v409
    %v799 = vunpack.c.l.b16 %v410
    %v800 = vunpack.c.h.b16 %v410
    %v801 = vunpack.c.l.b16 %v411
    %v802 = vunpack.c.h.b16 %v411
    %v803 = vunpack.c.l.b16 %v412
    %v804 = vunpack.c.h.b16 %v412
    %v805 = vunpack.c.l.b16 %v413
    %v806 = vunpack.c.h.b16 %v413
    %v807 = vunpack.c.l.b16 %v414
    %v808 = vunpack.c.h.b16 %v414
    %v809 = vunpack.c.l.b16 %v415
    %v810 = vunpack.c.h.b16 %v415
    %v811 = vunpack.c.l.b16 %v416
    %v812 = vunpack.c.h.b16 %v416
    %v813 = vunpack.c.l.b16 %v417
    %v814 = vunpack.c.h.b16 %v417
    %v815 = vunpack.c.l.b16 %v418
    %v816 = vunpack.c.h.b16 %v418
    %v817 = vunpack.c.l.b16 %v419
    %v818 = vunpack.c.h.b16 %v419
    %v819 = vunpack.c.l.b16 %v420
    %v820 = vunpack.c.h.b16 %v420
    %v821 = vunpack.c.l.b16 %v421
    %v822 = vunpack.c.h.b16 %v421
    %v823 = vunpack.c.l.b16 %v422
    %v824 = vunpack.c.h.b16 %v422
    %v825 = vunpack.c.l.b16 %v423
    %v826 = vunpack.c.h.b16 %v423
    %v827 = vunpack.c.l.b16 %v424
    %v828 = vunpack.c.h.b16 %v424
    %v829 = vunpack.c.l.b16 %v425
    %v830 = vunpack.c.h.b16 %v425
    %v831 = vunpack.c.l.b16 %v426
    %v832 = vunpack.c.h.b16 %v426
    %v833 = vpack.c.b16 %v581, %v577
    %v834 = vpack.c.b16 %v582, %v578
    %v835 = vpack.c.b16 %v583, %v579
    %v836 = vpack.c.b16 %v584, %v580
    %v837 = vpack.c.b16 %v589, %v585
    %v838 = vpack.c.b16 %v590, %v586
    %v839 = vpack.c.b16 %v591, %v587
    %v840 = vpack.c.b16 %v592, %v588
    %v841 = vpack.c.b16 %v597, %v593
    %v842 = vpack.c.b16 %v598, %v594
    %v843 = vpack.c.b16 %v599, %v595
    %v844 = vpack.c.b16 %v600, %v596
    %v845 = vpack.c.b16 %v605, %v601
    %v846 = vpack.c.b16 %v606, %v602
    %v847 = vpack.c.b16 %v607, %v603
    %v848 = vpack.c.b16 %v608, %v604
    %v849 = vpack.c.b16 %v613, %v609
    %v850 = vpack.c.b16 %v614, %v610
    %v851 = vpack.c.b16 %v615, %v611
    %v852 = vpack.c.b16 %v616, %v612
    %v853 = vpack.c.b16 %v621, %v617
    %v854 = vpack.c.b16 %v622, %v618
    %v855 = vpack.c.b16 %v623, %v619
    %v856 = vpack.c.b16 %v624, %v620
    %v857 = vpack.c.b16 %v629, %v625
    %v858 = vpack.c.b16 %v630, %v626
    %v859 = vpack.c.b16 %v631, %v627
    %v860 = vpack.c.b16 %v632, %v628
    %v861 = vpack.c.b16 %v637, %v633
    %v862 = vpack.c.b16 %v638, %v634
    %v863 = vpack.c.b16 %v639, %v635
    %v864 = vpack.c.b16 %v640, %v636
    %v865 = vpack.c.b16 %v645, %v641
    %v866 = vpack.c.b16 %v646, %v642
    %v867 = vpack.c.b16 %v647, %v643
    %v868 = vpack.c.b16 %v648, %v644
    %v869 = vpack.c.b16 %v653, %v649
    %v870 = vpack.c.b16 %v654, %v650
    %v871 = vpack.c.b16 %v655, %v651
    %v872 = vpack.c.b16 %v656, %v652
    %v873 = vpack.c.b16 %v661, %v657
    %v874 = vpack.c.b16 %v662, %v658
    %v875 = vpack.c.b16 %v663, %v659
    %v876 = vpack.c.b16 %v664, %v660
    %v877 = vpack.c.b16 %v669, %v665
    %v878 = vpack.c.b16 %v670, %v666
    %v879 = vpack.c.b16 %v671, %v667
    %v880 = vpack.c.b16 %v672, %v668
    %v881 = vpack.c.b16 %v677, %v673
    %v882 = vpack.c.b16 %v678, %v674
    %v883 = vpack.c.b16 %v679, %v675
    %v884 = vpack.c.b16 %v680, %v676
    %v885 = vpack.c.b16 %v685, %v681
    %v886 = vpack.c.b16 %v686, %v682
    %v887 = vpack.c.b16 %v687, %v683
    %v888 = vpack.c.b16 %v688, %v684
    %v889 = vpack.c.b16 %v693, %v689
    %v890 = vpack.c.b16 %v694, %v690
    %v891 = vpack.c.b16 %v695, %v691
    %v892 = vpack.c.b16 %v696, %v692
    %v893 = vpack.c.b16 %v701, %v697
    %v894 = vpack.c.b16 %v702, %v698
    %v895 = vpack.c.b16 %v703, %v699
    %v896 = vpack.c.b16 %v704, %v700
    %v897 = vpack.c.b16 %v709, %v705
    %v898 = vpack.c.b16 %v710, %v706
    %v899 = vpack.c.b16 %v711, %v707
    %v900 = vpack.c.b16 %v712, %v708
    %v901 = vpack.c.b16 %v717, %v713
    %v902 = vpack.c.b16 %v718, %v714
    %v903 = vpack.c.b16 %v719, %v715
    %v904 = vpack.c.b16 %v720, %v716
    %v905 = vpack.c.b16 %v725, %v721
    %v906 = vpack.c.b16 %v726, %v722
    %v907 = vpack.c.b16 %v727, %v723
    %v908 = vpack.c.b16 %v728, %v724
    %v909 = vpack.c.b16 %v733, %v729
    %v910 = vpack.c.b16 %v734, %v730
    %v911 = vpack.c.b16 %v735, %v731
    %v912 = vpack.c.b16 %v736, %v732
    %v913 = vpack.c.b16 %v741, %v737
    %v914 = vpack.c.b16 %v742, %v738
    %v915 = vpack.c.b16 %v743, %v739
    %v916 = vpack.c.b16 %v744, %v740
    %v917 = vpack.c.b16 %v749, %v745
    %v918 = vpack.c.b16 %v750, %v746
    %v919 = vpack.c.b16 %v751, %v747
    %v920 = vpack.c.b16 %v752, %v748
    %v921 = vpack.c.b16 %v757, %v753
    %v922 = vpack.c.b16 %v758, %v754
    %v923 = vpack.c.b16 %v759, %v755
    %v924 = vpack.c.b16 %v760, %v756
    %v925 = vpack.c.b16 %v765, %v761
    %v926 = vpack.c.b16 %v766, %v762
    %v927 = vpack.c.b16 %v767, %v763
    %v928 = vpack.c.b16 %v768, %v764
    %v929 = vpack.c.b16 %v773, %v769
    %v930 = vpack.c.b16 %v774, %v770
    %v931 = vpack.c.b16 %v775, %v771
    %v932 = vpack.c.b16 %v776, %v772
    %v933 = vpack.c.b16 %v781, %v777
    %v934 = vpack.c.b16 %v782, %v778
    %v935 = vpack.c.b16 %v783, %v779
    %v936 = vpack.c.b16 %v784, %v780
    %v937 = vpack.c.b16 %v789, %v785
    %v938 = vpack.c.b16 %v790, %v786
    %v939 = vpack.c.b16 %v791, %v787
    %v940 = vpack.c.b16 %v792, %v788
    %v941 = vpack.c.b16 %v797, %v793
    %v942 = vpack.c.b16 %v798, %v794
    %v943 = vpack.c.b16 %v799, %v795
    %v944 = vpack.c.b16 %v800, %v796
    %v945 = vpack.c.b16 %v805, %v801
    %v946 = vpack.c.b16 %v806, %v802
    %v947 = vpack.c.b16 %v807, %v803
    %v948 = vpack.c.b16 %v808, %v804
    %v949 = vpack.c.b16 %v813, %v809
    %v950 = vpack.c.b16 %v814, %v810
    %v951 = vpack.c.b16 %v815, %v811
    %v952 = vpack.c.b16 %v816, %v812
    %v953 = vpack.c.b16 %v821, %v817
    %v954 = vpack.c.b16 %v822, %v818
    %v955 = vpack.c.b16 %v823, %v819
    %v956 = vpack.c.b16 %v824, %v820
    %v957 = vpack.c.b16 %v829, %v825
    %v958 = vpack.c.b16 %v830, %v826
    %v959 = vpack.c.b16 %v831, %v827
    %v960 = vpack.c.b16 %v832, %v828
    %1089 = vmatprep.subr.bf16.mxu0 %v862
    %1090 = vmatpush1.bf16.msra.mxu0 %v861
    %1091 = vmatprep.subr.bf16.mxu0 %v858
    %1092 = vmatpush1.bf16.msra.mxu0 %v857
    %1093 = vmatprep.subr.bf16.mxu0 %v854
    %1094 = vmatpush1.bf16.msra.mxu0 %v853
    %1095 = vmatprep.subr.bf16.mxu0 %v850
    %1096 = vmatpush1.bf16.msra.mxu0 %v849
    %1097 = vmatprep.subr.bf16.mxu0 %v846
    %1098 = vmatpush1.bf16.msra.mxu0 %v845
    %1099 = vmatprep.subr.bf16.mxu0 %v842
    %1100 = vmatpush1.bf16.msra.mxu0 %v841
    %1101 = vmatprep.subr.bf16.mxu0 %v838
    %1102 = vmatpush1.bf16.msra.mxu0 %v837
    %1103 = vmatprep.subr.bf16.mxu0 %v834
    %1104 = vmatpush1.bf16.msra.mxu0 %v833
    %1105 = vmatprep.subr.bf16.mxu0 %v894
    %1106 = vmatpush2.bf16.msra.mxu0 %v893
    %1107 = vmatprep.subr.bf16.mxu0 %v890
    %1108 = vmatpush2.bf16.msra.mxu0 %v889
    %1109 = vmatprep.subr.bf16.mxu0 %v886
    %1110 = vmatpush2.bf16.msra.mxu0 %v885
    %1111 = vmatprep.subr.bf16.mxu0 %v882
    %1112 = vmatpush2.bf16.msra.mxu0 %v881
    %1113 = vmatprep.subr.bf16.mxu0 %v878
    %1114 = vmatpush2.bf16.msra.mxu0 %v877
    %1115 = vmatprep.subr.bf16.mxu0 %v874
    %1116 = vmatpush2.bf16.msra.mxu0 %v873
    %1117 = vmatprep.subr.bf16.mxu0 %v870
    %1118 = vmatpush2.bf16.msra.mxu0 %v869
    %1119 = vmatprep.subr.bf16.mxu0 %v866
    %1120 = vmatpush2.bf16.msra.mxu0 %v865
    %1121 = vmatprep.mubr.bf16.mxu0 %v296
    %1122 = vmatmul.mubr.bf16.gmra.mxu0 %v295
    %v1123 = vpop.f32.mrf.mxu0
    %v1124 = vadd.f32 %v432, %v1123
    %v1125 = vpop.f32.mrf.mxu0
    %v1126 = vadd.f32 %v436, %v1125
    %v1127 = vpop.f32.mrf.mxu0
    %v1128 = vpop.f32.mrf.mxu0
    %1129 = vdwg.mxu0
    %1130 = vmatprep.subr.bf16.mxu0 %v926
    %1131 = vmatpush1.bf16.msra.mxu0 %v925
    %1132 = vmatprep.subr.bf16.mxu0 %v922
    %1133 = vmatpush1.bf16.msra.mxu0 %v921
    %1134 = vmatprep.subr.bf16.mxu0 %v918
    %1135 = vmatpush1.bf16.msra.mxu0 %v917
    %1136 = vmatprep.subr.bf16.mxu0 %v914
    %1137 = vmatpush1.bf16.msra.mxu0 %v913
    %1138 = vmatprep.subr.bf16.mxu0 %v910
    %1139 = vmatpush1.bf16.msra.mxu0 %v909
    %1140 = vmatprep.subr.bf16.mxu0 %v906
    %1141 = vmatpush1.bf16.msra.mxu0 %v905
    %1142 = vmatprep.subr.bf16.mxu0 %v902
    %1143 = vmatpush1.bf16.msra.mxu0 %v901
    %1144 = vmatprep.subr.bf16.mxu0 %v898
    %1145 = vmatpush1.bf16.msra.mxu0 %v897
    %1146 = vmatprep.subr.bf16.mxu0 %v958
    %1147 = vmatpush2.bf16.msra.mxu0 %v957
    %1148 = vmatprep.subr.bf16.mxu0 %v954
    %1149 = vmatpush2.bf16.msra.mxu0 %v953
    %1150 = vmatprep.subr.bf16.mxu0 %v950
    %1151 = vmatpush2.bf16.msra.mxu0 %v949
    %1152 = vmatprep.subr.bf16.mxu0 %v946
    %1153 = vmatpush2.bf16.msra.mxu0 %v945
    %1154 = vmatprep.subr.bf16.mxu0 %v942
    %1155 = vmatpush2.bf16.msra.mxu0 %v941
    %1156 = vmatprep.subr.bf16.mxu0 %v938
    %1157 = vmatpush2.bf16.msra.mxu0 %v937
    %1158 = vmatprep.subr.bf16.mxu0 %v934
    %1159 = vmatpush2.bf16.msra.mxu0 %v933
    %1160 = vmatprep.subr.bf16.mxu0 %v930
    %1161 = vmatpush2.bf16.msra.mxu0 %v929
    %1162 = vmatprep.mubr.bf16.mxu0 %v298
    %1163 = vmatmul.mubr.bf16.gmra.mxu0 %v297
    %v1164 = vpop.f32.mrf.mxu0
    %v1165 = vadd.f32 %v1124, %v1164
    %v1166 = vpop.f32.mrf.mxu0
    %v1167 = vadd.f32 %v1126, %v1166
    %v1168 = vpop.f32.mrf.mxu0
    %v1169 = vpop.f32.mrf.mxu0
    %1170 = vdwg.mxu0
    %1171 = vmatprep.subr.bf16.mxu0 %v864
    %1172 = vmatpush1.bf16.msra.mxu0 %v863
    %1173 = vmatprep.subr.bf16.mxu0 %v860
    %1174 = vmatpush1.bf16.msra.mxu0 %v859
    %1175 = vmatprep.subr.bf16.mxu0 %v856
    %1176 = vmatpush1.bf16.msra.mxu0 %v855
    %1177 = vmatprep.subr.bf16.mxu0 %v852
    %1178 = vmatpush1.bf16.msra.mxu0 %v851
    %1179 = vmatprep.subr.bf16.mxu0 %v848
    %1180 = vmatpush1.bf16.msra.mxu0 %v847
    %1181 = vmatprep.subr.bf16.mxu0 %v844
    %1182 = vmatpush1.bf16.msra.mxu0 %v843
    %1183 = vmatprep.subr.bf16.mxu0 %v840
    %1184 = vmatpush1.bf16.msra.mxu0 %v839
    %1185 = vmatprep.subr.bf16.mxu0 %v836
    %1186 = vmatpush1.bf16.msra.mxu0 %v835
    %1187 = vmatprep.subr.bf16.mxu0 %v896
    %1188 = vmatpush2.bf16.msra.mxu0 %v895
    %1189 = vmatprep.subr.bf16.mxu0 %v892
    %1190 = vmatpush2.bf16.msra.mxu0 %v891
    %1191 = vmatprep.subr.bf16.mxu0 %v888
    %1192 = vmatpush2.bf16.msra.mxu0 %v887
    %1193 = vmatprep.subr.bf16.mxu0 %v884
    %1194 = vmatpush2.bf16.msra.mxu0 %v883
    %1195 = vmatprep.subr.bf16.mxu0 %v880
    %1196 = vmatpush2.bf16.msra.mxu0 %v879
    %1197 = vmatprep.subr.bf16.mxu0 %v876
    %1198 = vmatpush2.bf16.msra.mxu0 %v875
    %1199 = vmatprep.subr.bf16.mxu0 %v872
    %1200 = vmatpush2.bf16.msra.mxu0 %v871
    %1201 = vmatprep.subr.bf16.mxu0 %v868
    %1202 = vmatpush2.bf16.msra.mxu0 %v867
    %1203 = vmatprep.mubr.bf16.mxu0 %v296
    %1204 = vmatmul.mubr.bf16.gmra.mxu0 %v295
    %v1205 = vpop.f32.mrf.mxu0
    %v1206 = vadd.f32 %v440, %v1205
    %v1207 = vpop.f32.mrf.mxu0
    %v1208 = vadd.f32 %v444, %v1207
    %v1209 = vpop.f32.mrf.mxu0
    %v1210 = vpop.f32.mrf.mxu0
    %1211 = vdwg.mxu0
    %1212 = vmatprep.subr.bf16.mxu0 %v928
    %1213 = vmatpush1.bf16.msra.mxu0 %v927
    %1214 = vmatprep.subr.bf16.mxu0 %v924
    %1215 = vmatpush1.bf16.msra.mxu0 %v923
    %1216 = vmatprep.subr.bf16.mxu0 %v920
    %1217 = vmatpush1.bf16.msra.mxu0 %v919
    %1218 = vmatprep.subr.bf16.mxu0 %v916
    %1219 = vmatpush1.bf16.msra.mxu0 %v915
    %1220 = vmatprep.subr.bf16.mxu0 %v912
    %1221 = vmatpush1.bf16.msra.mxu0 %v911
    %1222 = vmatprep.subr.bf16.mxu0 %v908
    %1223 = vmatpush1.bf16.msra.mxu0 %v907
    %1224 = vmatprep.subr.bf16.mxu0 %v904
    %1225 = vmatpush1.bf16.msra.mxu0 %v903
    %1226 = vmatprep.subr.bf16.mxu0 %v900
    %1227 = vmatpush1.bf16.msra.mxu0 %v899
    %1228 = vmatprep.subr.bf16.mxu0 %v960
    %1229 = vmatpush2.bf16.msra.mxu0 %v959
    %1230 = vmatprep.subr.bf16.mxu0 %v956
    %1231 = vmatpush2.bf16.msra.mxu0 %v955
    %1232 = vmatprep.subr.bf16.mxu0 %v952
    %1233 = vmatpush2.bf16.msra.mxu0 %v951
    %1234 = vmatprep.subr.bf16.mxu0 %v948
    %1235 = vmatpush2.bf16.msra.mxu0 %v947
    %1236 = vmatprep.subr.bf16.mxu0 %v944
    %1237 = vmatpush2.bf16.msra.mxu0 %v943
    %1238 = vmatprep.subr.bf16.mxu0 %v940
    %1239 = vmatpush2.bf16.msra.mxu0 %v939
    %1240 = vmatprep.subr.bf16.mxu0 %v936
    %1241 = vmatpush2.bf16.msra.mxu0 %v935
    %1242 = vmatprep.subr.bf16.mxu0 %v932
    %1243 = vmatpush2.bf16.msra.mxu0 %v931
    %1244 = vmatprep.mubr.bf16.mxu0 %v298
    %1245 = vmatmul.mubr.bf16.gmra.mxu0 %v297
    %v1246 = vpop.f32.mrf.mxu0
    %v1247 = vadd.f32 %v1206, %v1246
    %v1248 = vpop.f32.mrf.mxu0
    %v1249 = vadd.f32 %v1208, %v1248
    %v1250 = vpop.f32.mrf.mxu0
    %v1251 = vpop.f32.mrf.mxu0
    %1252 = vdwg.mxu0
    %v1253 = vmax.f32 %v1165, 0.0
    %v1254 = vmax.f32 %v1167, 0.0
    %v1255 = vmax.f32 %v1247, 0.0
    %v1256 = vmax.f32 %v1249, 0.0
    %v1257 = vpack.c.bf16 %v1253, %v1253
    %v1258 = vpack.c.bf16 %v1254, %v1254
    %v1259 = vpack.c.bf16 %v1255, %v1255
    %v1260 = vpack.c.bf16 %v1256, %v1256
    %v1261 = vld [vmem:[#allocation9] sm:$0xff]
    %v1262 = vld [vmem:[#allocation9 + $0x8] sm:$0xff]
    %v1263 = vld [vmem:[#allocation9 + $0x10] sm:$0xff]
    %v1264 = vld [vmem:[#allocation9 + $0x18] sm:$0xff]
    %v1265 = vld [vmem:[#allocation9 + $0x20] sm:$0xff]
    %v1266 = vld [vmem:[#allocation9 + $0x28] sm:$0xff]
    %v1267 = vld [vmem:[#allocation9 + $0x30] sm:$0xff]
    %v1268 = vld [vmem:[#allocation9 + $0x38] sm:$0xff]
    %v1269 = vld [vmem:[#allocation9 + $0x40] sm:$0xff]
    %v1270 = vld [vmem:[#allocation9 + $0x48] sm:$0xff]
    %v1271 = vld [vmem:[#allocation9 + $0x50] sm:$0xff]
    %v1272 = vld [vmem:[#allocation9 + $0x58] sm:$0xff]
    %v1273 = vld [vmem:[#allocation9 + $0x60] sm:$0xff]
    %v1274 = vld [vmem:[#allocation9 + $0x68] sm:$0xff]
    %v1275 = vld [vmem:[#allocation9 + $0x70] sm:$0xff]
    %v1276 = vld [vmem:[#allocation9 + $0x78] sm:$0xff]
    %v1277 = vld [vmem:[#allocation9 + $0x80] sm:$0xff]
    %v1278 = vld [vmem:[#allocation9 + $0x88] sm:$0xff]
    %v1279 = vld [vmem:[#allocation9 + $0x90] sm:$0xff]
    %v1280 = vld [vmem:[#allocation9 + $0x98] sm:$0xff]
    %v1281 = vld [vmem:[#allocation9 + $0xa0] sm:$0xff]
    %v1282 = vld [vmem:[#allocation9 + $0xa8] sm:$0xff]
    %v1283 = vld [vmem:[#allocation9 + $0xb0] sm:$0xff]
    %v1284 = vld [vmem:[#allocation9 + $0xb8] sm:$0xff]
    %v1285 = vld [vmem:[#allocation9 + $0xc0] sm:$0xff]
    %v1286 = vld [vmem:[#allocation9 + $0xc8] sm:$0xff]
    %v1287 = vld [vmem:[#allocation9 + $0xd0] sm:$0xff]
    %v1288 = vld [vmem:[#allocation9 + $0xd8] sm:$0xff]
    %v1289 = vld [vmem:[#allocation9 + $0xe0] sm:$0xff]
    %v1290 = vld [vmem:[#allocation9 + $0xe8] sm:$0xff]
    %v1291 = vld [vmem:[#allocation9 + $0xf0] sm:$0xff]
    %v1292 = vld [vmem:[#allocation9 + $0xf8] sm:$0xff]
    %v1293 = vld [vmem:[#allocation9 + $0x100] sm:$0xff]
    %v1294 = vld [vmem:[#allocation9 + $0x108] sm:$0xff]
    %v1295 = vld [vmem:[#allocation9 + $0x110] sm:$0xff]
    %v1296 = vld [vmem:[#allocation9 + $0x118] sm:$0xff]
    %v1297 = vld [vmem:[#allocation9 + $0x120] sm:$0xff]
    %v1298 = vld [vmem:[#allocation9 + $0x128] sm:$0xff]
    %v1299 = vld [vmem:[#allocation9 + $0x130] sm:$0xff]
    %v1300 = vld [vmem:[#allocation9 + $0x138] sm:$0xff]
    %v1301 = vld [vmem:[#allocation9 + $0x140] sm:$0xff]
    %v1302 = vld [vmem:[#allocation9 + $0x148] sm:$0xff]
    %v1303 = vld [vmem:[#allocation9 + $0x150] sm:$0xff]
    %v1304 = vld [vmem:[#allocation9 + $0x158] sm:$0xff]
    %v1305 = vld [vmem:[#allocation9 + $0x160] sm:$0xff]
    %v1306 = vld [vmem:[#allocation9 + $0x168] sm:$0xff]
    %v1307 = vld [vmem:[#allocation9 + $0x170] sm:$0xff]
    %v1308 = vld [vmem:[#allocation9 + $0x178] sm:$0xff]
    %v1309 = vld [vmem:[#allocation9 + $0x180] sm:$0xff]
    %v1310 = vld [vmem:[#allocation9 + $0x188] sm:$0xff]
    %v1311 = vld [vmem:[#allocation9 + $0x190] sm:$0xff]
    %v1312 = vld [vmem:[#allocation9 + $0x198] sm:$0xff]
    %v1313 = vld [vmem:[#allocation9 + $0x1a0] sm:$0xff]
    %v1314 = vld [vmem:[#allocation9 + $0x1a8] sm:$0xff]
    %v1315 = vld [vmem:[#allocation9 + $0x1b0] sm:$0xff]
    %v1316 = vld [vmem:[#allocation9 + $0x1b8] sm:$0xff]
    %v1317 = vld [vmem:[#allocation9 + $0x1c0] sm:$0xff]
    %v1318 = vld [vmem:[#allocation9 + $0x1c8] sm:$0xff]
    %v1319 = vld [vmem:[#allocation9 + $0x1d0] sm:$0xff]
    %v1320 = vld [vmem:[#allocation9 + $0x1d8] sm:$0xff]
    %v1321 = vld [vmem:[#allocation9 + $0x1e0] sm:$0xff]
    %v1322 = vld [vmem:[#allocation9 + $0x1e8] sm:$0xff]
    %v1323 = vld [vmem:[#allocation9 + $0x1f0] sm:$0xff]
    %v1324 = vld [vmem:[#allocation9 + $0x1f8] sm:$0xff]
    %v1325 = vld [vmem:[#allocation9 + $0x200] sm:$0xff]
    %v1326 = vld [vmem:[#allocation9 + $0x208] sm:$0xff]
    %v1327 = vld [vmem:[#allocation9 + $0x210] sm:$0xff]
    %v1328 = vld [vmem:[#allocation9 + $0x218] sm:$0xff]
    %v1329 = vld [vmem:[#allocation9 + $0x220] sm:$0xff]
    %v1330 = vld [vmem:[#allocation9 + $0x228] sm:$0xff]
    %v1331 = vld [vmem:[#allocation9 + $0x230] sm:$0xff]
    %v1332 = vld [vmem:[#allocation9 + $0x238] sm:$0xff]
    %v1333 = vld [vmem:[#allocation9 + $0x240] sm:$0xff]
    %v1334 = vld [vmem:[#allocation9 + $0x248] sm:$0xff]
    %v1335 = vld [vmem:[#allocation9 + $0x250] sm:$0xff]
    %v1336 = vld [vmem:[#allocation9 + $0x258] sm:$0xff]
    %v1337 = vld [vmem:[#allocation9 + $0x260] sm:$0xff]
    %v1338 = vld [vmem:[#allocation9 + $0x268] sm:$0xff]
    %v1339 = vld [vmem:[#allocation9 + $0x270] sm:$0xff]
    %v1340 = vld [vmem:[#allocation9 + $0x278] sm:$0xff]
    %v1341 = vld [vmem:[#allocation9 + $0x280] sm:$0xff]
    %v1342 = vld [vmem:[#allocation9 + $0x288] sm:$0xff]
    %v1343 = vld [vmem:[#allocation9 + $0x290] sm:$0xff]
    %v1344 = vld [vmem:[#allocation9 + $0x298] sm:$0xff]
    %v1345 = vld [vmem:[#allocation9 + $0x2a0] sm:$0xff]
    %v1346 = vld [vmem:[#allocation9 + $0x2a8] sm:$0xff]
    %v1347 = vld [vmem:[#allocation9 + $0x2b0] sm:$0xff]
    %v1348 = vld [vmem:[#allocation9 + $0x2b8] sm:$0xff]
    %v1349 = vld [vmem:[#allocation9 + $0x2c0] sm:$0xff]
    %v1350 = vld [vmem:[#allocation9 + $0x2c8] sm:$0xff]
    %v1351 = vld [vmem:[#allocation9 + $0x2d0] sm:$0xff]
    %v1352 = vld [vmem:[#allocation9 + $0x2d8] sm:$0xff]
    %v1353 = vld [vmem:[#allocation9 + $0x2e0] sm:$0xff]
    %v1354 = vld [vmem:[#allocation9 + $0x2e8] sm:$0xff]
    %v1355 = vld [vmem:[#allocation9 + $0x2f0] sm:$0xff]
    %v1356 = vld [vmem:[#allocation9 + $0x2f8] sm:$0xff]
    %v1357 = vld [vmem:[#allocation9 + $0x300] sm:$0xff]
    %v1358 = vld [vmem:[#allocation9 + $0x308] sm:$0xff]
    %v1359 = vld [vmem:[#allocation9 + $0x310] sm:$0xff]
    %v1360 = vld [vmem:[#allocation9 + $0x318] sm:$0xff]
    %v1361 = vld [vmem:[#allocation9 + $0x320] sm:$0xff]
    %v1362 = vld [vmem:[#allocation9 + $0x328] sm:$0xff]
    %v1363 = vld [vmem:[#allocation9 + $0x330] sm:$0xff]
    %v1364 = vld [vmem:[#allocation9 + $0x338] sm:$0xff]
    %v1365 = vld [vmem:[#allocation9 + $0x340] sm:$0xff]
    %v1366 = vld [vmem:[#allocation9 + $0x348] sm:$0xff]
    %v1367 = vld [vmem:[#allocation9 + $0x350] sm:$0xff]
    %v1368 = vld [vmem:[#allocation9 + $0x358] sm:$0xff]
    %v1369 = vld [vmem:[#allocation9 + $0x360] sm:$0xff]
    %v1370 = vld [vmem:[#allocation9 + $0x368] sm:$0xff]
    %v1371 = vld [vmem:[#allocation9 + $0x370] sm:$0xff]
    %v1372 = vld [vmem:[#allocation9 + $0x378] sm:$0xff]
    %v1373 = vld [vmem:[#allocation9 + $0x380] sm:$0xff]
    %v1374 = vld [vmem:[#allocation9 + $0x388] sm:$0xff]
    %v1375 = vld [vmem:[#allocation9 + $0x390] sm:$0xff]
    %v1376 = vld [vmem:[#allocation9 + $0x398] sm:$0xff]
    %v1377 = vld [vmem:[#allocation9 + $0x3a0] sm:$0xff]
    %v1378 = vld [vmem:[#allocation9 + $0x3a8] sm:$0xff]
    %v1379 = vld [vmem:[#allocation9 + $0x3b0] sm:$0xff]
    %v1380 = vld [vmem:[#allocation9 + $0x3b8] sm:$0xff]
    %v1381 = vld [vmem:[#allocation9 + $0x3c0] sm:$0xff]
    %v1382 = vld [vmem:[#allocation9 + $0x3c8] sm:$0xff]
    %v1383 = vld [vmem:[#allocation9 + $0x3d0] sm:$0xff]
    %v1384 = vld [vmem:[#allocation9 + $0x3d8] sm:$0xff]
    %v1385 = vld [vmem:[#allocation9 + $0x3e0] sm:$0xff]
    %v1386 = vld [vmem:[#allocation9 + $0x3e8] sm:$0xff]
    %v1387 = vld [vmem:[#allocation9 + $0x3f0] sm:$0xff]
    %v1388 = vld [vmem:[#allocation9 + $0x3f8] sm:$0xff]
    %v1389 = vld [vmem:[#allocation9 + $0x400] sm:$0xff]
    %v1390 = vld [vmem:[#allocation9 + $0x408] sm:$0xff]
    %v1391 = vld [vmem:[#allocation9 + $0x410] sm:$0xff]
    %v1392 = vld [vmem:[#allocation9 + $0x418] sm:$0xff]
    %v1393 = vld [vmem:[#allocation9 + $0x420] sm:$0xff]
    %v1394 = vld [vmem:[#allocation9 + $0x428] sm:$0xff]
    %v1395 = vld [vmem:[#allocation9 + $0x430] sm:$0xff]
    %v1396 = vld [vmem:[#allocation9 + $0x438] sm:$0xff]
    %v1397 = vld [vmem:[#allocation9 + $0x440] sm:$0xff]
    %v1398 = vld [vmem:[#allocation9 + $0x448] sm:$0xff]
    %v1399 = vld [vmem:[#allocation9 + $0x450] sm:$0xff]
    %v1400 = vld [vmem:[#allocation9 + $0x458] sm:$0xff]
    %v1401 = vld [vmem:[#allocation9 + $0x460] sm:$0xff]
    %v1402 = vld [vmem:[#allocation9 + $0x468] sm:$0xff]
    %v1403 = vld [vmem:[#allocation9 + $0x470] sm:$0xff]
    %v1404 = vld [vmem:[#allocation9 + $0x478] sm:$0xff]
    %v1405 = vld [vmem:[#allocation9 + $0x480] sm:$0xff]
    %v1406 = vld [vmem:[#allocation9 + $0x488] sm:$0xff]
    %v1407 = vld [vmem:[#allocation9 + $0x490] sm:$0xff]
    %v1408 = vld [vmem:[#allocation9 + $0x498] sm:$0xff]
    %v1409 = vld [vmem:[#allocation9 + $0x4a0] sm:$0xff]
    %v1410 = vld [vmem:[#allocation9 + $0x4a8] sm:$0xff]
    %v1411 = vld [vmem:[#allocation9 + $0x4b0] sm:$0xff]
    %v1412 = vld [vmem:[#allocation9 + $0x4b8] sm:$0xff]
    %v1413 = vld [vmem:[#allocation9 + $0x4c0] sm:$0xff]
    %v1414 = vld [vmem:[#allocation9 + $0x4c8] sm:$0xff]
    %v1415 = vld [vmem:[#allocation9 + $0x4d0] sm:$0xff]
    %v1416 = vld [vmem:[#allocation9 + $0x4d8] sm:$0xff]
    %v1417 = vld [vmem:[#allocation9 + $0x4e0] sm:$0xff]
    %v1418 = vld [vmem:[#allocation9 + $0x4e8] sm:$0xff]
    %v1419 = vld [vmem:[#allocation9 + $0x4f0] sm:$0xff]
    %v1420 = vld [vmem:[#allocation9 + $0x4f8] sm:$0xff]
    %v1421 = vld [vmem:[#allocation9 + $0x500] sm:$0xff]
    %v1422 = vld [vmem:[#allocation9 + $0x508] sm:$0xff]
    %v1423 = vld [vmem:[#allocation9 + $0x510] sm:$0xff]
    %v1424 = vld [vmem:[#allocation9 + $0x518] sm:$0xff]
    %v1425 = vld [vmem:[#allocation9 + $0x520] sm:$0xff]
    %v1426 = vld [vmem:[#allocation9 + $0x528] sm:$0xff]
    %v1427 = vld [vmem:[#allocation9 + $0x530] sm:$0xff]
    %v1428 = vld [vmem:[#allocation9 + $0x538] sm:$0xff]
    %v1429 = vld [vmem:[#allocation9 + $0x540] sm:$0xff]
    %v1430 = vld [vmem:[#allocation9 + $0x548] sm:$0xff]
    %v1431 = vld [vmem:[#allocation9 + $0x550] sm:$0xff]
    %v1432 = vld [vmem:[#allocation9 + $0x558] sm:$0xff]
    %v1433 = vld [vmem:[#allocation9 + $0x560] sm:$0xff]
    %v1434 = vld [vmem:[#allocation9 + $0x568] sm:$0xff]
    %v1435 = vld [vmem:[#allocation9 + $0x570] sm:$0xff]
    %v1436 = vld [vmem:[#allocation9 + $0x578] sm:$0xff]
    %v1437 = vld [vmem:[#allocation9 + $0x580] sm:$0xff]
    %v1438 = vld [vmem:[#allocation9 + $0x588] sm:$0xff]
    %v1439 = vld [vmem:[#allocation9 + $0x590] sm:$0xff]
    %v1440 = vld [vmem:[#allocation9 + $0x598] sm:$0xff]
    %v1441 = vld [vmem:[#allocation9 + $0x5a0] sm:$0xff]
    %v1442 = vld [vmem:[#allocation9 + $0x5a8] sm:$0xff]
    %v1443 = vld [vmem:[#allocation9 + $0x5b0] sm:$0xff]
    %v1444 = vld [vmem:[#allocation9 + $0x5b8] sm:$0xff]
    %v1445 = vld [vmem:[#allocation9 + $0x5c0] sm:$0xff]
    %v1446 = vld [vmem:[#allocation9 + $0x5c8] sm:$0xff]
    %v1447 = vld [vmem:[#allocation9 + $0x5d0] sm:$0xff]
    %v1448 = vld [vmem:[#allocation9 + $0x5d8] sm:$0xff]
    %v1449 = vld [vmem:[#allocation9 + $0x5e0] sm:$0xff]
    %v1450 = vld [vmem:[#allocation9 + $0x5e8] sm:$0xff]
    %v1451 = vld [vmem:[#allocation9 + $0x5f0] sm:$0xff]
    %v1452 = vld [vmem:[#allocation9 + $0x5f8] sm:$0xff]
    %v1453 = vld [vmem:[#allocation9 + $0x600] sm:$0xff]
    %v1454 = vld [vmem:[#allocation9 + $0x608] sm:$0xff]
    %v1455 = vld [vmem:[#allocation9 + $0x610] sm:$0xff]
    %v1456 = vld [vmem:[#allocation9 + $0x618] sm:$0xff]
    %v1457 = vld [vmem:[#allocation9 + $0x620] sm:$0xff]
    %v1458 = vld [vmem:[#allocation9 + $0x628] sm:$0xff]
    %v1459 = vld [vmem:[#allocation9 + $0x630] sm:$0xff]
    %v1460 = vld [vmem:[#allocation9 + $0x638] sm:$0xff]
    %v1461 = vld [vmem:[#allocation9 + $0x640] sm:$0xff]
    %v1462 = vld [vmem:[#allocation9 + $0x648] sm:$0xff]
    %v1463 = vld [vmem:[#allocation9 + $0x650] sm:$0xff]
    %v1464 = vld [vmem:[#allocation9 + $0x658] sm:$0xff]
    %v1465 = vld [vmem:[#allocation9 + $0x660] sm:$0xff]
    %v1466 = vld [vmem:[#allocation9 + $0x668] sm:$0xff]
    %v1467 = vld [vmem:[#allocation9 + $0x670] sm:$0xff]
    %v1468 = vld [vmem:[#allocation9 + $0x678] sm:$0xff]
    %v1469 = vld [vmem:[#allocation9 + $0x680] sm:$0xff]
    %v1470 = vld [vmem:[#allocation9 + $0x688] sm:$0xff]
    %v1471 = vld [vmem:[#allocation9 + $0x690] sm:$0xff]
    %v1472 = vld [vmem:[#allocation9 + $0x698] sm:$0xff]
    %v1473 = vld [vmem:[#allocation9 + $0x6a0] sm:$0xff]
    %v1474 = vld [vmem:[#allocation9 + $0x6a8] sm:$0xff]
    %v1475 = vld [vmem:[#allocation9 + $0x6b0] sm:$0xff]
    %v1476 = vld [vmem:[#allocation9 + $0x6b8] sm:$0xff]
    %v1477 = vld [vmem:[#allocation9 + $0x6c0] sm:$0xff]
    %v1478 = vld [vmem:[#allocation9 + $0x6c8] sm:$0xff]
    %v1479 = vld [vmem:[#allocation9 + $0x6d0] sm:$0xff]
    %v1480 = vld [vmem:[#allocation9 + $0x6d8] sm:$0xff]
    %v1481 = vld [vmem:[#allocation9 + $0x6e0] sm:$0xff]
    %v1482 = vld [vmem:[#allocation9 + $0x6e8] sm:$0xff]
    %v1483 = vld [vmem:[#allocation9 + $0x6f0] sm:$0xff]
    %v1484 = vld [vmem:[#allocation9 + $0x6f8] sm:$0xff]
    %v1485 = vld [vmem:[#allocation9 + $0x700] sm:$0xff]
    %v1486 = vld [vmem:[#allocation9 + $0x708] sm:$0xff]
    %v1487 = vld [vmem:[#allocation9 + $0x710] sm:$0xff]
    %v1488 = vld [vmem:[#allocation9 + $0x718] sm:$0xff]
    %v1489 = vld [vmem:[#allocation9 + $0x720] sm:$0xff]
    %v1490 = vld [vmem:[#allocation9 + $0x728] sm:$0xff]
    %v1491 = vld [vmem:[#allocation9 + $0x730] sm:$0xff]
    %v1492 = vld [vmem:[#allocation9 + $0x738] sm:$0xff]
    %v1493 = vld [vmem:[#allocation9 + $0x740] sm:$0xff]
    %v1494 = vld [vmem:[#allocation9 + $0x748] sm:$0xff]
    %v1495 = vld [vmem:[#allocation9 + $0x750] sm:$0xff]
    %v1496 = vld [vmem:[#allocation9 + $0x758] sm:$0xff]
    %v1497 = vld [vmem:[#allocation9 + $0x760] sm:$0xff]
    %v1498 = vld [vmem:[#allocation9 + $0x768] sm:$0xff]
    %v1499 = vld [vmem:[#allocation9 + $0x770] sm:$0xff]
    %v1500 = vld [vmem:[#allocation9 + $0x778] sm:$0xff]
    %v1501 = vld [vmem:[#allocation9 + $0x780] sm:$0xff]
    %v1502 = vld [vmem:[#allocation9 + $0x788] sm:$0xff]
    %v1503 = vld [vmem:[#allocation9 + $0x790] sm:$0xff]
    %v1504 = vld [vmem:[#allocation9 + $0x798] sm:$0xff]
    %v1505 = vld [vmem:[#allocation9 + $0x7a0] sm:$0xff]
    %v1506 = vld [vmem:[#allocation9 + $0x7a8] sm:$0xff]
    %v1507 = vld [vmem:[#allocation9 + $0x7b0] sm:$0xff]
    %v1508 = vld [vmem:[#allocation9 + $0x7b8] sm:$0xff]
    %v1509 = vld [vmem:[#allocation9 + $0x7c0] sm:$0xff]
    %v1510 = vld [vmem:[#allocation9 + $0x7c8] sm:$0xff]
    %v1511 = vld [vmem:[#allocation9 + $0x7d0] sm:$0xff]
    %v1512 = vld [vmem:[#allocation9 + $0x7d8] sm:$0xff]
    %v1513 = vld [vmem:[#allocation9 + $0x7e0] sm:$0xff]
    %v1514 = vld [vmem:[#allocation9 + $0x7e8] sm:$0xff]
    %v1515 = vld [vmem:[#allocation9 + $0x7f0] sm:$0xff]
    %v1516 = vld [vmem:[#allocation9 + $0x7f8] sm:$0xff]
    %v1517 = vld [vmem:[#allocation9 + $0x800] sm:$0xff]
    %v1518 = vld [vmem:[#allocation9 + $0x808] sm:$0xff]
    %v1519 = vld [vmem:[#allocation9 + $0x810] sm:$0xff]
    %v1520 = vld [vmem:[#allocation9 + $0x818] sm:$0xff]
    %v1521 = vld [vmem:[#allocation9 + $0x820] sm:$0xff]
    %v1522 = vld [vmem:[#allocation9 + $0x828] sm:$0xff]
    %v1523 = vld [vmem:[#allocation9 + $0x830] sm:$0xff]
    %v1524 = vld [vmem:[#allocation9 + $0x838] sm:$0xff]
    %v1525 = vld [vmem:[#allocation9 + $0x840] sm:$0xff]
    %v1526 = vld [vmem:[#allocation9 + $0x848] sm:$0xff]
    %v1527 = vld [vmem:[#allocation9 + $0x850] sm:$0xff]
    %v1528 = vld [vmem:[#allocation9 + $0x858] sm:$0xff]
    %v1529 = vld [vmem:[#allocation9 + $0x860] sm:$0xff]
    %v1530 = vld [vmem:[#allocation9 + $0x868] sm:$0xff]
    %v1531 = vld [vmem:[#allocation9 + $0x870] sm:$0xff]
    %v1532 = vld [vmem:[#allocation9 + $0x878] sm:$0xff]
    %v1533 = vld [vmem:[#allocation9 + $0x880] sm:$0xff]
    %v1534 = vld [vmem:[#allocation9 + $0x888] sm:$0xff]
    %v1535 = vld [vmem:[#allocation9 + $0x890] sm:$0xff]
    %v1536 = vld [vmem:[#allocation9 + $0x898] sm:$0xff]
    %v1537 = vld [vmem:[#allocation9 + $0x8a0] sm:$0xff]
    %v1538 = vld [vmem:[#allocation9 + $0x8a8] sm:$0xff]
    %v1539 = vld [vmem:[#allocation9 + $0x8b0] sm:$0xff]
    %v1540 = vld [vmem:[#allocation9 + $0x8b8] sm:$0xff]
    %v1541 = vld [vmem:[#allocation9 + $0x8c0] sm:$0xff]
    %v1542 = vld [vmem:[#allocation9 + $0x8c8] sm:$0xff]
    %v1543 = vld [vmem:[#allocation9 + $0x8d0] sm:$0xff]
    %v1544 = vld [vmem:[#allocation9 + $0x8d8] sm:$0xff]
    %v1545 = vld [vmem:[#allocation9 + $0x8e0] sm:$0xff]
    %v1546 = vld [vmem:[#allocation9 + $0x8e8] sm:$0xff]
    %v1547 = vld [vmem:[#allocation9 + $0x8f0] sm:$0xff]
    %v1548 = vld [vmem:[#allocation9 + $0x8f8] sm:$0xff]
    %v1549 = vld [vmem:[#allocation9 + $0x900] sm:$0xff]
    %v1550 = vld [vmem:[#allocation9 + $0x908] sm:$0xff]
    %v1551 = vld [vmem:[#allocation9 + $0x910] sm:$0xff]
    %v1552 = vld [vmem:[#allocation9 + $0x918] sm:$0xff]
    %v1553 = vld [vmem:[#allocation9 + $0x920] sm:$0xff]
    %v1554 = vld [vmem:[#allocation9 + $0x928] sm:$0xff]
    %v1555 = vld [vmem:[#allocation9 + $0x930] sm:$0xff]
    %v1556 = vld [vmem:[#allocation9 + $0x938] sm:$0xff]
    %v1557 = vld [vmem:[#allocation9 + $0x940] sm:$0xff]
    %v1558 = vld [vmem:[#allocation9 + $0x948] sm:$0xff]
    %v1559 = vld [vmem:[#allocation9 + $0x950] sm:$0xff]
    %v1560 = vld [vmem:[#allocation9 + $0x958] sm:$0xff]
    %v1561 = vld [vmem:[#allocation9 + $0x960] sm:$0xff]
    %v1562 = vld [vmem:[#allocation9 + $0x968] sm:$0xff]
    %v1563 = vld [vmem:[#allocation9 + $0x970] sm:$0xff]
    %v1564 = vld [vmem:[#allocation9 + $0x978] sm:$0xff]
    %v1565 = vld [vmem:[#allocation9 + $0x980] sm:$0xff]
    %v1566 = vld [vmem:[#allocation9 + $0x988] sm:$0xff]
    %v1567 = vld [vmem:[#allocation9 + $0x990] sm:$0xff]
    %v1568 = vld [vmem:[#allocation9 + $0x998] sm:$0xff]
    %v1569 = vld [vmem:[#allocation9 + $0x9a0] sm:$0xff]
    %v1570 = vld [vmem:[#allocation9 + $0x9a8] sm:$0xff]
    %v1571 = vld [vmem:[#allocation9 + $0x9b0] sm:$0xff]
    %v1572 = vld [vmem:[#allocation9 + $0x9b8] sm:$0xff]
    %v1573 = vld [vmem:[#allocation9 + $0x9c0] sm:$0xff]
    %v1574 = vld [vmem:[#allocation9 + $0x9c8] sm:$0xff]
    %v1575 = vld [vmem:[#allocation9 + $0x9d0] sm:$0xff]
    %v1576 = vld [vmem:[#allocation9 + $0x9d8] sm:$0xff]
    %v1577 = vld [vmem:[#allocation9 + $0x9e0] sm:$0xff]
    %v1578 = vld [vmem:[#allocation9 + $0x9e8] sm:$0xff]
    %v1579 = vld [vmem:[#allocation9 + $0x9f0] sm:$0xff]
    %v1580 = vld [vmem:[#allocation9 + $0x9f8] sm:$0xff]
    %v1581 = vld [vmem:[#allocation9 + $0xa00] sm:$0xff]
    %v1582 = vld [vmem:[#allocation9 + $0xa08] sm:$0xff]
    %v1583 = vld [vmem:[#allocation9 + $0xa10] sm:$0xff]
    %v1584 = vld [vmem:[#allocation9 + $0xa18] sm:$0xff]
    %v1585 = vld [vmem:[#allocation9 + $0xa20] sm:$0xff]
    %v1586 = vld [vmem:[#allocation9 + $0xa28] sm:$0xff]
    %v1587 = vld [vmem:[#allocation9 + $0xa30] sm:$0xff]
    %v1588 = vld [vmem:[#allocation9 + $0xa38] sm:$0xff]
    %v1589 = vld [vmem:[#allocation9 + $0xa40] sm:$0xff]
    %v1590 = vld [vmem:[#allocation9 + $0xa48] sm:$0xff]
    %v1591 = vld [vmem:[#allocation9 + $0xa50] sm:$0xff]
    %v1592 = vld [vmem:[#allocation9 + $0xa58] sm:$0xff]
    %v1593 = vld [vmem:[#allocation9 + $0xa60] sm:$0xff]
    %v1594 = vld [vmem:[#allocation9 + $0xa68] sm:$0xff]
    %v1595 = vld [vmem:[#allocation9 + $0xa70] sm:$0xff]
    %v1596 = vld [vmem:[#allocation9 + $0xa78] sm:$0xff]
    %v1597 = vld [vmem:[#allocation9 + $0xa80] sm:$0xff]
    %v1598 = vld [vmem:[#allocation9 + $0xa88] sm:$0xff]
    %v1599 = vld [vmem:[#allocation9 + $0xa90] sm:$0xff]
    %v1600 = vld [vmem:[#allocation9 + $0xa98] sm:$0xff]
    %v1601 = vld [vmem:[#allocation9 + $0xaa0] sm:$0xff]
    %v1602 = vld [vmem:[#allocation9 + $0xaa8] sm:$0xff]
    %v1603 = vld [vmem:[#allocation9 + $0xab0] sm:$0xff]
    %v1604 = vld [vmem:[#allocation9 + $0xab8] sm:$0xff]
    %v1605 = vld [vmem:[#allocation9 + $0xac0] sm:$0xff]
    %v1606 = vld [vmem:[#allocation9 + $0xac8] sm:$0xff]
    %v1607 = vld [vmem:[#allocation9 + $0xad0] sm:$0xff]
    %v1608 = vld [vmem:[#allocation9 + $0xad8] sm:$0xff]
    %v1609 = vld [vmem:[#allocation9 + $0xae0] sm:$0xff]
    %v1610 = vld [vmem:[#allocation9 + $0xae8] sm:$0xff]
    %v1611 = vld [vmem:[#allocation9 + $0xaf0] sm:$0xff]
    %v1612 = vld [vmem:[#allocation9 + $0xaf8] sm:$0xff]
    %v1613 = vld [vmem:[#allocation9 + $0xb00] sm:$0xff]
    %v1614 = vld [vmem:[#allocation9 + $0xb08] sm:$0xff]
    %v1615 = vld [vmem:[#allocation9 + $0xb10] sm:$0xff]
    %v1616 = vld [vmem:[#allocation9 + $0xb18] sm:$0xff]
    %v1617 = vld [vmem:[#allocation9 + $0xb20] sm:$0xff]
    %v1618 = vld [vmem:[#allocation9 + $0xb28] sm:$0xff]
    %v1619 = vld [vmem:[#allocation9 + $0xb30] sm:$0xff]
    %v1620 = vld [vmem:[#allocation9 + $0xb38] sm:$0xff]
    %v1621 = vld [vmem:[#allocation9 + $0xb40] sm:$0xff]
    %v1622 = vld [vmem:[#allocation9 + $0xb48] sm:$0xff]
    %v1623 = vld [vmem:[#allocation9 + $0xb50] sm:$0xff]
    %v1624 = vld [vmem:[#allocation9 + $0xb58] sm:$0xff]
    %v1625 = vld [vmem:[#allocation9 + $0xb60] sm:$0xff]
    %v1626 = vld [vmem:[#allocation9 + $0xb68] sm:$0xff]
    %v1627 = vld [vmem:[#allocation9 + $0xb70] sm:$0xff]
    %v1628 = vld [vmem:[#allocation9 + $0xb78] sm:$0xff]
    %v1629 = vld [vmem:[#allocation9 + $0xb80] sm:$0xff]
    %v1630 = vld [vmem:[#allocation9 + $0xb88] sm:$0xff]
    %v1631 = vld [vmem:[#allocation9 + $0xb90] sm:$0xff]
    %v1632 = vld [vmem:[#allocation9 + $0xb98] sm:$0xff]
    %v1633 = vld [vmem:[#allocation9 + $0xba0] sm:$0xff]
    %v1634 = vld [vmem:[#allocation9 + $0xba8] sm:$0xff]
    %v1635 = vld [vmem:[#allocation9 + $0xbb0] sm:$0xff]
    %v1636 = vld [vmem:[#allocation9 + $0xbb8] sm:$0xff]
    %v1637 = vld [vmem:[#allocation9 + $0xbc0] sm:$0xff]
    %v1638 = vld [vmem:[#allocation9 + $0xbc8] sm:$0xff]
    %v1639 = vld [vmem:[#allocation9 + $0xbd0] sm:$0xff]
    %v1640 = vld [vmem:[#allocation9 + $0xbd8] sm:$0xff]
    %v1641 = vld [vmem:[#allocation9 + $0xbe0] sm:$0xff]
    %v1642 = vld [vmem:[#allocation9 + $0xbe8] sm:$0xff]
    %v1643 = vld [vmem:[#allocation9 + $0xbf0] sm:$0xff]
    %v1644 = vld [vmem:[#allocation9 + $0xbf8] sm:$0xff]
    %v1645 = vld [vmem:[#allocation9 + $0xc00] sm:$0xff]
    %v1646 = vld [vmem:[#allocation9 + $0xc08] sm:$0xff]
    %v1647 = vld [vmem:[#allocation9 + $0xc10] sm:$0xff]
    %v1648 = vld [vmem:[#allocation9 + $0xc18] sm:$0xff]
    %v1649 = vld [vmem:[#allocation9 + $0xc20] sm:$0xff]
    %v1650 = vld [vmem:[#allocation9 + $0xc28] sm:$0xff]
    %v1651 = vld [vmem:[#allocation9 + $0xc30] sm:$0xff]
    %v1652 = vld [vmem:[#allocation9 + $0xc38] sm:$0xff]
    %v1653 = vld [vmem:[#allocation9 + $0xc40] sm:$0xff]
    %v1654 = vld [vmem:[#allocation9 + $0xc48] sm:$0xff]
    %v1655 = vld [vmem:[#allocation9 + $0xc50] sm:$0xff]
    %v1656 = vld [vmem:[#allocation9 + $0xc58] sm:$0xff]
    %v1657 = vld [vmem:[#allocation9 + $0xc60] sm:$0xff]
    %v1658 = vld [vmem:[#allocation9 + $0xc68] sm:$0xff]
    %v1659 = vld [vmem:[#allocation9 + $0xc70] sm:$0xff]
    %v1660 = vld [vmem:[#allocation9 + $0xc78] sm:$0xff]
    %v1661 = vld [vmem:[#allocation9 + $0xc80] sm:$0xff]
    %v1662 = vld [vmem:[#allocation9 + $0xc88] sm:$0xff]
    %v1663 = vld [vmem:[#allocation9 + $0xc90] sm:$0xff]
    %v1664 = vld [vmem:[#allocation9 + $0xc98] sm:$0xff]
    %v1665 = vld [vmem:[#allocation9 + $0xca0] sm:$0xff]
    %v1666 = vld [vmem:[#allocation9 + $0xca8] sm:$0xff]
    %v1667 = vld [vmem:[#allocation9 + $0xcb0] sm:$0xff]
    %v1668 = vld [vmem:[#allocation9 + $0xcb8] sm:$0xff]
    %v1669 = vld [vmem:[#allocation9 + $0xcc0] sm:$0xff]
    %v1670 = vld [vmem:[#allocation9 + $0xcc8] sm:$0xff]
    %v1671 = vld [vmem:[#allocation9 + $0xcd0] sm:$0xff]
    %v1672 = vld [vmem:[#allocation9 + $0xcd8] sm:$0xff]
    %v1673 = vld [vmem:[#allocation9 + $0xce0] sm:$0xff]
    %v1674 = vld [vmem:[#allocation9 + $0xce8] sm:$0xff]
    %v1675 = vld [vmem:[#allocation9 + $0xcf0] sm:$0xff]
    %v1676 = vld [vmem:[#allocation9 + $0xcf8] sm:$0xff]
    %v1677 = vld [vmem:[#allocation9 + $0xd00] sm:$0xff]
    %v1678 = vld [vmem:[#allocation9 + $0xd08] sm:$0xff]
    %v1679 = vld [vmem:[#allocation9 + $0xd10] sm:$0xff]
    %v1680 = vld [vmem:[#allocation9 + $0xd18] sm:$0xff]
    %v1681 = vld [vmem:[#allocation9 + $0xd20] sm:$0xff]
    %v1682 = vld [vmem:[#allocation9 + $0xd28] sm:$0xff]
    %v1683 = vld [vmem:[#allocation9 + $0xd30] sm:$0xff]
    %v1684 = vld [vmem:[#allocation9 + $0xd38] sm:$0xff]
    %v1685 = vld [vmem:[#allocation9 + $0xd40] sm:$0xff]
    %v1686 = vld [vmem:[#allocation9 + $0xd48] sm:$0xff]
    %v1687 = vld [vmem:[#allocation9 + $0xd50] sm:$0xff]
    %v1688 = vld [vmem:[#allocation9 + $0xd58] sm:$0xff]
    %v1689 = vld [vmem:[#allocation9 + $0xd60] sm:$0xff]
    %v1690 = vld [vmem:[#allocation9 + $0xd68] sm:$0xff]
    %v1691 = vld [vmem:[#allocation9 + $0xd70] sm:$0xff]
    %v1692 = vld [vmem:[#allocation9 + $0xd78] sm:$0xff]
    %v1693 = vld [vmem:[#allocation9 + $0xd80] sm:$0xff]
    %v1694 = vld [vmem:[#allocation9 + $0xd88] sm:$0xff]
    %v1695 = vld [vmem:[#allocation9 + $0xd90] sm:$0xff]
    %v1696 = vld [vmem:[#allocation9 + $0xd98] sm:$0xff]
    %v1697 = vld [vmem:[#allocation9 + $0xda0] sm:$0xff]
    %v1698 = vld [vmem:[#allocation9 + $0xda8] sm:$0xff]
    %v1699 = vld [vmem:[#allocation9 + $0xdb0] sm:$0xff]
    %v1700 = vld [vmem:[#allocation9 + $0xdb8] sm:$0xff]
    %v1701 = vld [vmem:[#allocation9 + $0xdc0] sm:$0xff]
    %v1702 = vld [vmem:[#allocation9 + $0xdc8] sm:$0xff]
    %v1703 = vld [vmem:[#allocation9 + $0xdd0] sm:$0xff]
    %v1704 = vld [vmem:[#allocation9 + $0xdd8] sm:$0xff]
    %v1705 = vld [vmem:[#allocation9 + $0xde0] sm:$0xff]
    %v1706 = vld [vmem:[#allocation9 + $0xde8] sm:$0xff]
    %v1707 = vld [vmem:[#allocation9 + $0xdf0] sm:$0xff]
    %v1708 = vld [vmem:[#allocation9 + $0xdf8] sm:$0xff]
    %v1709 = vld [vmem:[#allocation9 + $0xe00] sm:$0xff]
    %v1710 = vld [vmem:[#allocation9 + $0xe08] sm:$0xff]
    %v1711 = vld [vmem:[#allocation9 + $0xe10] sm:$0xff]
    %v1712 = vld [vmem:[#allocation9 + $0xe18] sm:$0xff]
    %v1713 = vld [vmem:[#allocation9 + $0xe20] sm:$0xff]
    %v1714 = vld [vmem:[#allocation9 + $0xe28] sm:$0xff]
    %v1715 = vld [vmem:[#allocation9 + $0xe30] sm:$0xff]
    %v1716 = vld [vmem:[#allocation9 + $0xe38] sm:$0xff]
    %v1717 = vld [vmem:[#allocation9 + $0xe40] sm:$0xff]
    %v1718 = vld [vmem:[#allocation9 + $0xe48] sm:$0xff]
    %v1719 = vld [vmem:[#allocation9 + $0xe50] sm:$0xff]
    %v1720 = vld [vmem:[#allocation9 + $0xe58] sm:$0xff]
    %v1721 = vld [vmem:[#allocation9 + $0xe60] sm:$0xff]
    %v1722 = vld [vmem:[#allocation9 + $0xe68] sm:$0xff]
    %v1723 = vld [vmem:[#allocation9 + $0xe70] sm:$0xff]
    %v1724 = vld [vmem:[#allocation9 + $0xe78] sm:$0xff]
    %v1725 = vld [vmem:[#allocation9 + $0xe80] sm:$0xff]
    %v1726 = vld [vmem:[#allocation9 + $0xe88] sm:$0xff]
    %v1727 = vld [vmem:[#allocation9 + $0xe90] sm:$0xff]
    %v1728 = vld [vmem:[#allocation9 + $0xe98] sm:$0xff]
    %v1729 = vld [vmem:[#allocation9 + $0xea0] sm:$0xff]
    %v1730 = vld [vmem:[#allocation9 + $0xea8] sm:$0xff]
    %v1731 = vld [vmem:[#allocation9 + $0xeb0] sm:$0xff]
    %v1732 = vld [vmem:[#allocation9 + $0xeb8] sm:$0xff]
    %v1733 = vld [vmem:[#allocation9 + $0xec0] sm:$0xff]
    %v1734 = vld [vmem:[#allocation9 + $0xec8] sm:$0xff]
    %v1735 = vld [vmem:[#allocation9 + $0xed0] sm:$0xff]
    %v1736 = vld [vmem:[#allocation9 + $0xed8] sm:$0xff]
    %v1737 = vld [vmem:[#allocation9 + $0xee0] sm:$0xff]
    %v1738 = vld [vmem:[#allocation9 + $0xee8] sm:$0xff]
    %v1739 = vld [vmem:[#allocation9 + $0xef0] sm:$0xff]
    %v1740 = vld [vmem:[#allocation9 + $0xef8] sm:$0xff]
    %v1741 = vld [vmem:[#allocation9 + $0xf00] sm:$0xff]
    %v1742 = vld [vmem:[#allocation9 + $0xf08] sm:$0xff]
    %v1743 = vld [vmem:[#allocation9 + $0xf10] sm:$0xff]
    %v1744 = vld [vmem:[#allocation9 + $0xf18] sm:$0xff]
    %v1745 = vld [vmem:[#allocation9 + $0xf20] sm:$0xff]
    %v1746 = vld [vmem:[#allocation9 + $0xf28] sm:$0xff]
    %v1747 = vld [vmem:[#allocation9 + $0xf30] sm:$0xff]
    %v1748 = vld [vmem:[#allocation9 + $0xf38] sm:$0xff]
    %v1749 = vld [vmem:[#allocation9 + $0xf40] sm:$0xff]
    %v1750 = vld [vmem:[#allocation9 + $0xf48] sm:$0xff]
    %v1751 = vld [vmem:[#allocation9 + $0xf50] sm:$0xff]
    %v1752 = vld [vmem:[#allocation9 + $0xf58] sm:$0xff]
    %v1753 = vld [vmem:[#allocation9 + $0xf60] sm:$0xff]
    %v1754 = vld [vmem:[#allocation9 + $0xf68] sm:$0xff]
    %v1755 = vld [vmem:[#allocation9 + $0xf70] sm:$0xff]
    %v1756 = vld [vmem:[#allocation9 + $0xf78] sm:$0xff]
    %v1757 = vld [vmem:[#allocation9 + $0xf80] sm:$0xff]
    %v1758 = vld [vmem:[#allocation9 + $0xf88] sm:$0xff]
    %v1759 = vld [vmem:[#allocation9 + $0xf90] sm:$0xff]
    %v1760 = vld [vmem:[#allocation9 + $0xf98] sm:$0xff]
    %v1761 = vld [vmem:[#allocation9 + $0xfa0] sm:$0xff]
    %v1762 = vld [vmem:[#allocation9 + $0xfa8] sm:$0xff]
    %v1763 = vld [vmem:[#allocation9 + $0xfb0] sm:$0xff]
    %v1764 = vld [vmem:[#allocation9 + $0xfb8] sm:$0xff]
    %v1765 = vld [vmem:[#allocation9 + $0xfc0] sm:$0xff]
    %v1766 = vld [vmem:[#allocation9 + $0xfc8] sm:$0xff]
    %v1767 = vld [vmem:[#allocation9 + $0xfd0] sm:$0xff]
    %v1768 = vld [vmem:[#allocation9 + $0xfd8] sm:$0xff]
    %v1769 = vld [vmem:[#allocation9 + $0xfe0] sm:$0xff]
    %v1770 = vld [vmem:[#allocation9 + $0xfe8] sm:$0xff]
    %v1771 = vld [vmem:[#allocation9 + $0xff0] sm:$0xff]
    %v1772 = vld [vmem:[#allocation9 + $0xff8] sm:$0xff]
    %v1773 = vld [vmem:[#allocation10] sm:$0xff]
    %v1774 = vld [vmem:[#allocation10 + $0x8] sm:$0xff]
    %v1777 = vlaneseq
    %v1778 = vshrl.u32 %v1777, 7
    %v1779 = vsub.s32 0, %v1778
    %v1780 = vrot.slane %v1773, %v1779
    %v1781 = vlaneseq
    %v1782 = vshrl.u32 %v1781, 7
    %v1783 = vsub.s32 1, %v1782
    %v1784 = vrot.slane %v1773, %v1783
    %v1785 = vlaneseq
    %v1786 = vshrl.u32 %v1785, 7
    %v1787 = vsub.s32 2, %v1786
    %v1788 = vrot.slane %v1773, %v1787
    %v1789 = vlaneseq
    %v1790 = vshrl.u32 %v1789, 7
    %v1791 = vsub.s32 3, %v1790
    %v1792 = vrot.slane %v1773, %v1791
    %v1793 = vlaneseq
    %v1794 = vshrl.u32 %v1793, 7
    %v1795 = vsub.s32 4, %v1794
    %v1796 = vrot.slane %v1773, %v1795
    %v1797 = vlaneseq
    %v1798 = vshrl.u32 %v1797, 7
    %v1799 = vsub.s32 5, %v1798
    %v1800 = vrot.slane %v1773, %v1799
    %v1801 = vlaneseq
    %v1802 = vshrl.u32 %v1801, 7
    %v1803 = vsub.s32 6, %v1802
    %v1804 = vrot.slane %v1773, %v1803
    %v1805 = vlaneseq
    %v1806 = vshrl.u32 %v1805, 7
    %v1807 = vsub.s32 7, %v1806
    %v1808 = vrot.slane %v1773, %v1807
    %v1809 = vlaneseq
    %v1810 = vshrl.u32 %v1809, 7
    %v1811 = vsub.s32 0, %v1810
    %v1812 = vrot.slane %v1774, %v1811
    %v1813 = vlaneseq
    %v1814 = vshrl.u32 %v1813, 7
    %v1815 = vsub.s32 1, %v1814
    %v1816 = vrot.slane %v1774, %v1815
    %v1817 = vlaneseq
    %v1818 = vshrl.u32 %v1817, 7
    %v1819 = vsub.s32 2, %v1818
    %v1820 = vrot.slane %v1774, %v1819
    %v1821 = vlaneseq
    %v1822 = vshrl.u32 %v1821, 7
    %v1823 = vsub.s32 3, %v1822
    %v1824 = vrot.slane %v1774, %v1823
    %v1825 = vlaneseq
    %v1826 = vshrl.u32 %v1825, 7
    %v1827 = vsub.s32 4, %v1826
    %v1828 = vrot.slane %v1774, %v1827
    %v1829 = vlaneseq
    %v1830 = vshrl.u32 %v1829, 7
    %v1831 = vsub.s32 5, %v1830
    %v1832 = vrot.slane %v1774, %v1831
    %v1833 = vlaneseq
    %v1834 = vshrl.u32 %v1833, 7
    %v1835 = vsub.s32 6, %v1834
    %v1836 = vrot.slane %v1774, %v1835
    %v1837 = vlaneseq
    %v1838 = vshrl.u32 %v1837, 7
    %v1839 = vsub.s32 7, %v1838
    %v1840 = vrot.slane %v1774, %v1839
    %v2369 = vunpack.c.l.b16 %v1261
    %v2370 = vunpack.c.h.b16 %v1261
    %v2371 = vunpack.c.l.b16 %v1262
    %v2372 = vunpack.c.h.b16 %v1262
    %v2373 = vunpack.c.l.b16 %v1263
    %v2374 = vunpack.c.h.b16 %v1263
    %v2375 = vunpack.c.l.b16 %v1264
    %v2376 = vunpack.c.h.b16 %v1264
    %v2377 = vunpack.c.l.b16 %v1265
    %v2378 = vunpack.c.h.b16 %v1265
    %v2379 = vunpack.c.l.b16 %v1266
    %v2380 = vunpack.c.h.b16 %v1266
    %v2381 = vunpack.c.l.b16 %v1267
    %v2382 = vunpack.c.h.b16 %v1267
    %v2383 = vunpack.c.l.b16 %v1268
    %v2384 = vunpack.c.h.b16 %v1268
    %v2385 = vunpack.c.l.b16 %v1269
    %v2386 = vunpack.c.h.b16 %v1269
    %v2387 = vunpack.c.l.b16 %v1270
    %v2388 = vunpack.c.h.b16 %v1270
    %v2389 = vunpack.c.l.b16 %v1271
    %v2390 = vunpack.c.h.b16 %v1271
    %v2391 = vunpack.c.l.b16 %v1272
    %v2392 = vunpack.c.h.b16 %v1272
    %v2393 = vunpack.c.l.b16 %v1273
    %v2394 = vunpack.c.h.b16 %v1273
    %v2395 = vunpack.c.l.b16 %v1274
    %v2396 = vunpack.c.h.b16 %v1274
    %v2397 = vunpack.c.l.b16 %v1275
    %v2398 = vunpack.c.h.b16 %v1275
    %v2399 = vunpack.c.l.b16 %v1276
    %v2400 = vunpack.c.h.b16 %v1276
    %v2401 = vunpack.c.l.b16 %v1277
    %v2402 = vunpack.c.h.b16 %v1277
    %v2403 = vunpack.c.l.b16 %v1278
    %v2404 = vunpack.c.h.b16 %v1278
    %v2405 = vunpack.c.l.b16 %v1279
    %v2406 = vunpack.c.h.b16 %v1279
    %v2407 = vunpack.c.l.b16 %v1280
    %v2408 = vunpack.c.h.b16 %v1280
    %v2409 = vunpack.c.l.b16 %v1281
    %v2410 = vunpack.c.h.b16 %v1281
    %v2411 = vunpack.c.l.b16 %v1282
    %v2412 = vunpack.c.h.b16 %v1282
    %v2413 = vunpack.c.l.b16 %v1283
    %v2414 = vunpack.c.h.b16 %v1283
    %v2415 = vunpack.c.l.b16 %v1284
    %v2416 = vunpack.c.h.b16 %v1284
    %v2417 = vunpack.c.l.b16 %v1285
    %v2418 = vunpack.c.h.b16 %v1285
    %v2419 = vunpack.c.l.b16 %v1286
    %v2420 = vunpack.c.h.b16 %v1286
    %v2421 = vunpack.c.l.b16 %v1287
    %v2422 = vunpack.c.h.b16 %v1287
    %v2423 = vunpack.c.l.b16 %v1288
    %v2424 = vunpack.c.h.b16 %v1288
    %v2425 = vunpack.c.l.b16 %v1289
    %v2426 = vunpack.c.h.b16 %v1289
    %v2427 = vunpack.c.l.b16 %v1290
    %v2428 = vunpack.c.h.b16 %v1290
    %v2429 = vunpack.c.l.b16 %v1291
    %v2430 = vunpack.c.h.b16 %v1291
    %v2431 = vunpack.c.l.b16 %v1292
    %v2432 = vunpack.c.h.b16 %v1292
    %v2433 = vunpack.c.l.b16 %v1293
    %v2434 = vunpack.c.h.b16 %v1293
    %v2435 = vunpack.c.l.b16 %v1294
    %v2436 = vunpack.c.h.b16 %v1294
    %v2437 = vunpack.c.l.b16 %v1295
    %v2438 = vunpack.c.h.b16 %v1295
    %v2439 = vunpack.c.l.b16 %v1296
    %v2440 = vunpack.c.h.b16 %v1296
    %v2441 = vunpack.c.l.b16 %v1297
    %v2442 = vunpack.c.h.b16 %v1297
    %v2443 = vunpack.c.l.b16 %v1298
    %v2444 = vunpack.c.h.b16 %v1298
    %v2445 = vunpack.c.l.b16 %v1299
    %v2446 = vunpack.c.h.b16 %v1299
    %v2447 = vunpack.c.l.b16 %v1300
    %v2448 = vunpack.c.h.b16 %v1300
    %v2449 = vunpack.c.l.b16 %v1301
    %v2450 = vunpack.c.h.b16 %v1301
    %v2451 = vunpack.c.l.b16 %v1302
    %v2452 = vunpack.c.h.b16 %v1302
    %v2453 = vunpack.c.l.b16 %v1303
    %v2454 = vunpack.c.h.b16 %v1303
    %v2455 = vunpack.c.l.b16 %v1304
    %v2456 = vunpack.c.h.b16 %v1304
    %v2457 = vunpack.c.l.b16 %v1305
    %v2458 = vunpack.c.h.b16 %v1305
    %v2459 = vunpack.c.l.b16 %v1306
    %v2460 = vunpack.c.h.b16 %v1306
    %v2461 = vunpack.c.l.b16 %v1307
    %v2462 = vunpack.c.h.b16 %v1307
    %v2463 = vunpack.c.l.b16 %v1308
    %v2464 = vunpack.c.h.b16 %v1308
    %v2465 = vunpack.c.l.b16 %v1309
    %v2466 = vunpack.c.h.b16 %v1309
    %v2467 = vunpack.c.l.b16 %v1310
    %v2468 = vunpack.c.h.b16 %v1310
    %v2469 = vunpack.c.l.b16 %v1311
    %v2470 = vunpack.c.h.b16 %v1311
    %v2471 = vunpack.c.l.b16 %v1312
    %v2472 = vunpack.c.h.b16 %v1312
    %v2473 = vunpack.c.l.b16 %v1313
    %v2474 = vunpack.c.h.b16 %v1313
    %v2475 = vunpack.c.l.b16 %v1314
    %v2476 = vunpack.c.h.b16 %v1314
    %v2477 = vunpack.c.l.b16 %v1315
    %v2478 = vunpack.c.h.b16 %v1315
    %v2479 = vunpack.c.l.b16 %v1316
    %v2480 = vunpack.c.h.b16 %v1316
    %v2481 = vunpack.c.l.b16 %v1317
    %v2482 = vunpack.c.h.b16 %v1317
    %v2483 = vunpack.c.l.b16 %v1318
    %v2484 = vunpack.c.h.b16 %v1318
    %v2485 = vunpack.c.l.b16 %v1319
    %v2486 = vunpack.c.h.b16 %v1319
    %v2487 = vunpack.c.l.b16 %v1320
    %v2488 = vunpack.c.h.b16 %v1320
    %v2489 = vunpack.c.l.b16 %v1321
    %v2490 = vunpack.c.h.b16 %v1321
    %v2491 = vunpack.c.l.b16 %v1322
    %v2492 = vunpack.c.h.b16 %v1322
    %v2493 = vunpack.c.l.b16 %v1323
    %v2494 = vunpack.c.h.b16 %v1323
    %v2495 = vunpack.c.l.b16 %v1324
    %v2496 = vunpack.c.h.b16 %v1324
    %v2497 = vunpack.c.l.b16 %v1325
    %v2498 = vunpack.c.h.b16 %v1325
    %v2499 = vunpack.c.l.b16 %v1326
    %v2500 = vunpack.c.h.b16 %v1326
    %v2501 = vunpack.c.l.b16 %v1327
    %v2502 = vunpack.c.h.b16 %v1327
    %v2503 = vunpack.c.l.b16 %v1328
    %v2504 = vunpack.c.h.b16 %v1328
    %v2505 = vunpack.c.l.b16 %v1329
    %v2506 = vunpack.c.h.b16 %v1329
    %v2507 = vunpack.c.l.b16 %v1330
    %v2508 = vunpack.c.h.b16 %v1330
    %v2509 = vunpack.c.l.b16 %v1331
    %v2510 = vunpack.c.h.b16 %v1331
    %v2511 = vunpack.c.l.b16 %v1332
    %v2512 = vunpack.c.h.b16 %v1332
    %v2513 = vunpack.c.l.b16 %v1333
    %v2514 = vunpack.c.h.b16 %v1333
    %v2515 = vunpack.c.l.b16 %v1334
    %v2516 = vunpack.c.h.b16 %v1334
    %v2517 = vunpack.c.l.b16 %v1335
    %v2518 = vunpack.c.h.b16 %v1335
    %v2519 = vunpack.c.l.b16 %v1336
    %v2520 = vunpack.c.h.b16 %v1336
    %v2521 = vunpack.c.l.b16 %v1337
    %v2522 = vunpack.c.h.b16 %v1337
    %v2523 = vunpack.c.l.b16 %v1338
    %v2524 = vunpack.c.h.b16 %v1338
    %v2525 = vunpack.c.l.b16 %v1339
    %v2526 = vunpack.c.h.b16 %v1339
    %v2527 = vunpack.c.l.b16 %v1340
    %v2528 = vunpack.c.h.b16 %v1340
    %v2529 = vunpack.c.l.b16 %v1341
    %v2530 = vunpack.c.h.b16 %v1341
    %v2531 = vunpack.c.l.b16 %v1342
    %v2532 = vunpack.c.h.b16 %v1342
    %v2533 = vunpack.c.l.b16 %v1343
    %v2534 = vunpack.c.h.b16 %v1343
    %v2535 = vunpack.c.l.b16 %v1344
    %v2536 = vunpack.c.h.b16 %v1344
    %v2537 = vunpack.c.l.b16 %v1345
    %v2538 = vunpack.c.h.b16 %v1345
    %v2539 = vunpack.c.l.b16 %v1346
    %v2540 = vunpack.c.h.b16 %v1346
    %v2541 = vunpack.c.l.b16 %v1347
    %v2542 = vunpack.c.h.b16 %v1347
    %v2543 = vunpack.c.l.b16 %v1348
    %v2544 = vunpack.c.h.b16 %v1348
    %v2545 = vunpack.c.l.b16 %v1349
    %v2546 = vunpack.c.h.b16 %v1349
    %v2547 = vunpack.c.l.b16 %v1350
    %v2548 = vunpack.c.h.b16 %v1350
    %v2549 = vunpack.c.l.b16 %v1351
    %v2550 = vunpack.c.h.b16 %v1351
    %v2551 = vunpack.c.l.b16 %v1352
    %v2552 = vunpack.c.h.b16 %v1352
    %v2553 = vunpack.c.l.b16 %v1353
    %v2554 = vunpack.c.h.b16 %v1353
    %v2555 = vunpack.c.l.b16 %v1354
    %v2556 = vunpack.c.h.b16 %v1354
    %v2557 = vunpack.c.l.b16 %v1355
    %v2558 = vunpack.c.h.b16 %v1355
    %v2559 = vunpack.c.l.b16 %v1356
    %v2560 = vunpack.c.h.b16 %v1356
    %v2561 = vunpack.c.l.b16 %v1357
    %v2562 = vunpack.c.h.b16 %v1357
    %v2563 = vunpack.c.l.b16 %v1358
    %v2564 = vunpack.c.h.b16 %v1358
    %v2565 = vunpack.c.l.b16 %v1359
    %v2566 = vunpack.c.h.b16 %v1359
    %v2567 = vunpack.c.l.b16 %v1360
    %v2568 = vunpack.c.h.b16 %v1360
    %v2569 = vunpack.c.l.b16 %v1361
    %v2570 = vunpack.c.h.b16 %v1361
    %v2571 = vunpack.c.l.b16 %v1362
    %v2572 = vunpack.c.h.b16 %v1362
    %v2573 = vunpack.c.l.b16 %v1363
    %v2574 = vunpack.c.h.b16 %v1363
    %v2575 = vunpack.c.l.b16 %v1364
    %v2576 = vunpack.c.h.b16 %v1364
    %v2577 = vunpack.c.l.b16 %v1365
    %v2578 = vunpack.c.h.b16 %v1365
    %v2579 = vunpack.c.l.b16 %v1366
    %v2580 = vunpack.c.h.b16 %v1366
    %v2581 = vunpack.c.l.b16 %v1367
    %v2582 = vunpack.c.h.b16 %v1367
    %v2583 = vunpack.c.l.b16 %v1368
    %v2584 = vunpack.c.h.b16 %v1368
    %v2585 = vunpack.c.l.b16 %v1369
    %v2586 = vunpack.c.h.b16 %v1369
    %v2587 = vunpack.c.l.b16 %v1370
    %v2588 = vunpack.c.h.b16 %v1370
    %v2589 = vunpack.c.l.b16 %v1371
    %v2590 = vunpack.c.h.b16 %v1371
    %v2591 = vunpack.c.l.b16 %v1372
    %v2592 = vunpack.c.h.b16 %v1372
    %v2593 = vunpack.c.l.b16 %v1373
    %v2594 = vunpack.c.h.b16 %v1373
    %v2595 = vunpack.c.l.b16 %v1374
    %v2596 = vunpack.c.h.b16 %v1374
    %v2597 = vunpack.c.l.b16 %v1375
    %v2598 = vunpack.c.h.b16 %v1375
    %v2599 = vunpack.c.l.b16 %v1376
    %v2600 = vunpack.c.h.b16 %v1376
    %v2601 = vunpack.c.l.b16 %v1377
    %v2602 = vunpack.c.h.b16 %v1377
    %v2603 = vunpack.c.l.b16 %v1378
    %v2604 = vunpack.c.h.b16 %v1378
    %v2605 = vunpack.c.l.b16 %v1379
    %v2606 = vunpack.c.h.b16 %v1379
    %v2607 = vunpack.c.l.b16 %v1380
    %v2608 = vunpack.c.h.b16 %v1380
    %v2609 = vunpack.c.l.b16 %v1381
    %v2610 = vunpack.c.h.b16 %v1381
    %v2611 = vunpack.c.l.b16 %v1382
    %v2612 = vunpack.c.h.b16 %v1382
    %v2613 = vunpack.c.l.b16 %v1383
    %v2614 = vunpack.c.h.b16 %v1383
    %v2615 = vunpack.c.l.b16 %v1384
    %v2616 = vunpack.c.h.b16 %v1384
    %v2617 = vunpack.c.l.b16 %v1385
    %v2618 = vunpack.c.h.b16 %v1385
    %v2619 = vunpack.c.l.b16 %v1386
    %v2620 = vunpack.c.h.b16 %v1386
    %v2621 = vunpack.c.l.b16 %v1387
    %v2622 = vunpack.c.h.b16 %v1387
    %v2623 = vunpack.c.l.b16 %v1388
    %v2624 = vunpack.c.h.b16 %v1388
    %v2625 = vunpack.c.l.b16 %v1389
    %v2626 = vunpack.c.h.b16 %v1389
    %v2627 = vunpack.c.l.b16 %v1390
    %v2628 = vunpack.c.h.b16 %v1390
    %v2629 = vunpack.c.l.b16 %v1391
    %v2630 = vunpack.c.h.b16 %v1391
    %v2631 = vunpack.c.l.b16 %v1392
    %v2632 = vunpack.c.h.b16 %v1392
    %v2633 = vunpack.c.l.b16 %v1393
    %v2634 = vunpack.c.h.b16 %v1393
    %v2635 = vunpack.c.l.b16 %v1394
    %v2636 = vunpack.c.h.b16 %v1394
    %v2637 = vunpack.c.l.b16 %v1395
    %v2638 = vunpack.c.h.b16 %v1395
    %v2639 = vunpack.c.l.b16 %v1396
    %v2640 = vunpack.c.h.b16 %v1396
    %v2641 = vunpack.c.l.b16 %v1397
    %v2642 = vunpack.c.h.b16 %v1397
    %v2643 = vunpack.c.l.b16 %v1398
    %v2644 = vunpack.c.h.b16 %v1398
    %v2645 = vunpack.c.l.b16 %v1399
    %v2646 = vunpack.c.h.b16 %v1399
    %v2647 = vunpack.c.l.b16 %v1400
    %v2648 = vunpack.c.h.b16 %v1400
    %v2649 = vunpack.c.l.b16 %v1401
    %v2650 = vunpack.c.h.b16 %v1401
    %v2651 = vunpack.c.l.b16 %v1402
    %v2652 = vunpack.c.h.b16 %v1402
    %v2653 = vunpack.c.l.b16 %v1403
    %v2654 = vunpack.c.h.b16 %v1403
    %v2655 = vunpack.c.l.b16 %v1404
    %v2656 = vunpack.c.h.b16 %v1404
    %v2657 = vunpack.c.l.b16 %v1405
    %v2658 = vunpack.c.h.b16 %v1405
    %v2659 = vunpack.c.l.b16 %v1406
    %v2660 = vunpack.c.h.b16 %v1406
    %v2661 = vunpack.c.l.b16 %v1407
    %v2662 = vunpack.c.h.b16 %v1407
    %v2663 = vunpack.c.l.b16 %v1408
    %v2664 = vunpack.c.h.b16 %v1408
    %v2665 = vunpack.c.l.b16 %v1409
    %v2666 = vunpack.c.h.b16 %v1409
    %v2667 = vunpack.c.l.b16 %v1410
    %v2668 = vunpack.c.h.b16 %v1410
    %v2669 = vunpack.c.l.b16 %v1411
    %v2670 = vunpack.c.h.b16 %v1411
    %v2671 = vunpack.c.l.b16 %v1412
    %v2672 = vunpack.c.h.b16 %v1412
    %v2673 = vunpack.c.l.b16 %v1413
    %v2674 = vunpack.c.h.b16 %v1413
    %v2675 = vunpack.c.l.b16 %v1414
    %v2676 = vunpack.c.h.b16 %v1414
    %v2677 = vunpack.c.l.b16 %v1415
    %v2678 = vunpack.c.h.b16 %v1415
    %v2679 = vunpack.c.l.b16 %v1416
    %v2680 = vunpack.c.h.b16 %v1416
    %v2681 = vunpack.c.l.b16 %v1417
    %v2682 = vunpack.c.h.b16 %v1417
    %v2683 = vunpack.c.l.b16 %v1418
    %v2684 = vunpack.c.h.b16 %v1418
    %v2685 = vunpack.c.l.b16 %v1419
    %v2686 = vunpack.c.h.b16 %v1419
    %v2687 = vunpack.c.l.b16 %v1420
    %v2688 = vunpack.c.h.b16 %v1420
    %v2689 = vunpack.c.l.b16 %v1421
    %v2690 = vunpack.c.h.b16 %v1421
    %v2691 = vunpack.c.l.b16 %v1422
    %v2692 = vunpack.c.h.b16 %v1422
    %v2693 = vunpack.c.l.b16 %v1423
    %v2694 = vunpack.c.h.b16 %v1423
    %v2695 = vunpack.c.l.b16 %v1424
    %v2696 = vunpack.c.h.b16 %v1424
    %v2697 = vunpack.c.l.b16 %v1425
    %v2698 = vunpack.c.h.b16 %v1425
    %v2699 = vunpack.c.l.b16 %v1426
    %v2700 = vunpack.c.h.b16 %v1426
    %v2701 = vunpack.c.l.b16 %v1427
    %v2702 = vunpack.c.h.b16 %v1427
    %v2703 = vunpack.c.l.b16 %v1428
    %v2704 = vunpack.c.h.b16 %v1428
    %v2705 = vunpack.c.l.b16 %v1429
    %v2706 = vunpack.c.h.b16 %v1429
    %v2707 = vunpack.c.l.b16 %v1430
    %v2708 = vunpack.c.h.b16 %v1430
    %v2709 = vunpack.c.l.b16 %v1431
    %v2710 = vunpack.c.h.b16 %v1431
    %v2711 = vunpack.c.l.b16 %v1432
    %v2712 = vunpack.c.h.b16 %v1432
    %v2713 = vunpack.c.l.b16 %v1433
    %v2714 = vunpack.c.h.b16 %v1433
    %v2715 = vunpack.c.l.b16 %v1434
    %v2716 = vunpack.c.h.b16 %v1434
    %v2717 = vunpack.c.l.b16 %v1435
    %v2718 = vunpack.c.h.b16 %v1435
    %v2719 = vunpack.c.l.b16 %v1436
    %v2720 = vunpack.c.h.b16 %v1436
    %v2721 = vunpack.c.l.b16 %v1437
    %v2722 = vunpack.c.h.b16 %v1437
    %v2723 = vunpack.c.l.b16 %v1438
    %v2724 = vunpack.c.h.b16 %v1438
    %v2725 = vunpack.c.l.b16 %v1439
    %v2726 = vunpack.c.h.b16 %v1439
    %v2727 = vunpack.c.l.b16 %v1440
    %v2728 = vunpack.c.h.b16 %v1440
    %v2729 = vunpack.c.l.b16 %v1441
    %v2730 = vunpack.c.h.b16 %v1441
    %v2731 = vunpack.c.l.b16 %v1442
    %v2732 = vunpack.c.h.b16 %v1442
    %v2733 = vunpack.c.l.b16 %v1443
    %v2734 = vunpack.c.h.b16 %v1443
    %v2735 = vunpack.c.l.b16 %v1444
    %v2736 = vunpack.c.h.b16 %v1444
    %v2737 = vunpack.c.l.b16 %v1445
    %v2738 = vunpack.c.h.b16 %v1445
    %v2739 = vunpack.c.l.b16 %v1446
    %v2740 = vunpack.c.h.b16 %v1446
    %v2741 = vunpack.c.l.b16 %v1447
    %v2742 = vunpack.c.h.b16 %v1447
    %v2743 = vunpack.c.l.b16 %v1448
    %v2744 = vunpack.c.h.b16 %v1448
    %v2745 = vunpack.c.l.b16 %v1449
    %v2746 = vunpack.c.h.b16 %v1449
    %v2747 = vunpack.c.l.b16 %v1450
    %v2748 = vunpack.c.h.b16 %v1450
    %v2749 = vunpack.c.l.b16 %v1451
    %v2750 = vunpack.c.h.b16 %v1451
    %v2751 = vunpack.c.l.b16 %v1452
    %v2752 = vunpack.c.h.b16 %v1452
    %v2753 = vunpack.c.l.b16 %v1453
    %v2754 = vunpack.c.h.b16 %v1453
    %v2755 = vunpack.c.l.b16 %v1454
    %v2756 = vunpack.c.h.b16 %v1454
    %v2757 = vunpack.c.l.b16 %v1455
    %v2758 = vunpack.c.h.b16 %v1455
    %v2759 = vunpack.c.l.b16 %v1456
    %v2760 = vunpack.c.h.b16 %v1456
    %v2761 = vunpack.c.l.b16 %v1457
    %v2762 = vunpack.c.h.b16 %v1457
    %v2763 = vunpack.c.l.b16 %v1458
    %v2764 = vunpack.c.h.b16 %v1458
    %v2765 = vunpack.c.l.b16 %v1459
    %v2766 = vunpack.c.h.b16 %v1459
    %v2767 = vunpack.c.l.b16 %v1460
    %v2768 = vunpack.c.h.b16 %v1460
    %v2769 = vunpack.c.l.b16 %v1461
    %v2770 = vunpack.c.h.b16 %v1461
    %v2771 = vunpack.c.l.b16 %v1462
    %v2772 = vunpack.c.h.b16 %v1462
    %v2773 = vunpack.c.l.b16 %v1463
    %v2774 = vunpack.c.h.b16 %v1463
    %v2775 = vunpack.c.l.b16 %v1464
    %v2776 = vunpack.c.h.b16 %v1464
    %v2777 = vunpack.c.l.b16 %v1465
    %v2778 = vunpack.c.h.b16 %v1465
    %v2779 = vunpack.c.l.b16 %v1466
    %v2780 = vunpack.c.h.b16 %v1466
    %v2781 = vunpack.c.l.b16 %v1467
    %v2782 = vunpack.c.h.b16 %v1467
    %v2783 = vunpack.c.l.b16 %v1468
    %v2784 = vunpack.c.h.b16 %v1468
    %v2785 = vunpack.c.l.b16 %v1469
    %v2786 = vunpack.c.h.b16 %v1469
    %v2787 = vunpack.c.l.b16 %v1470
    %v2788 = vunpack.c.h.b16 %v1470
    %v2789 = vunpack.c.l.b16 %v1471
    %v2790 = vunpack.c.h.b16 %v1471
    %v2791 = vunpack.c.l.b16 %v1472
    %v2792 = vunpack.c.h.b16 %v1472
    %v2793 = vunpack.c.l.b16 %v1473
    %v2794 = vunpack.c.h.b16 %v1473
    %v2795 = vunpack.c.l.b16 %v1474
    %v2796 = vunpack.c.h.b16 %v1474
    %v2797 = vunpack.c.l.b16 %v1475
    %v2798 = vunpack.c.h.b16 %v1475
    %v2799 = vunpack.c.l.b16 %v1476
    %v2800 = vunpack.c.h.b16 %v1476
    %v2801 = vunpack.c.l.b16 %v1477
    %v2802 = vunpack.c.h.b16 %v1477
    %v2803 = vunpack.c.l.b16 %v1478
    %v2804 = vunpack.c.h.b16 %v1478
    %v2805 = vunpack.c.l.b16 %v1479
    %v2806 = vunpack.c.h.b16 %v1479
    %v2807 = vunpack.c.l.b16 %v1480
    %v2808 = vunpack.c.h.b16 %v1480
    %v2809 = vunpack.c.l.b16 %v1481
    %v2810 = vunpack.c.h.b16 %v1481
    %v2811 = vunpack.c.l.b16 %v1482
    %v2812 = vunpack.c.h.b16 %v1482
    %v2813 = vunpack.c.l.b16 %v1483
    %v2814 = vunpack.c.h.b16 %v1483
    %v2815 = vunpack.c.l.b16 %v1484
    %v2816 = vunpack.c.h.b16 %v1484
    %v2817 = vunpack.c.l.b16 %v1485
    %v2818 = vunpack.c.h.b16 %v1485
    %v2819 = vunpack.c.l.b16 %v1486
    %v2820 = vunpack.c.h.b16 %v1486
    %v2821 = vunpack.c.l.b16 %v1487
    %v2822 = vunpack.c.h.b16 %v1487
    %v2823 = vunpack.c.l.b16 %v1488
    %v2824 = vunpack.c.h.b16 %v1488
    %v2825 = vunpack.c.l.b16 %v1489
    %v2826 = vunpack.c.h.b16 %v1489
    %v2827 = vunpack.c.l.b16 %v1490
    %v2828 = vunpack.c.h.b16 %v1490
    %v2829 = vunpack.c.l.b16 %v1491
    %v2830 = vunpack.c.h.b16 %v1491
    %v2831 = vunpack.c.l.b16 %v1492
    %v2832 = vunpack.c.h.b16 %v1492
    %v2833 = vunpack.c.l.b16 %v1493
    %v2834 = vunpack.c.h.b16 %v1493
    %v2835 = vunpack.c.l.b16 %v1494
    %v2836 = vunpack.c.h.b16 %v1494
    %v2837 = vunpack.c.l.b16 %v1495
    %v2838 = vunpack.c.h.b16 %v1495
    %v2839 = vunpack.c.l.b16 %v1496
    %v2840 = vunpack.c.h.b16 %v1496
    %v2841 = vunpack.c.l.b16 %v1497
    %v2842 = vunpack.c.h.b16 %v1497
    %v2843 = vunpack.c.l.b16 %v1498
    %v2844 = vunpack.c.h.b16 %v1498
    %v2845 = vunpack.c.l.b16 %v1499
    %v2846 = vunpack.c.h.b16 %v1499
    %v2847 = vunpack.c.l.b16 %v1500
    %v2848 = vunpack.c.h.b16 %v1500
    %v2849 = vunpack.c.l.b16 %v1501
    %v2850 = vunpack.c.h.b16 %v1501
    %v2851 = vunpack.c.l.b16 %v1502
    %v2852 = vunpack.c.h.b16 %v1502
    %v2853 = vunpack.c.l.b16 %v1503
    %v2854 = vunpack.c.h.b16 %v1503
    %v2855 = vunpack.c.l.b16 %v1504
    %v2856 = vunpack.c.h.b16 %v1504
    %v2857 = vunpack.c.l.b16 %v1505
    %v2858 = vunpack.c.h.b16 %v1505
    %v2859 = vunpack.c.l.b16 %v1506
    %v2860 = vunpack.c.h.b16 %v1506
    %v2861 = vunpack.c.l.b16 %v1507
    %v2862 = vunpack.c.h.b16 %v1507
    %v2863 = vunpack.c.l.b16 %v1508
    %v2864 = vunpack.c.h.b16 %v1508
    %v2865 = vunpack.c.l.b16 %v1509
    %v2866 = vunpack.c.h.b16 %v1509
    %v2867 = vunpack.c.l.b16 %v1510
    %v2868 = vunpack.c.h.b16 %v1510
    %v2869 = vunpack.c.l.b16 %v1511
    %v2870 = vunpack.c.h.b16 %v1511
    %v2871 = vunpack.c.l.b16 %v1512
    %v2872 = vunpack.c.h.b16 %v1512
    %v2873 = vunpack.c.l.b16 %v1513
    %v2874 = vunpack.c.h.b16 %v1513
    %v2875 = vunpack.c.l.b16 %v1514
    %v2876 = vunpack.c.h.b16 %v1514
    %v2877 = vunpack.c.l.b16 %v1515
    %v2878 = vunpack.c.h.b16 %v1515
    %v2879 = vunpack.c.l.b16 %v1516
    %v2880 = vunpack.c.h.b16 %v1516
    %v2881 = vunpack.c.l.b16 %v1517
    %v2882 = vunpack.c.h.b16 %v1517
    %v2883 = vunpack.c.l.b16 %v1518
    %v2884 = vunpack.c.h.b16 %v1518
    %v2885 = vunpack.c.l.b16 %v1519
    %v2886 = vunpack.c.h.b16 %v1519
    %v2887 = vunpack.c.l.b16 %v1520
    %v2888 = vunpack.c.h.b16 %v1520
    %v2889 = vunpack.c.l.b16 %v1521
    %v2890 = vunpack.c.h.b16 %v1521
    %v2891 = vunpack.c.l.b16 %v1522
    %v2892 = vunpack.c.h.b16 %v1522
    %v2893 = vunpack.c.l.b16 %v1523
    %v2894 = vunpack.c.h.b16 %v1523
    %v2895 = vunpack.c.l.b16 %v1524
    %v2896 = vunpack.c.h.b16 %v1524
    %v2897 = vunpack.c.l.b16 %v1525
    %v2898 = vunpack.c.h.b16 %v1525
    %v2899 = vunpack.c.l.b16 %v1526
    %v2900 = vunpack.c.h.b16 %v1526
    %v2901 = vunpack.c.l.b16 %v1527
    %v2902 = vunpack.c.h.b16 %v1527
    %v2903 = vunpack.c.l.b16 %v1528
    %v2904 = vunpack.c.h.b16 %v1528
    %v2905 = vunpack.c.l.b16 %v1529
    %v2906 = vunpack.c.h.b16 %v1529
    %v2907 = vunpack.c.l.b16 %v1530
    %v2908 = vunpack.c.h.b16 %v1530
    %v2909 = vunpack.c.l.b16 %v1531
    %v2910 = vunpack.c.h.b16 %v1531
    %v2911 = vunpack.c.l.b16 %v1532
    %v2912 = vunpack.c.h.b16 %v1532
    %v2913 = vunpack.c.l.b16 %v1533
    %v2914 = vunpack.c.h.b16 %v1533
    %v2915 = vunpack.c.l.b16 %v1534
    %v2916 = vunpack.c.h.b16 %v1534
    %v2917 = vunpack.c.l.b16 %v1535
    %v2918 = vunpack.c.h.b16 %v1535
    %v2919 = vunpack.c.l.b16 %v1536
    %v2920 = vunpack.c.h.b16 %v1536
    %v2921 = vunpack.c.l.b16 %v1537
    %v2922 = vunpack.c.h.b16 %v1537
    %v2923 = vunpack.c.l.b16 %v1538
    %v2924 = vunpack.c.h.b16 %v1538
    %v2925 = vunpack.c.l.b16 %v1539
    %v2926 = vunpack.c.h.b16 %v1539
    %v2927 = vunpack.c.l.b16 %v1540
    %v2928 = vunpack.c.h.b16 %v1540
    %v2929 = vunpack.c.l.b16 %v1541
    %v2930 = vunpack.c.h.b16 %v1541
    %v2931 = vunpack.c.l.b16 %v1542
    %v2932 = vunpack.c.h.b16 %v1542
    %v2933 = vunpack.c.l.b16 %v1543
    %v2934 = vunpack.c.h.b16 %v1543
    %v2935 = vunpack.c.l.b16 %v1544
    %v2936 = vunpack.c.h.b16 %v1544
    %v2937 = vunpack.c.l.b16 %v1545
    %v2938 = vunpack.c.h.b16 %v1545
    %v2939 = vunpack.c.l.b16 %v1546
    %v2940 = vunpack.c.h.b16 %v1546
    %v2941 = vunpack.c.l.b16 %v1547
    %v2942 = vunpack.c.h.b16 %v1547
    %v2943 = vunpack.c.l.b16 %v1548
    %v2944 = vunpack.c.h.b16 %v1548
    %v2945 = vunpack.c.l.b16 %v1549
    %v2946 = vunpack.c.h.b16 %v1549
    %v2947 = vunpack.c.l.b16 %v1550
    %v2948 = vunpack.c.h.b16 %v1550
    %v2949 = vunpack.c.l.b16 %v1551
    %v2950 = vunpack.c.h.b16 %v1551
    %v2951 = vunpack.c.l.b16 %v1552
    %v2952 = vunpack.c.h.b16 %v1552
    %v2953 = vunpack.c.l.b16 %v1553
    %v2954 = vunpack.c.h.b16 %v1553
    %v2955 = vunpack.c.l.b16 %v1554
    %v2956 = vunpack.c.h.b16 %v1554
    %v2957 = vunpack.c.l.b16 %v1555
    %v2958 = vunpack.c.h.b16 %v1555
    %v2959 = vunpack.c.l.b16 %v1556
    %v2960 = vunpack.c.h.b16 %v1556
    %v2961 = vunpack.c.l.b16 %v1557
    %v2962 = vunpack.c.h.b16 %v1557
    %v2963 = vunpack.c.l.b16 %v1558
    %v2964 = vunpack.c.h.b16 %v1558
    %v2965 = vunpack.c.l.b16 %v1559
    %v2966 = vunpack.c.h.b16 %v1559
    %v2967 = vunpack.c.l.b16 %v1560
    %v2968 = vunpack.c.h.b16 %v1560
    %v2969 = vunpack.c.l.b16 %v1561
    %v2970 = vunpack.c.h.b16 %v1561
    %v2971 = vunpack.c.l.b16 %v1562
    %v2972 = vunpack.c.h.b16 %v1562
    %v2973 = vunpack.c.l.b16 %v1563
    %v2974 = vunpack.c.h.b16 %v1563
    %v2975 = vunpack.c.l.b16 %v1564
    %v2976 = vunpack.c.h.b16 %v1564
    %v2977 = vunpack.c.l.b16 %v1565
    %v2978 = vunpack.c.h.b16 %v1565
    %v2979 = vunpack.c.l.b16 %v1566
    %v2980 = vunpack.c.h.b16 %v1566
    %v2981 = vunpack.c.l.b16 %v1567
    %v2982 = vunpack.c.h.b16 %v1567
    %v2983 = vunpack.c.l.b16 %v1568
    %v2984 = vunpack.c.h.b16 %v1568
    %v2985 = vunpack.c.l.b16 %v1569
    %v2986 = vunpack.c.h.b16 %v1569
    %v2987 = vunpack.c.l.b16 %v1570
    %v2988 = vunpack.c.h.b16 %v1570
    %v2989 = vunpack.c.l.b16 %v1571
    %v2990 = vunpack.c.h.b16 %v1571
    %v2991 = vunpack.c.l.b16 %v1572
    %v2992 = vunpack.c.h.b16 %v1572
    %v2993 = vunpack.c.l.b16 %v1573
    %v2994 = vunpack.c.h.b16 %v1573
    %v2995 = vunpack.c.l.b16 %v1574
    %v2996 = vunpack.c.h.b16 %v1574
    %v2997 = vunpack.c.l.b16 %v1575
    %v2998 = vunpack.c.h.b16 %v1575
    %v2999 = vunpack.c.l.b16 %v1576
    %v3000 = vunpack.c.h.b16 %v1576
    %v3001 = vunpack.c.l.b16 %v1577
    %v3002 = vunpack.c.h.b16 %v1577
    %v3003 = vunpack.c.l.b16 %v1578
    %v3004 = vunpack.c.h.b16 %v1578
    %v3005 = vunpack.c.l.b16 %v1579
    %v3006 = vunpack.c.h.b16 %v1579
    %v3007 = vunpack.c.l.b16 %v1580
    %v3008 = vunpack.c.h.b16 %v1580
    %v3009 = vunpack.c.l.b16 %v1581
    %v3010 = vunpack.c.h.b16 %v1581
    %v3011 = vunpack.c.l.b16 %v1582
    %v3012 = vunpack.c.h.b16 %v1582
    %v3013 = vunpack.c.l.b16 %v1583
    %v3014 = vunpack.c.h.b16 %v1583
    %v3015 = vunpack.c.l.b16 %v1584
    %v3016 = vunpack.c.h.b16 %v1584
    %v3017 = vunpack.c.l.b16 %v1585
    %v3018 = vunpack.c.h.b16 %v1585
    %v3019 = vunpack.c.l.b16 %v1586
    %v3020 = vunpack.c.h.b16 %v1586
    %v3021 = vunpack.c.l.b16 %v1587
    %v3022 = vunpack.c.h.b16 %v1587
    %v3023 = vunpack.c.l.b16 %v1588
    %v3024 = vunpack.c.h.b16 %v1588
    %v3025 = vunpack.c.l.b16 %v1589
    %v3026 = vunpack.c.h.b16 %v1589
    %v3027 = vunpack.c.l.b16 %v1590
    %v3028 = vunpack.c.h.b16 %v1590
    %v3029 = vunpack.c.l.b16 %v1591
    %v3030 = vunpack.c.h.b16 %v1591
    %v3031 = vunpack.c.l.b16 %v1592
    %v3032 = vunpack.c.h.b16 %v1592
    %v3033 = vunpack.c.l.b16 %v1593
    %v3034 = vunpack.c.h.b16 %v1593
    %v3035 = vunpack.c.l.b16 %v1594
    %v3036 = vunpack.c.h.b16 %v1594
    %v3037 = vunpack.c.l.b16 %v1595
    %v3038 = vunpack.c.h.b16 %v1595
    %v3039 = vunpack.c.l.b16 %v1596
    %v3040 = vunpack.c.h.b16 %v1596
    %v3041 = vunpack.c.l.b16 %v1597
    %v3042 = vunpack.c.h.b16 %v1597
    %v3043 = vunpack.c.l.b16 %v1598
    %v3044 = vunpack.c.h.b16 %v1598
    %v3045 = vunpack.c.l.b16 %v1599
    %v3046 = vunpack.c.h.b16 %v1599
    %v3047 = vunpack.c.l.b16 %v1600
    %v3048 = vunpack.c.h.b16 %v1600
    %v3049 = vunpack.c.l.b16 %v1601
    %v3050 = vunpack.c.h.b16 %v1601
    %v3051 = vunpack.c.l.b16 %v1602
    %v3052 = vunpack.c.h.b16 %v1602
    %v3053 = vunpack.c.l.b16 %v1603
    %v3054 = vunpack.c.h.b16 %v1603
    %v3055 = vunpack.c.l.b16 %v1604
    %v3056 = vunpack.c.h.b16 %v1604
    %v3057 = vunpack.c.l.b16 %v1605
    %v3058 = vunpack.c.h.b16 %v1605
    %v3059 = vunpack.c.l.b16 %v1606
    %v3060 = vunpack.c.h.b16 %v1606
    %v3061 = vunpack.c.l.b16 %v1607
    %v3062 = vunpack.c.h.b16 %v1607
    %v3063 = vunpack.c.l.b16 %v1608
    %v3064 = vunpack.c.h.b16 %v1608
    %v3065 = vunpack.c.l.b16 %v1609
    %v3066 = vunpack.c.h.b16 %v1609
    %v3067 = vunpack.c.l.b16 %v1610
    %v3068 = vunpack.c.h.b16 %v1610
    %v3069 = vunpack.c.l.b16 %v1611
    %v3070 = vunpack.c.h.b16 %v1611
    %v3071 = vunpack.c.l.b16 %v1612
    %v3072 = vunpack.c.h.b16 %v1612
    %v3073 = vunpack.c.l.b16 %v1613
    %v3074 = vunpack.c.h.b16 %v1613
    %v3075 = vunpack.c.l.b16 %v1614
    %v3076 = vunpack.c.h.b16 %v1614
    %v3077 = vunpack.c.l.b16 %v1615
    %v3078 = vunpack.c.h.b16 %v1615
    %v3079 = vunpack.c.l.b16 %v1616
    %v3080 = vunpack.c.h.b16 %v1616
    %v3081 = vunpack.c.l.b16 %v1617
    %v3082 = vunpack.c.h.b16 %v1617
    %v3083 = vunpack.c.l.b16 %v1618
    %v3084 = vunpack.c.h.b16 %v1618
    %v3085 = vunpack.c.l.b16 %v1619
    %v3086 = vunpack.c.h.b16 %v1619
    %v3087 = vunpack.c.l.b16 %v1620
    %v3088 = vunpack.c.h.b16 %v1620
    %v3089 = vunpack.c.l.b16 %v1621
    %v3090 = vunpack.c.h.b16 %v1621
    %v3091 = vunpack.c.l.b16 %v1622
    %v3092 = vunpack.c.h.b16 %v1622
    %v3093 = vunpack.c.l.b16 %v1623
    %v3094 = vunpack.c.h.b16 %v1623
    %v3095 = vunpack.c.l.b16 %v1624
    %v3096 = vunpack.c.h.b16 %v1624
    %v3097 = vunpack.c.l.b16 %v1625
    %v3098 = vunpack.c.h.b16 %v1625
    %v3099 = vunpack.c.l.b16 %v1626
    %v3100 = vunpack.c.h.b16 %v1626
    %v3101 = vunpack.c.l.b16 %v1627
    %v3102 = vunpack.c.h.b16 %v1627
    %v3103 = vunpack.c.l.b16 %v1628
    %v3104 = vunpack.c.h.b16 %v1628
    %v3105 = vunpack.c.l.b16 %v1629
    %v3106 = vunpack.c.h.b16 %v1629
    %v3107 = vunpack.c.l.b16 %v1630
    %v3108 = vunpack.c.h.b16 %v1630
    %v3109 = vunpack.c.l.b16 %v1631
    %v3110 = vunpack.c.h.b16 %v1631
    %v3111 = vunpack.c.l.b16 %v1632
    %v3112 = vunpack.c.h.b16 %v1632
    %v3113 = vunpack.c.l.b16 %v1633
    %v3114 = vunpack.c.h.b16 %v1633
    %v3115 = vunpack.c.l.b16 %v1634
    %v3116 = vunpack.c.h.b16 %v1634
    %v3117 = vunpack.c.l.b16 %v1635
    %v3118 = vunpack.c.h.b16 %v1635
    %v3119 = vunpack.c.l.b16 %v1636
    %v3120 = vunpack.c.h.b16 %v1636
    %v3121 = vunpack.c.l.b16 %v1637
    %v3122 = vunpack.c.h.b16 %v1637
    %v3123 = vunpack.c.l.b16 %v1638
    %v3124 = vunpack.c.h.b16 %v1638
    %v3125 = vunpack.c.l.b16 %v1639
    %v3126 = vunpack.c.h.b16 %v1639
    %v3127 = vunpack.c.l.b16 %v1640
    %v3128 = vunpack.c.h.b16 %v1640
    %v3129 = vunpack.c.l.b16 %v1641
    %v3130 = vunpack.c.h.b16 %v1641
    %v3131 = vunpack.c.l.b16 %v1642
    %v3132 = vunpack.c.h.b16 %v1642
    %v3133 = vunpack.c.l.b16 %v1643
    %v3134 = vunpack.c.h.b16 %v1643
    %v3135 = vunpack.c.l.b16 %v1644
    %v3136 = vunpack.c.h.b16 %v1644
    %v3137 = vunpack.c.l.b16 %v1645
    %v3138 = vunpack.c.h.b16 %v1645
    %v3139 = vunpack.c.l.b16 %v1646
    %v3140 = vunpack.c.h.b16 %v1646
    %v3141 = vunpack.c.l.b16 %v1647
    %v3142 = vunpack.c.h.b16 %v1647
    %v3143 = vunpack.c.l.b16 %v1648
    %v3144 = vunpack.c.h.b16 %v1648
    %v3145 = vunpack.c.l.b16 %v1649
    %v3146 = vunpack.c.h.b16 %v1649
    %v3147 = vunpack.c.l.b16 %v1650
    %v3148 = vunpack.c.h.b16 %v1650
    %v3149 = vunpack.c.l.b16 %v1651
    %v3150 = vunpack.c.h.b16 %v1651
    %v3151 = vunpack.c.l.b16 %v1652
    %v3152 = vunpack.c.h.b16 %v1652
    %v3153 = vunpack.c.l.b16 %v1653
    %v3154 = vunpack.c.h.b16 %v1653
    %v3155 = vunpack.c.l.b16 %v1654
    %v3156 = vunpack.c.h.b16 %v1654
    %v3157 = vunpack.c.l.b16 %v1655
    %v3158 = vunpack.c.h.b16 %v1655
    %v3159 = vunpack.c.l.b16 %v1656
    %v3160 = vunpack.c.h.b16 %v1656
    %v3161 = vunpack.c.l.b16 %v1657
    %v3162 = vunpack.c.h.b16 %v1657
    %v3163 = vunpack.c.l.b16 %v1658
    %v3164 = vunpack.c.h.b16 %v1658
    %v3165 = vunpack.c.l.b16 %v1659
    %v3166 = vunpack.c.h.b16 %v1659
    %v3167 = vunpack.c.l.b16 %v1660
    %v3168 = vunpack.c.h.b16 %v1660
    %v3169 = vunpack.c.l.b16 %v1661
    %v3170 = vunpack.c.h.b16 %v1661
    %v3171 = vunpack.c.l.b16 %v1662
    %v3172 = vunpack.c.h.b16 %v1662
    %v3173 = vunpack.c.l.b16 %v1663
    %v3174 = vunpack.c.h.b16 %v1663
    %v3175 = vunpack.c.l.b16 %v1664
    %v3176 = vunpack.c.h.b16 %v1664
    %v3177 = vunpack.c.l.b16 %v1665
    %v3178 = vunpack.c.h.b16 %v1665
    %v3179 = vunpack.c.l.b16 %v1666
    %v3180 = vunpack.c.h.b16 %v1666
    %v3181 = vunpack.c.l.b16 %v1667
    %v3182 = vunpack.c.h.b16 %v1667
    %v3183 = vunpack.c.l.b16 %v1668
    %v3184 = vunpack.c.h.b16 %v1668
    %v3185 = vunpack.c.l.b16 %v1669
    %v3186 = vunpack.c.h.b16 %v1669
    %v3187 = vunpack.c.l.b16 %v1670
    %v3188 = vunpack.c.h.b16 %v1670
    %v3189 = vunpack.c.l.b16 %v1671
    %v3190 = vunpack.c.h.b16 %v1671
    %v3191 = vunpack.c.l.b16 %v1672
    %v3192 = vunpack.c.h.b16 %v1672
    %v3193 = vunpack.c.l.b16 %v1673
    %v3194 = vunpack.c.h.b16 %v1673
    %v3195 = vunpack.c.l.b16 %v1674
    %v3196 = vunpack.c.h.b16 %v1674
    %v3197 = vunpack.c.l.b16 %v1675
    %v3198 = vunpack.c.h.b16 %v1675
    %v3199 = vunpack.c.l.b16 %v1676
    %v3200 = vunpack.c.h.b16 %v1676
    %v3201 = vunpack.c.l.b16 %v1677
    %v3202 = vunpack.c.h.b16 %v1677
    %v3203 = vunpack.c.l.b16 %v1678
    %v3204 = vunpack.c.h.b16 %v1678
    %v3205 = vunpack.c.l.b16 %v1679
    %v3206 = vunpack.c.h.b16 %v1679
    %v3207 = vunpack.c.l.b16 %v1680
    %v3208 = vunpack.c.h.b16 %v1680
    %v3209 = vunpack.c.l.b16 %v1681
    %v3210 = vunpack.c.h.b16 %v1681
    %v3211 = vunpack.c.l.b16 %v1682
    %v3212 = vunpack.c.h.b16 %v1682
    %v3213 = vunpack.c.l.b16 %v1683
    %v3214 = vunpack.c.h.b16 %v1683
    %v3215 = vunpack.c.l.b16 %v1684
    %v3216 = vunpack.c.h.b16 %v1684
    %v3217 = vunpack.c.l.b16 %v1685
    %v3218 = vunpack.c.h.b16 %v1685
    %v3219 = vunpack.c.l.b16 %v1686
    %v3220 = vunpack.c.h.b16 %v1686
    %v3221 = vunpack.c.l.b16 %v1687
    %v3222 = vunpack.c.h.b16 %v1687
    %v3223 = vunpack.c.l.b16 %v1688
    %v3224 = vunpack.c.h.b16 %v1688
    %v3225 = vunpack.c.l.b16 %v1689
    %v3226 = vunpack.c.h.b16 %v1689
    %v3227 = vunpack.c.l.b16 %v1690
    %v3228 = vunpack.c.h.b16 %v1690
    %v3229 = vunpack.c.l.b16 %v1691
    %v3230 = vunpack.c.h.b16 %v1691
    %v3231 = vunpack.c.l.b16 %v1692
    %v3232 = vunpack.c.h.b16 %v1692
    %v3233 = vunpack.c.l.b16 %v1693
    %v3234 = vunpack.c.h.b16 %v1693
    %v3235 = vunpack.c.l.b16 %v1694
    %v3236 = vunpack.c.h.b16 %v1694
    %v3237 = vunpack.c.l.b16 %v1695
    %v3238 = vunpack.c.h.b16 %v1695
    %v3239 = vunpack.c.l.b16 %v1696
    %v3240 = vunpack.c.h.b16 %v1696
    %v3241 = vunpack.c.l.b16 %v1697
    %v3242 = vunpack.c.h.b16 %v1697
    %v3243 = vunpack.c.l.b16 %v1698
    %v3244 = vunpack.c.h.b16 %v1698
    %v3245 = vunpack.c.l.b16 %v1699
    %v3246 = vunpack.c.h.b16 %v1699
    %v3247 = vunpack.c.l.b16 %v1700
    %v3248 = vunpack.c.h.b16 %v1700
    %v3249 = vunpack.c.l.b16 %v1701
    %v3250 = vunpack.c.h.b16 %v1701
    %v3251 = vunpack.c.l.b16 %v1702
    %v3252 = vunpack.c.h.b16 %v1702
    %v3253 = vunpack.c.l.b16 %v1703
    %v3254 = vunpack.c.h.b16 %v1703
    %v3255 = vunpack.c.l.b16 %v1704
    %v3256 = vunpack.c.h.b16 %v1704
    %v3257 = vunpack.c.l.b16 %v1705
    %v3258 = vunpack.c.h.b16 %v1705
    %v3259 = vunpack.c.l.b16 %v1706
    %v3260 = vunpack.c.h.b16 %v1706
    %v3261 = vunpack.c.l.b16 %v1707
    %v3262 = vunpack.c.h.b16 %v1707
    %v3263 = vunpack.c.l.b16 %v1708
    %v3264 = vunpack.c.h.b16 %v1708
    %v3265 = vunpack.c.l.b16 %v1709
    %v3266 = vunpack.c.h.b16 %v1709
    %v3267 = vunpack.c.l.b16 %v1710
    %v3268 = vunpack.c.h.b16 %v1710
    %v3269 = vunpack.c.l.b16 %v1711
    %v3270 = vunpack.c.h.b16 %v1711
    %v3271 = vunpack.c.l.b16 %v1712
    %v3272 = vunpack.c.h.b16 %v1712
    %v3273 = vunpack.c.l.b16 %v1713
    %v3274 = vunpack.c.h.b16 %v1713
    %v3275 = vunpack.c.l.b16 %v1714
    %v3276 = vunpack.c.h.b16 %v1714
    %v3277 = vunpack.c.l.b16 %v1715
    %v3278 = vunpack.c.h.b16 %v1715
    %v3279 = vunpack.c.l.b16 %v1716
    %v3280 = vunpack.c.h.b16 %v1716
    %v3281 = vunpack.c.l.b16 %v1717
    %v3282 = vunpack.c.h.b16 %v1717
    %v3283 = vunpack.c.l.b16 %v1718
    %v3284 = vunpack.c.h.b16 %v1718
    %v3285 = vunpack.c.l.b16 %v1719
    %v3286 = vunpack.c.h.b16 %v1719
    %v3287 = vunpack.c.l.b16 %v1720
    %v3288 = vunpack.c.h.b16 %v1720
    %v3289 = vunpack.c.l.b16 %v1721
    %v3290 = vunpack.c.h.b16 %v1721
    %v3291 = vunpack.c.l.b16 %v1722
    %v3292 = vunpack.c.h.b16 %v1722
    %v3293 = vunpack.c.l.b16 %v1723
    %v3294 = vunpack.c.h.b16 %v1723
    %v3295 = vunpack.c.l.b16 %v1724
    %v3296 = vunpack.c.h.b16 %v1724
    %v3297 = vunpack.c.l.b16 %v1725
    %v3298 = vunpack.c.h.b16 %v1725
    %v3299 = vunpack.c.l.b16 %v1726
    %v3300 = vunpack.c.h.b16 %v1726
    %v3301 = vunpack.c.l.b16 %v1727
    %v3302 = vunpack.c.h.b16 %v1727
    %v3303 = vunpack.c.l.b16 %v1728
    %v3304 = vunpack.c.h.b16 %v1728
    %v3305 = vunpack.c.l.b16 %v1729
    %v3306 = vunpack.c.h.b16 %v1729
    %v3307 = vunpack.c.l.b16 %v1730
    %v3308 = vunpack.c.h.b16 %v1730
    %v3309 = vunpack.c.l.b16 %v1731
    %v3310 = vunpack.c.h.b16 %v1731
    %v3311 = vunpack.c.l.b16 %v1732
    %v3312 = vunpack.c.h.b16 %v1732
    %v3313 = vunpack.c.l.b16 %v1733
    %v3314 = vunpack.c.h.b16 %v1733
    %v3315 = vunpack.c.l.b16 %v1734
    %v3316 = vunpack.c.h.b16 %v1734
    %v3317 = vunpack.c.l.b16 %v1735
    %v3318 = vunpack.c.h.b16 %v1735
    %v3319 = vunpack.c.l.b16 %v1736
    %v3320 = vunpack.c.h.b16 %v1736
    %v3321 = vunpack.c.l.b16 %v1737
    %v3322 = vunpack.c.h.b16 %v1737
    %v3323 = vunpack.c.l.b16 %v1738
    %v3324 = vunpack.c.h.b16 %v1738
    %v3325 = vunpack.c.l.b16 %v1739
    %v3326 = vunpack.c.h.b16 %v1739
    %v3327 = vunpack.c.l.b16 %v1740
    %v3328 = vunpack.c.h.b16 %v1740
    %v3329 = vunpack.c.l.b16 %v1741
    %v3330 = vunpack.c.h.b16 %v1741
    %v3331 = vunpack.c.l.b16 %v1742
    %v3332 = vunpack.c.h.b16 %v1742
    %v3333 = vunpack.c.l.b16 %v1743
    %v3334 = vunpack.c.h.b16 %v1743
    %v3335 = vunpack.c.l.b16 %v1744
    %v3336 = vunpack.c.h.b16 %v1744
    %v3337 = vunpack.c.l.b16 %v1745
    %v3338 = vunpack.c.h.b16 %v1745
    %v3339 = vunpack.c.l.b16 %v1746
    %v3340 = vunpack.c.h.b16 %v1746
    %v3341 = vunpack.c.l.b16 %v1747
    %v3342 = vunpack.c.h.b16 %v1747
    %v3343 = vunpack.c.l.b16 %v1748
    %v3344 = vunpack.c.h.b16 %v1748
    %v3345 = vunpack.c.l.b16 %v1749
    %v3346 = vunpack.c.h.b16 %v1749
    %v3347 = vunpack.c.l.b16 %v1750
    %v3348 = vunpack.c.h.b16 %v1750
    %v3349 = vunpack.c.l.b16 %v1751
    %v3350 = vunpack.c.h.b16 %v1751
    %v3351 = vunpack.c.l.b16 %v1752
    %v3352 = vunpack.c.h.b16 %v1752
    %v3353 = vunpack.c.l.b16 %v1753
    %v3354 = vunpack.c.h.b16 %v1753
    %v3355 = vunpack.c.l.b16 %v1754
    %v3356 = vunpack.c.h.b16 %v1754
    %v3357 = vunpack.c.l.b16 %v1755
    %v3358 = vunpack.c.h.b16 %v1755
    %v3359 = vunpack.c.l.b16 %v1756
    %v3360 = vunpack.c.h.b16 %v1756
    %v3361 = vunpack.c.l.b16 %v1757
    %v3362 = vunpack.c.h.b16 %v1757
    %v3363 = vunpack.c.l.b16 %v1758
    %v3364 = vunpack.c.h.b16 %v1758
    %v3365 = vunpack.c.l.b16 %v1759
    %v3366 = vunpack.c.h.b16 %v1759
    %v3367 = vunpack.c.l.b16 %v1760
    %v3368 = vunpack.c.h.b16 %v1760
    %v3369 = vunpack.c.l.b16 %v1761
    %v3370 = vunpack.c.h.b16 %v1761
    %v3371 = vunpack.c.l.b16 %v1762
    %v3372 = vunpack.c.h.b16 %v1762
    %v3373 = vunpack.c.l.b16 %v1763
    %v3374 = vunpack.c.h.b16 %v1763
    %v3375 = vunpack.c.l.b16 %v1764
    %v3376 = vunpack.c.h.b16 %v1764
    %v3377 = vunpack.c.l.b16 %v1765
    %v3378 = vunpack.c.h.b16 %v1765
    %v3379 = vunpack.c.l.b16 %v1766
    %v3380 = vunpack.c.h.b16 %v1766
    %v3381 = vunpack.c.l.b16 %v1767
    %v3382 = vunpack.c.h.b16 %v1767
    %v3383 = vunpack.c.l.b16 %v1768
    %v3384 = vunpack.c.h.b16 %v1768
    %v3385 = vunpack.c.l.b16 %v1769
    %v3386 = vunpack.c.h.b16 %v1769
    %v3387 = vunpack.c.l.b16 %v1770
    %v3388 = vunpack.c.h.b16 %v1770
    %v3389 = vunpack.c.l.b16 %v1771
    %v3390 = vunpack.c.h.b16 %v1771
    %v3391 = vunpack.c.l.b16 %v1772
    %v3392 = vunpack.c.h.b16 %v1772
    %v3393 = vpack.c.b16 %v2385, %v2369
    %v3394 = vpack.c.b16 %v2386, %v2370
    %v3395 = vpack.c.b16 %v2387, %v2371
    %v3396 = vpack.c.b16 %v2388, %v2372
    %v3397 = vpack.c.b16 %v2389, %v2373
    %v3398 = vpack.c.b16 %v2390, %v2374
    %v3399 = vpack.c.b16 %v2391, %v2375
    %v3400 = vpack.c.b16 %v2392, %v2376
    %v3401 = vpack.c.b16 %v2393, %v2377
    %v3402 = vpack.c.b16 %v2394, %v2378
    %v3403 = vpack.c.b16 %v2395, %v2379
    %v3404 = vpack.c.b16 %v2396, %v2380
    %v3405 = vpack.c.b16 %v2397, %v2381
    %v3406 = vpack.c.b16 %v2398, %v2382
    %v3407 = vpack.c.b16 %v2399, %v2383
    %v3408 = vpack.c.b16 %v2400, %v2384
    %v3409 = vpack.c.b16 %v2417, %v2401
    %v3410 = vpack.c.b16 %v2418, %v2402
    %v3411 = vpack.c.b16 %v2419, %v2403
    %v3412 = vpack.c.b16 %v2420, %v2404
    %v3413 = vpack.c.b16 %v2421, %v2405
    %v3414 = vpack.c.b16 %v2422, %v2406
    %v3415 = vpack.c.b16 %v2423, %v2407
    %v3416 = vpack.c.b16 %v2424, %v2408
    %v3417 = vpack.c.b16 %v2425, %v2409
    %v3418 = vpack.c.b16 %v2426, %v2410
    %v3419 = vpack.c.b16 %v2427, %v2411
    %v3420 = vpack.c.b16 %v2428, %v2412
    %v3421 = vpack.c.b16 %v2429, %v2413
    %v3422 = vpack.c.b16 %v2430, %v2414
    %v3423 = vpack.c.b16 %v2431, %v2415
    %v3424 = vpack.c.b16 %v2432, %v2416
    %v3425 = vpack.c.b16 %v2449, %v2433
    %v3426 = vpack.c.b16 %v2450, %v2434
    %v3427 = vpack.c.b16 %v2451, %v2435
    %v3428 = vpack.c.b16 %v2452, %v2436
    %v3429 = vpack.c.b16 %v2453, %v2437
    %v3430 = vpack.c.b16 %v2454, %v2438
    %v3431 = vpack.c.b16 %v2455, %v2439
    %v3432 = vpack.c.b16 %v2456, %v2440
    %v3433 = vpack.c.b16 %v2457, %v2441
    %v3434 = vpack.c.b16 %v2458, %v2442
    %v3435 = vpack.c.b16 %v2459, %v2443
    %v3436 = vpack.c.b16 %v2460, %v2444
    %v3437 = vpack.c.b16 %v2461, %v2445
    %v3438 = vpack.c.b16 %v2462, %v2446
    %v3439 = vpack.c.b16 %v2463, %v2447
    %v3440 = vpack.c.b16 %v2464, %v2448
    %v3441 = vpack.c.b16 %v2481, %v2465
    %v3442 = vpack.c.b16 %v2482, %v2466
    %v3443 = vpack.c.b16 %v2483, %v2467
    %v3444 = vpack.c.b16 %v2484, %v2468
    %v3445 = vpack.c.b16 %v2485, %v2469
    %v3446 = vpack.c.b16 %v2486, %v2470
    %v3447 = vpack.c.b16 %v2487, %v2471
    %v3448 = vpack.c.b16 %v2488, %v2472
    %v3449 = vpack.c.b16 %v2489, %v2473
    %v3450 = vpack.c.b16 %v2490, %v2474
    %v3451 = vpack.c.b16 %v2491, %v2475
    %v3452 = vpack.c.b16 %v2492, %v2476
    %v3453 = vpack.c.b16 %v2493, %v2477
    %v3454 = vpack.c.b16 %v2494, %v2478
    %v3455 = vpack.c.b16 %v2495, %v2479
    %v3456 = vpack.c.b16 %v2496, %v2480
    %v3457 = vpack.c.b16 %v2513, %v2497
    %v3458 = vpack.c.b16 %v2514, %v2498
    %v3459 = vpack.c.b16 %v2515, %v2499
    %v3460 = vpack.c.b16 %v2516, %v2500
    %v3461 = vpack.c.b16 %v2517, %v2501
    %v3462 = vpack.c.b16 %v2518, %v2502
    %v3463 = vpack.c.b16 %v2519, %v2503
    %v3464 = vpack.c.b16 %v2520, %v2504
    %v3465 = vpack.c.b16 %v2521, %v2505
    %v3466 = vpack.c.b16 %v2522, %v2506
    %v3467 = vpack.c.b16 %v2523, %v2507
    %v3468 = vpack.c.b16 %v2524, %v2508
    %v3469 = vpack.c.b16 %v2525, %v2509
    %v3470 = vpack.c.b16 %v2526, %v2510
    %v3471 = vpack.c.b16 %v2527, %v2511
    %v3472 = vpack.c.b16 %v2528, %v2512
    %v3473 = vpack.c.b16 %v2545, %v2529
    %v3474 = vpack.c.b16 %v2546, %v2530
    %v3475 = vpack.c.b16 %v2547, %v2531
    %v3476 = vpack.c.b16 %v2548, %v2532
    %v3477 = vpack.c.b16 %v2549, %v2533
    %v3478 = vpack.c.b16 %v2550, %v2534
    %v3479 = vpack.c.b16 %v2551, %v2535
    %v3480 = vpack.c.b16 %v2552, %v2536
    %v3481 = vpack.c.b16 %v2553, %v2537
    %v3482 = vpack.c.b16 %v2554, %v2538
    %v3483 = vpack.c.b16 %v2555, %v2539
    %v3484 = vpack.c.b16 %v2556, %v2540
    %v3485 = vpack.c.b16 %v2557, %v2541
    %v3486 = vpack.c.b16 %v2558, %v2542
    %v3487 = vpack.c.b16 %v2559, %v2543
    %v3488 = vpack.c.b16 %v2560, %v2544
    %v3489 = vpack.c.b16 %v2577, %v2561
    %v3490 = vpack.c.b16 %v2578, %v2562
    %v3491 = vpack.c.b16 %v2579, %v2563
    %v3492 = vpack.c.b16 %v2580, %v2564
    %v3493 = vpack.c.b16 %v2581, %v2565
    %v3494 = vpack.c.b16 %v2582, %v2566
    %v3495 = vpack.c.b16 %v2583, %v2567
    %v3496 = vpack.c.b16 %v2584, %v2568
    %v3497 = vpack.c.b16 %v2585, %v2569
    %v3498 = vpack.c.b16 %v2586, %v2570
    %v3499 = vpack.c.b16 %v2587, %v2571
    %v3500 = vpack.c.b16 %v2588, %v2572
    %v3501 = vpack.c.b16 %v2589, %v2573
    %v3502 = vpack.c.b16 %v2590, %v2574
    %v3503 = vpack.c.b16 %v2591, %v2575
    %v3504 = vpack.c.b16 %v2592, %v2576
    %v3505 = vpack.c.b16 %v2609, %v2593
    %v3506 = vpack.c.b16 %v2610, %v2594
    %v3507 = vpack.c.b16 %v2611, %v2595
    %v3508 = vpack.c.b16 %v2612, %v2596
    %v3509 = vpack.c.b16 %v2613, %v2597
    %v3510 = vpack.c.b16 %v2614, %v2598
    %v3511 = vpack.c.b16 %v2615, %v2599
    %v3512 = vpack.c.b16 %v2616, %v2600
    %v3513 = vpack.c.b16 %v2617, %v2601
    %v3514 = vpack.c.b16 %v2618, %v2602
    %v3515 = vpack.c.b16 %v2619, %v2603
    %v3516 = vpack.c.b16 %v2620, %v2604
    %v3517 = vpack.c.b16 %v2621, %v2605
    %v3518 = vpack.c.b16 %v2622, %v2606
    %v3519 = vpack.c.b16 %v2623, %v2607
    %v3520 = vpack.c.b16 %v2624, %v2608
    %v3521 = vpack.c.b16 %v2641, %v2625
    %v3522 = vpack.c.b16 %v2642, %v2626
    %v3523 = vpack.c.b16 %v2643, %v2627
    %v3524 = vpack.c.b16 %v2644, %v2628
    %v3525 = vpack.c.b16 %v2645, %v2629
    %v3526 = vpack.c.b16 %v2646, %v2630
    %v3527 = vpack.c.b16 %v2647, %v2631
    %v3528 = vpack.c.b16 %v2648, %v2632
    %v3529 = vpack.c.b16 %v2649, %v2633
    %v3530 = vpack.c.b16 %v2650, %v2634
    %v3531 = vpack.c.b16 %v2651, %v2635
    %v3532 = vpack.c.b16 %v2652, %v2636
    %v3533 = vpack.c.b16 %v2653, %v2637
    %v3534 = vpack.c.b16 %v2654, %v2638
    %v3535 = vpack.c.b16 %v2655, %v2639
    %v3536 = vpack.c.b16 %v2656, %v2640
    %v3537 = vpack.c.b16 %v2673, %v2657
    %v3538 = vpack.c.b16 %v2674, %v2658
    %v3539 = vpack.c.b16 %v2675, %v2659
    %v3540 = vpack.c.b16 %v2676, %v2660
    %v3541 = vpack.c.b16 %v2677, %v2661
    %v3542 = vpack.c.b16 %v2678, %v2662
    %v3543 = vpack.c.b16 %v2679, %v2663
    %v3544 = vpack.c.b16 %v2680, %v2664
    %v3545 = vpack.c.b16 %v2681, %v2665
    %v3546 = vpack.c.b16 %v2682, %v2666
    %v3547 = vpack.c.b16 %v2683, %v2667
    %v3548 = vpack.c.b16 %v2684, %v2668
    %v3549 = vpack.c.b16 %v2685, %v2669
    %v3550 = vpack.c.b16 %v2686, %v2670
    %v3551 = vpack.c.b16 %v2687, %v2671
    %v3552 = vpack.c.b16 %v2688, %v2672
    %v3553 = vpack.c.b16 %v2705, %v2689
    %v3554 = vpack.c.b16 %v2706, %v2690
    %v3555 = vpack.c.b16 %v2707, %v2691
    %v3556 = vpack.c.b16 %v2708, %v2692
    %v3557 = vpack.c.b16 %v2709, %v2693
    %v3558 = vpack.c.b16 %v2710, %v2694
    %v3559 = vpack.c.b16 %v2711, %v2695
    %v3560 = vpack.c.b16 %v2712, %v2696
    %v3561 = vpack.c.b16 %v2713, %v2697
    %v3562 = vpack.c.b16 %v2714, %v2698
    %v3563 = vpack.c.b16 %v2715, %v2699
    %v3564 = vpack.c.b16 %v2716, %v2700
    %v3565 = vpack.c.b16 %v2717, %v2701
    %v3566 = vpack.c.b16 %v2718, %v2702
    %v3567 = vpack.c.b16 %v2719, %v2703
    %v3568 = vpack.c.b16 %v2720, %v2704
    %v3569 = vpack.c.b16 %v2737, %v2721
    %v3570 = vpack.c.b16 %v2738, %v2722
    %v3571 = vpack.c.b16 %v2739, %v2723
    %v3572 = vpack.c.b16 %v2740, %v2724
    %v3573 = vpack.c.b16 %v2741, %v2725
    %v3574 = vpack.c.b16 %v2742, %v2726
    %v3575 = vpack.c.b16 %v2743, %v2727
    %v3576 = vpack.c.b16 %v2744, %v2728
    %v3577 = vpack.c.b16 %v2745, %v2729
    %v3578 = vpack.c.b16 %v2746, %v2730
    %v3579 = vpack.c.b16 %v2747, %v2731
    %v3580 = vpack.c.b16 %v2748, %v2732
    %v3581 = vpack.c.b16 %v2749, %v2733
    %v3582 = vpack.c.b16 %v2750, %v2734
    %v3583 = vpack.c.b16 %v2751, %v2735
    %v3584 = vpack.c.b16 %v2752, %v2736
    %v3585 = vpack.c.b16 %v2769, %v2753
    %v3586 = vpack.c.b16 %v2770, %v2754
    %v3587 = vpack.c.b16 %v2771, %v2755
    %v3588 = vpack.c.b16 %v2772, %v2756
    %v3589 = vpack.c.b16 %v2773, %v2757
    %v3590 = vpack.c.b16 %v2774, %v2758
    %v3591 = vpack.c.b16 %v2775, %v2759
    %v3592 = vpack.c.b16 %v2776, %v2760
    %v3593 = vpack.c.b16 %v2777, %v2761
    %v3594 = vpack.c.b16 %v2778, %v2762
    %v3595 = vpack.c.b16 %v2779, %v2763
    %v3596 = vpack.c.b16 %v2780, %v2764
    %v3597 = vpack.c.b16 %v2781, %v2765
    %v3598 = vpack.c.b16 %v2782, %v2766
    %v3599 = vpack.c.b16 %v2783, %v2767
    %v3600 = vpack.c.b16 %v2784, %v2768
    %v3601 = vpack.c.b16 %v2801, %v2785
    %v3602 = vpack.c.b16 %v2802, %v2786
    %v3603 = vpack.c.b16 %v2803, %v2787
    %v3604 = vpack.c.b16 %v2804, %v2788
    %v3605 = vpack.c.b16 %v2805, %v2789
    %v3606 = vpack.c.b16 %v2806, %v2790
    %v3607 = vpack.c.b16 %v2807, %v2791
    %v3608 = vpack.c.b16 %v2808, %v2792
    %v3609 = vpack.c.b16 %v2809, %v2793
    %v3610 = vpack.c.b16 %v2810, %v2794
    %v3611 = vpack.c.b16 %v2811, %v2795
    %v3612 = vpack.c.b16 %v2812, %v2796
    %v3613 = vpack.c.b16 %v2813, %v2797
    %v3614 = vpack.c.b16 %v2814, %v2798
    %v3615 = vpack.c.b16 %v2815, %v2799
    %v3616 = vpack.c.b16 %v2816, %v2800
    %v3617 = vpack.c.b16 %v2833, %v2817
    %v3618 = vpack.c.b16 %v2834, %v2818
    %v3619 = vpack.c.b16 %v2835, %v2819
    %v3620 = vpack.c.b16 %v2836, %v2820
    %v3621 = vpack.c.b16 %v2837, %v2821
    %v3622 = vpack.c.b16 %v2838, %v2822
    %v3623 = vpack.c.b16 %v2839, %v2823
    %v3624 = vpack.c.b16 %v2840, %v2824
    %v3625 = vpack.c.b16 %v2841, %v2825
    %v3626 = vpack.c.b16 %v2842, %v2826
    %v3627 = vpack.c.b16 %v2843, %v2827
    %v3628 = vpack.c.b16 %v2844, %v2828
    %v3629 = vpack.c.b16 %v2845, %v2829
    %v3630 = vpack.c.b16 %v2846, %v2830
    %v3631 = vpack.c.b16 %v2847, %v2831
    %v3632 = vpack.c.b16 %v2848, %v2832
    %v3633 = vpack.c.b16 %v2865, %v2849
    %v3634 = vpack.c.b16 %v2866, %v2850
    %v3635 = vpack.c.b16 %v2867, %v2851
    %v3636 = vpack.c.b16 %v2868, %v2852
    %v3637 = vpack.c.b16 %v2869, %v2853
    %v3638 = vpack.c.b16 %v2870, %v2854
    %v3639 = vpack.c.b16 %v2871, %v2855
    %v3640 = vpack.c.b16 %v2872, %v2856
    %v3641 = vpack.c.b16 %v2873, %v2857
    %v3642 = vpack.c.b16 %v2874, %v2858
    %v3643 = vpack.c.b16 %v2875, %v2859
    %v3644 = vpack.c.b16 %v2876, %v2860
    %v3645 = vpack.c.b16 %v2877, %v2861
    %v3646 = vpack.c.b16 %v2878, %v2862
    %v3647 = vpack.c.b16 %v2879, %v2863
    %v3648 = vpack.c.b16 %v2880, %v2864
    %v3649 = vpack.c.b16 %v2897, %v2881
    %v3650 = vpack.c.b16 %v2898, %v2882
    %v3651 = vpack.c.b16 %v2899, %v2883
    %v3652 = vpack.c.b16 %v2900, %v2884
    %v3653 = vpack.c.b16 %v2901, %v2885
    %v3654 = vpack.c.b16 %v2902, %v2886
    %v3655 = vpack.c.b16 %v2903, %v2887
    %v3656 = vpack.c.b16 %v2904, %v2888
    %v3657 = vpack.c.b16 %v2905, %v2889
    %v3658 = vpack.c.b16 %v2906, %v2890
    %v3659 = vpack.c.b16 %v2907, %v2891
    %v3660 = vpack.c.b16 %v2908, %v2892
    %v3661 = vpack.c.b16 %v2909, %v2893
    %v3662 = vpack.c.b16 %v2910, %v2894
    %v3663 = vpack.c.b16 %v2911, %v2895
    %v3664 = vpack.c.b16 %v2912, %v2896
    %v3665 = vpack.c.b16 %v2929, %v2913
    %v3666 = vpack.c.b16 %v2930, %v2914
    %v3667 = vpack.c.b16 %v2931, %v2915
    %v3668 = vpack.c.b16 %v2932, %v2916
    %v3669 = vpack.c.b16 %v2933, %v2917
    %v3670 = vpack.c.b16 %v2934, %v2918
    %v3671 = vpack.c.b16 %v2935, %v2919
    %v3672 = vpack.c.b16 %v2936, %v2920
    %v3673 = vpack.c.b16 %v2937, %v2921
    %v3674 = vpack.c.b16 %v2938, %v2922
    %v3675 = vpack.c.b16 %v2939, %v2923
    %v3676 = vpack.c.b16 %v2940, %v2924
    %v3677 = vpack.c.b16 %v2941, %v2925
    %v3678 = vpack.c.b16 %v2942, %v2926
    %v3679 = vpack.c.b16 %v2943, %v2927
    %v3680 = vpack.c.b16 %v2944, %v2928
    %v3681 = vpack.c.b16 %v2961, %v2945
    %v3682 = vpack.c.b16 %v2962, %v2946
    %v3683 = vpack.c.b16 %v2963, %v2947
    %v3684 = vpack.c.b16 %v2964, %v2948
    %v3685 = vpack.c.b16 %v2965, %v2949
    %v3686 = vpack.c.b16 %v2966, %v2950
    %v3687 = vpack.c.b16 %v2967, %v2951
    %v3688 = vpack.c.b16 %v2968, %v2952
    %v3689 = vpack.c.b16 %v2969, %v2953
    %v3690 = vpack.c.b16 %v2970, %v2954
    %v3691 = vpack.c.b16 %v2971, %v2955
    %v3692 = vpack.c.b16 %v2972, %v2956
    %v3693 = vpack.c.b16 %v2973, %v2957
    %v3694 = vpack.c.b16 %v2974, %v2958
    %v3695 = vpack.c.b16 %v2975, %v2959
    %v3696 = vpack.c.b16 %v2976, %v2960
    %v3697 = vpack.c.b16 %v2993, %v2977
    %v3698 = vpack.c.b16 %v2994, %v2978
    %v3699 = vpack.c.b16 %v2995, %v2979
    %v3700 = vpack.c.b16 %v2996, %v2980
    %v3701 = vpack.c.b16 %v2997, %v2981
    %v3702 = vpack.c.b16 %v2998, %v2982
    %v3703 = vpack.c.b16 %v2999, %v2983
    %v3704 = vpack.c.b16 %v3000, %v2984
    %v3705 = vpack.c.b16 %v3001, %v2985
    %v3706 = vpack.c.b16 %v3002, %v2986
    %v3707 = vpack.c.b16 %v3003, %v2987
    %v3708 = vpack.c.b16 %v3004, %v2988
    %v3709 = vpack.c.b16 %v3005, %v2989
    %v3710 = vpack.c.b16 %v3006, %v2990
    %v3711 = vpack.c.b16 %v3007, %v2991
    %v3712 = vpack.c.b16 %v3008, %v2992
    %v3713 = vpack.c.b16 %v3025, %v3009
    %v3714 = vpack.c.b16 %v3026, %v3010
    %v3715 = vpack.c.b16 %v3027, %v3011
    %v3716 = vpack.c.b16 %v3028, %v3012
    %v3717 = vpack.c.b16 %v3029, %v3013
    %v3718 = vpack.c.b16 %v3030, %v3014
    %v3719 = vpack.c.b16 %v3031, %v3015
    %v3720 = vpack.c.b16 %v3032, %v3016
    %v3721 = vpack.c.b16 %v3033, %v3017
    %v3722 = vpack.c.b16 %v3034, %v3018
    %v3723 = vpack.c.b16 %v3035, %v3019
    %v3724 = vpack.c.b16 %v3036, %v3020
    %v3725 = vpack.c.b16 %v3037, %v3021
    %v3726 = vpack.c.b16 %v3038, %v3022
    %v3727 = vpack.c.b16 %v3039, %v3023
    %v3728 = vpack.c.b16 %v3040, %v3024
    %v3729 = vpack.c.b16 %v3057, %v3041
    %v3730 = vpack.c.b16 %v3058, %v3042
    %v3731 = vpack.c.b16 %v3059, %v3043
    %v3732 = vpack.c.b16 %v3060, %v3044
    %v3733 = vpack.c.b16 %v3061, %v3045
    %v3734 = vpack.c.b16 %v3062, %v3046
    %v3735 = vpack.c.b16 %v3063, %v3047
    %v3736 = vpack.c.b16 %v3064, %v3048
    %v3737 = vpack.c.b16 %v3065, %v3049
    %v3738 = vpack.c.b16 %v3066, %v3050
    %v3739 = vpack.c.b16 %v3067, %v3051
    %v3740 = vpack.c.b16 %v3068, %v3052
    %v3741 = vpack.c.b16 %v3069, %v3053
    %v3742 = vpack.c.b16 %v3070, %v3054
    %v3743 = vpack.c.b16 %v3071, %v3055
    %v3744 = vpack.c.b16 %v3072, %v3056
    %v3745 = vpack.c.b16 %v3089, %v3073
    %v3746 = vpack.c.b16 %v3090, %v3074
    %v3747 = vpack.c.b16 %v3091, %v3075
    %v3748 = vpack.c.b16 %v3092, %v3076
    %v3749 = vpack.c.b16 %v3093, %v3077
    %v3750 = vpack.c.b16 %v3094, %v3078
    %v3751 = vpack.c.b16 %v3095, %v3079
    %v3752 = vpack.c.b16 %v3096, %v3080
    %v3753 = vpack.c.b16 %v3097, %v3081
    %v3754 = vpack.c.b16 %v3098, %v3082
    %v3755 = vpack.c.b16 %v3099, %v3083
    %v3756 = vpack.c.b16 %v3100, %v3084
    %v3757 = vpack.c.b16 %v3101, %v3085
    %v3758 = vpack.c.b16 %v3102, %v3086
    %v3759 = vpack.c.b16 %v3103, %v3087
    %v3760 = vpack.c.b16 %v3104, %v3088
    %v3761 = vpack.c.b16 %v3121, %v3105
    %v3762 = vpack.c.b16 %v3122, %v3106
    %v3763 = vpack.c.b16 %v3123, %v3107
    %v3764 = vpack.c.b16 %v3124, %v3108
    %v3765 = vpack.c.b16 %v3125, %v3109
    %v3766 = vpack.c.b16 %v3126, %v3110
    %v3767 = vpack.c.b16 %v3127, %v3111
    %v3768 = vpack.c.b16 %v3128, %v3112
    %v3769 = vpack.c.b16 %v3129, %v3113
    %v3770 = vpack.c.b16 %v3130, %v3114
    %v3771 = vpack.c.b16 %v3131, %v3115
    %v3772 = vpack.c.b16 %v3132, %v3116
    %v3773 = vpack.c.b16 %v3133, %v3117
    %v3774 = vpack.c.b16 %v3134, %v3118
    %v3775 = vpack.c.b16 %v3135, %v3119
    %v3776 = vpack.c.b16 %v3136, %v3120
    %v3777 = vpack.c.b16 %v3153, %v3137
    %v3778 = vpack.c.b16 %v3154, %v3138
    %v3779 = vpack.c.b16 %v3155, %v3139
    %v3780 = vpack.c.b16 %v3156, %v3140
    %v3781 = vpack.c.b16 %v3157, %v3141
    %v3782 = vpack.c.b16 %v3158, %v3142
    %v3783 = vpack.c.b16 %v3159, %v3143
    %v3784 = vpack.c.b16 %v3160, %v3144
    %v3785 = vpack.c.b16 %v3161, %v3145
    %v3786 = vpack.c.b16 %v3162, %v3146
    %v3787 = vpack.c.b16 %v3163, %v3147
    %v3788 = vpack.c.b16 %v3164, %v3148
    %v3789 = vpack.c.b16 %v3165, %v3149
    %v3790 = vpack.c.b16 %v3166, %v3150
    %v3791 = vpack.c.b16 %v3167, %v3151
    %v3792 = vpack.c.b16 %v3168, %v3152
    %v3793 = vpack.c.b16 %v3185, %v3169
    %v3794 = vpack.c.b16 %v3186, %v3170
    %v3795 = vpack.c.b16 %v3187, %v3171
    %v3796 = vpack.c.b16 %v3188, %v3172
    %v3797 = vpack.c.b16 %v3189, %v3173
    %v3798 = vpack.c.b16 %v3190, %v3174
    %v3799 = vpack.c.b16 %v3191, %v3175
    %v3800 = vpack.c.b16 %v3192, %v3176
    %v3801 = vpack.c.b16 %v3193, %v3177
    %v3802 = vpack.c.b16 %v3194, %v3178
    %v3803 = vpack.c.b16 %v3195, %v3179
    %v3804 = vpack.c.b16 %v3196, %v3180
    %v3805 = vpack.c.b16 %v3197, %v3181
    %v3806 = vpack.c.b16 %v3198, %v3182
    %v3807 = vpack.c.b16 %v3199, %v3183
    %v3808 = vpack.c.b16 %v3200, %v3184
    %v3809 = vpack.c.b16 %v3217, %v3201
    %v3810 = vpack.c.b16 %v3218, %v3202
    %v3811 = vpack.c.b16 %v3219, %v3203
    %v3812 = vpack.c.b16 %v3220, %v3204
    %v3813 = vpack.c.b16 %v3221, %v3205
    %v3814 = vpack.c.b16 %v3222, %v3206
    %v3815 = vpack.c.b16 %v3223, %v3207
    %v3816 = vpack.c.b16 %v3224, %v3208
    %v3817 = vpack.c.b16 %v3225, %v3209
    %v3818 = vpack.c.b16 %v3226, %v3210
    %v3819 = vpack.c.b16 %v3227, %v3211
    %v3820 = vpack.c.b16 %v3228, %v3212
    %v3821 = vpack.c.b16 %v3229, %v3213
    %v3822 = vpack.c.b16 %v3230, %v3214
    %v3823 = vpack.c.b16 %v3231, %v3215
    %v3824 = vpack.c.b16 %v3232, %v3216
    %v3825 = vpack.c.b16 %v3249, %v3233
    %v3826 = vpack.c.b16 %v3250, %v3234
    %v3827 = vpack.c.b16 %v3251, %v3235
    %v3828 = vpack.c.b16 %v3252, %v3236
    %v3829 = vpack.c.b16 %v3253, %v3237
    %v3830 = vpack.c.b16 %v3254, %v3238
    %v3831 = vpack.c.b16 %v3255, %v3239
    %v3832 = vpack.c.b16 %v3256, %v3240
    %v3833 = vpack.c.b16 %v3257, %v3241
    %v3834 = vpack.c.b16 %v3258, %v3242
    %v3835 = vpack.c.b16 %v3259, %v3243
    %v3836 = vpack.c.b16 %v3260, %v3244
    %v3837 = vpack.c.b16 %v3261, %v3245
    %v3838 = vpack.c.b16 %v3262, %v3246
    %v3839 = vpack.c.b16 %v3263, %v3247
    %v3840 = vpack.c.b16 %v3264, %v3248
    %v3841 = vpack.c.b16 %v3281, %v3265
    %v3842 = vpack.c.b16 %v3282, %v3266
    %v3843 = vpack.c.b16 %v3283, %v3267
    %v3844 = vpack.c.b16 %v3284, %v3268
    %v3845 = vpack.c.b16 %v3285, %v3269
    %v3846 = vpack.c.b16 %v3286, %v3270
    %v3847 = vpack.c.b16 %v3287, %v3271
    %v3848 = vpack.c.b16 %v3288, %v3272
    %v3849 = vpack.c.b16 %v3289, %v3273
    %v3850 = vpack.c.b16 %v3290, %v3274
    %v3851 = vpack.c.b16 %v3291, %v3275
    %v3852 = vpack.c.b16 %v3292, %v3276
    %v3853 = vpack.c.b16 %v3293, %v3277
    %v3854 = vpack.c.b16 %v3294, %v3278
    %v3855 = vpack.c.b16 %v3295, %v3279
    %v3856 = vpack.c.b16 %v3296, %v3280
    %v3857 = vpack.c.b16 %v3313, %v3297
    %v3858 = vpack.c.b16 %v3314, %v3298
    %v3859 = vpack.c.b16 %v3315, %v3299
    %v3860 = vpack.c.b16 %v3316, %v3300
    %v3861 = vpack.c.b16 %v3317, %v3301
    %v3862 = vpack.c.b16 %v3318, %v3302
    %v3863 = vpack.c.b16 %v3319, %v3303
    %v3864 = vpack.c.b16 %v3320, %v3304
    %v3865 = vpack.c.b16 %v3321, %v3305
    %v3866 = vpack.c.b16 %v3322, %v3306
    %v3867 = vpack.c.b16 %v3323, %v3307
    %v3868 = vpack.c.b16 %v3324, %v3308
    %v3869 = vpack.c.b16 %v3325, %v3309
    %v3870 = vpack.c.b16 %v3326, %v3310
    %v3871 = vpack.c.b16 %v3327, %v3311
    %v3872 = vpack.c.b16 %v3328, %v3312
    %v3873 = vpack.c.b16 %v3345, %v3329
    %v3874 = vpack.c.b16 %v3346, %v3330
    %v3875 = vpack.c.b16 %v3347, %v3331
    %v3876 = vpack.c.b16 %v3348, %v3332
    %v3877 = vpack.c.b16 %v3349, %v3333
    %v3878 = vpack.c.b16 %v3350, %v3334
    %v3879 = vpack.c.b16 %v3351, %v3335
    %v3880 = vpack.c.b16 %v3352, %v3336
    %v3881 = vpack.c.b16 %v3353, %v3337
    %v3882 = vpack.c.b16 %v3354, %v3338
    %v3883 = vpack.c.b16 %v3355, %v3339
    %v3884 = vpack.c.b16 %v3356, %v3340
    %v3885 = vpack.c.b16 %v3357, %v3341
    %v3886 = vpack.c.b16 %v3358, %v3342
    %v3887 = vpack.c.b16 %v3359, %v3343
    %v3888 = vpack.c.b16 %v3360, %v3344
    %v3889 = vpack.c.b16 %v3377, %v3361
    %v3890 = vpack.c.b16 %v3378, %v3362
    %v3891 = vpack.c.b16 %v3379, %v3363
    %v3892 = vpack.c.b16 %v3380, %v3364
    %v3893 = vpack.c.b16 %v3381, %v3365
    %v3894 = vpack.c.b16 %v3382, %v3366
    %v3895 = vpack.c.b16 %v3383, %v3367
    %v3896 = vpack.c.b16 %v3384, %v3368
    %v3897 = vpack.c.b16 %v3385, %v3369
    %v3898 = vpack.c.b16 %v3386, %v3370
    %v3899 = vpack.c.b16 %v3387, %v3371
    %v3900 = vpack.c.b16 %v3388, %v3372
    %v3901 = vpack.c.b16 %v3389, %v3373
    %v3902 = vpack.c.b16 %v3390, %v3374
    %v3903 = vpack.c.b16 %v3391, %v3375
    %v3904 = vpack.c.b16 %v3392, %v3376
    %4417 = vmatprep.subr.bf16.mxu0 %v3506
    %4418 = vmatpush1.bf16.msra.mxu0 %v3505
    %4419 = vmatprep.subr.bf16.mxu0 %v3490
    %4420 = vmatpush1.bf16.msra.mxu0 %v3489
    %4421 = vmatprep.subr.bf16.mxu0 %v3474
    %4422 = vmatpush1.bf16.msra.mxu0 %v3473
    %4423 = vmatprep.subr.bf16.mxu0 %v3458
    %4424 = vmatpush1.bf16.msra.mxu0 %v3457
    %4425 = vmatprep.subr.bf16.mxu0 %v3442
    %4426 = vmatpush1.bf16.msra.mxu0 %v3441
    %4427 = vmatprep.subr.bf16.mxu0 %v3426
    %4428 = vmatpush1.bf16.msra.mxu0 %v3425
    %4429 = vmatprep.subr.bf16.mxu0 %v3410
    %4430 = vmatpush1.bf16.msra.mxu0 %v3409
    %4431 = vmatprep.subr.bf16.mxu0 %v3394
    %4432 = vmatpush1.bf16.msra.mxu0 %v3393
    %4433 = vmatprep.subr.bf16.mxu0 %v3634
    %4434 = vmatpush2.bf16.msra.mxu0 %v3633
    %4435 = vmatprep.subr.bf16.mxu0 %v3618
    %4436 = vmatpush2.bf16.msra.mxu0 %v3617
    %4437 = vmatprep.subr.bf16.mxu0 %v3602
    %4438 = vmatpush2.bf16.msra.mxu0 %v3601
    %4439 = vmatprep.subr.bf16.mxu0 %v3586
    %4440 = vmatpush2.bf16.msra.mxu0 %v3585
    %4441 = vmatprep.subr.bf16.mxu0 %v3570
    %4442 = vmatpush2.bf16.msra.mxu0 %v3569
    %4443 = vmatprep.subr.bf16.mxu0 %v3554
    %4444 = vmatpush2.bf16.msra.mxu0 %v3553
    %4445 = vmatprep.subr.bf16.mxu0 %v3538
    %4446 = vmatpush2.bf16.msra.mxu0 %v3537
    %4447 = vmatprep.subr.bf16.mxu0 %v3522
    %4448 = vmatpush2.bf16.msra.mxu0 %v3521
    %4449 = vmatprep.mubr.bf16.mxu0 %v1258
    %4450 = vmatmul.mubr.bf16.gmra.mxu0 %v1257
    %v4451 = vpop.f32.mrf.mxu0
    %v4452 = vadd.f32 %v1780, %v4451
    %v4453 = vpop.f32.mrf.mxu0
    %v4454 = vadd.f32 %v1784, %v4453
    %v4455 = vpop.f32.mrf.mxu0
    %v4456 = vpop.f32.mrf.mxu0
    %4457 = vdwg.mxu0
    %4458 = vmatprep.subr.bf16.mxu0 %v3762
    %4459 = vmatpush1.bf16.msra.mxu0 %v3761
    %4460 = vmatprep.subr.bf16.mxu0 %v3746
    %4461 = vmatpush1.bf16.msra.mxu0 %v3745
    %4462 = vmatprep.subr.bf16.mxu0 %v3730
    %4463 = vmatpush1.bf16.msra.mxu0 %v3729
    %4464 = vmatprep.subr.bf16.mxu0 %v3714
    %4465 = vmatpush1.bf16.msra.mxu0 %v3713
    %4466 = vmatprep.subr.bf16.mxu0 %v3698
    %4467 = vmatpush1.bf16.msra.mxu0 %v3697
    %4468 = vmatprep.subr.bf16.mxu0 %v3682
    %4469 = vmatpush1.bf16.msra.mxu0 %v3681
    %4470 = vmatprep.subr.bf16.mxu0 %v3666
    %4471 = vmatpush1.bf16.msra.mxu0 %v3665
    %4472 = vmatprep.subr.bf16.mxu0 %v3650
    %4473 = vmatpush1.bf16.msra.mxu0 %v3649
    %4474 = vmatprep.subr.bf16.mxu0 %v3890
    %4475 = vmatpush2.bf16.msra.mxu0 %v3889
    %4476 = vmatprep.subr.bf16.mxu0 %v3874
    %4477 = vmatpush2.bf16.msra.mxu0 %v3873
    %4478 = vmatprep.subr.bf16.mxu0 %v3858
    %4479 = vmatpush2.bf16.msra.mxu0 %v3857
    %4480 = vmatprep.subr.bf16.mxu0 %v3842
    %4481 = vmatpush2.bf16.msra.mxu0 %v3841
    %4482 = vmatprep.subr.bf16.mxu0 %v3826
    %4483 = vmatpush2.bf16.msra.mxu0 %v3825
    %4484 = vmatprep.subr.bf16.mxu0 %v3810
    %4485 = vmatpush2.bf16.msra.mxu0 %v3809
    %4486 = vmatprep.subr.bf16.mxu0 %v3794
    %4487 = vmatpush2.bf16.msra.mxu0 %v3793
    %4488 = vmatprep.subr.bf16.mxu0 %v3778
    %4489 = vmatpush2.bf16.msra.mxu0 %v3777
    %4490 = vmatprep.mubr.bf16.mxu0 %v1260
    %4491 = vmatmul.mubr.bf16.gmra.mxu0 %v1259
    %v4492 = vpop.f32.mrf.mxu0
    %v4493 = vadd.f32 %v4452, %v4492
    %v4494 = vpop.f32.mrf.mxu0
    %v4495 = vadd.f32 %v4454, %v4494
    %v4496 = vpop.f32.mrf.mxu0
    %v4497 = vpop.f32.mrf.mxu0
    %4498 = vdwg.mxu0
    %4499 = vmatprep.subr.bf16.mxu0 %v3508
    %4500 = vmatpush1.bf16.msra.mxu0 %v3507
    %4501 = vmatprep.subr.bf16.mxu0 %v3492
    %4502 = vmatpush1.bf16.msra.mxu0 %v3491
    %4503 = vmatprep.subr.bf16.mxu0 %v3476
    %4504 = vmatpush1.bf16.msra.mxu0 %v3475
    %4505 = vmatprep.subr.bf16.mxu0 %v3460
    %4506 = vmatpush1.bf16.msra.mxu0 %v3459
    %4507 = vmatprep.subr.bf16.mxu0 %v3444
    %4508 = vmatpush1.bf16.msra.mxu0 %v3443
    %4509 = vmatprep.subr.bf16.mxu0 %v3428
    %4510 = vmatpush1.bf16.msra.mxu0 %v3427
    %4511 = vmatprep.subr.bf16.mxu0 %v3412
    %4512 = vmatpush1.bf16.msra.mxu0 %v3411
    %4513 = vmatprep.subr.bf16.mxu0 %v3396
    %4514 = vmatpush1.bf16.msra.mxu0 %v3395
    %4515 = vmatprep.subr.bf16.mxu0 %v3636
    %4516 = vmatpush2.bf16.msra.mxu0 %v3635
    %4517 = vmatprep.subr.bf16.mxu0 %v3620
    %4518 = vmatpush2.bf16.msra.mxu0 %v3619
    %4519 = vmatprep.subr.bf16.mxu0 %v3604
    %4520 = vmatpush2.bf16.msra.mxu0 %v3603
    %4521 = vmatprep.subr.bf16.mxu0 %v3588
    %4522 = vmatpush2.bf16.msra.mxu0 %v3587
    %4523 = vmatprep.subr.bf16.mxu0 %v3572
    %4524 = vmatpush2.bf16.msra.mxu0 %v3571
    %4525 = vmatprep.subr.bf16.mxu0 %v3556
    %4526 = vmatpush2.bf16.msra.mxu0 %v3555
    %4527 = vmatprep.subr.bf16.mxu0 %v3540
    %4528 = vmatpush2.bf16.msra.mxu0 %v3539
    %4529 = vmatprep.subr.bf16.mxu0 %v3524
    %4530 = vmatpush2.bf16.msra.mxu0 %v3523
    %4531 = vmatprep.mubr.bf16.mxu0 %v1258
    %4532 = vmatmul.mubr.bf16.gmra.mxu0 %v1257
    %v4533 = vpop.f32.mrf.mxu0
    %v4534 = vadd.f32 %v1788, %v4533
    %v4535 = vpop.f32.mrf.mxu0
    %v4536 = vadd.f32 %v1792, %v4535
    %v4537 = vpop.f32.mrf.mxu0
    %v4538 = vpop.f32.mrf.mxu0
    %4539 = vdwg.mxu0
    %4540 = vmatprep.subr.bf16.mxu0 %v3764
    %4541 = vmatpush1.bf16.msra.mxu0 %v3763
    %4542 = vmatprep.subr.bf16.mxu0 %v3748
    %4543 = vmatpush1.bf16.msra.mxu0 %v3747
    %4544 = vmatprep.subr.bf16.mxu0 %v3732
    %4545 = vmatpush1.bf16.msra.mxu0 %v3731
    %4546 = vmatprep.subr.bf16.mxu0 %v3716
    %4547 = vmatpush1.bf16.msra.mxu0 %v3715
    %4548 = vmatprep.subr.bf16.mxu0 %v3700
    %4549 = vmatpush1.bf16.msra.mxu0 %v3699
    %4550 = vmatprep.subr.bf16.mxu0 %v3684
    %4551 = vmatpush1.bf16.msra.mxu0 %v3683
    %4552 = vmatprep.subr.bf16.mxu0 %v3668
    %4553 = vmatpush1.bf16.msra.mxu0 %v3667
    %4554 = vmatprep.subr.bf16.mxu0 %v3652
    %4555 = vmatpush1.bf16.msra.mxu0 %v3651
    %4556 = vmatprep.subr.bf16.mxu0 %v3892
    %4557 = vmatpush2.bf16.msra.mxu0 %v3891
    %4558 = vmatprep.subr.bf16.mxu0 %v3876
    %4559 = vmatpush2.bf16.msra.mxu0 %v3875
    %4560 = vmatprep.subr.bf16.mxu0 %v3860
    %4561 = vmatpush2.bf16.msra.mxu0 %v3859
    %4562 = vmatprep.subr.bf16.mxu0 %v3844
    %4563 = vmatpush2.bf16.msra.mxu0 %v3843
    %4564 = vmatprep.subr.bf16.mxu0 %v3828
    %4565 = vmatpush2.bf16.msra.mxu0 %v3827
    %4566 = vmatprep.subr.bf16.mxu0 %v3812
    %4567 = vmatpush2.bf16.msra.mxu0 %v3811
    %4568 = vmatprep.subr.bf16.mxu0 %v3796
    %4569 = vmatpush2.bf16.msra.mxu0 %v3795
    %4570 = vmatprep.subr.bf16.mxu0 %v3780
    %4571 = vmatpush2.bf16.msra.mxu0 %v3779
    %4572 = vmatprep.mubr.bf16.mxu0 %v1260
    %4573 = vmatmul.mubr.bf16.gmra.mxu0 %v1259
    %v4574 = vpop.f32.mrf.mxu0
    %v4575 = vadd.f32 %v4534, %v4574
    %v4576 = vpop.f32.mrf.mxu0
    %v4577 = vadd.f32 %v4536, %v4576
    %v4578 = vpop.f32.mrf.mxu0
    %v4579 = vpop.f32.mrf.mxu0
    %4580 = vdwg.mxu0
    %4581 = vmatprep.subr.bf16.mxu0 %v3510
    %4582 = vmatpush1.bf16.msra.mxu0 %v3509
    %4583 = vmatprep.subr.bf16.mxu0 %v3494
    %4584 = vmatpush1.bf16.msra.mxu0 %v3493
    %4585 = vmatprep.subr.bf16.mxu0 %v3478
    %4586 = vmatpush1.bf16.msra.mxu0 %v3477
    %4587 = vmatprep.subr.bf16.mxu0 %v3462
    %4588 = vmatpush1.bf16.msra.mxu0 %v3461
    %4589 = vmatprep.subr.bf16.mxu0 %v3446
    %4590 = vmatpush1.bf16.msra.mxu0 %v3445
    %4591 = vmatprep.subr.bf16.mxu0 %v3430
    %4592 = vmatpush1.bf16.msra.mxu0 %v3429
    %4593 = vmatprep.subr.bf16.mxu0 %v3414
    %4594 = vmatpush1.bf16.msra.mxu0 %v3413
    %4595 = vmatprep.subr.bf16.mxu0 %v3398
    %4596 = vmatpush1.bf16.msra.mxu0 %v3397
    %4597 = vmatprep.subr.bf16.mxu0 %v3638
    %4598 = vmatpush2.bf16.msra.mxu0 %v3637
    %4599 = vmatprep.subr.bf16.mxu0 %v3622
    %4600 = vmatpush2.bf16.msra.mxu0 %v3621
    %4601 = vmatprep.subr.bf16.mxu0 %v3606
    %4602 = vmatpush2.bf16.msra.mxu0 %v3605
    %4603 = vmatprep.subr.bf16.mxu0 %v3590
    %4604 = vmatpush2.bf16.msra.mxu0 %v3589
    %4605 = vmatprep.subr.bf16.mxu0 %v3574
    %4606 = vmatpush2.bf16.msra.mxu0 %v3573
    %4607 = vmatprep.subr.bf16.mxu0 %v3558
    %4608 = vmatpush2.bf16.msra.mxu0 %v3557
    %4609 = vmatprep.subr.bf16.mxu0 %v3542
    %4610 = vmatpush2.bf16.msra.mxu0 %v3541
    %4611 = vmatprep.subr.bf16.mxu0 %v3526
    %4612 = vmatpush2.bf16.msra.mxu0 %v3525
    %4613 = vmatprep.mubr.bf16.mxu0 %v1258
    %4614 = vmatmul.mubr.bf16.gmra.mxu0 %v1257
    %v4615 = vpop.f32.mrf.mxu0
    %v4616 = vadd.f32 %v1796, %v4615
    %v4617 = vpop.f32.mrf.mxu0
    %v4618 = vadd.f32 %v1800, %v4617
    %v4619 = vpop.f32.mrf.mxu0
    %v4620 = vpop.f32.mrf.mxu0
    %4621 = vdwg.mxu0
    %4622 = vmatprep.subr.bf16.mxu0 %v3766
    %4623 = vmatpush1.bf16.msra.mxu0 %v3765
    %4624 = vmatprep.subr.bf16.mxu0 %v3750
    %4625 = vmatpush1.bf16.msra.mxu0 %v3749
    %4626 = vmatprep.subr.bf16.mxu0 %v3734
    %4627 = vmatpush1.bf16.msra.mxu0 %v3733
    %4628 = vmatprep.subr.bf16.mxu0 %v3718
    %4629 = vmatpush1.bf16.msra.mxu0 %v3717
    %4630 = vmatprep.subr.bf16.mxu0 %v3702
    %4631 = vmatpush1.bf16.msra.mxu0 %v3701
    %4632 = vmatprep.subr.bf16.mxu0 %v3686
    %4633 = vmatpush1.bf16.msra.mxu0 %v3685
    %4634 = vmatprep.subr.bf16.mxu0 %v3670
    %4635 = vmatpush1.bf16.msra.mxu0 %v3669
    %4636 = vmatprep.subr.bf16.mxu0 %v3654
    %4637 = vmatpush1.bf16.msra.mxu0 %v3653
    %4638 = vmatprep.subr.bf16.mxu0 %v3894
    %4639 = vmatpush2.bf16.msra.mxu0 %v3893
    %4640 = vmatprep.subr.bf16.mxu0 %v3878
    %4641 = vmatpush2.bf16.msra.mxu0 %v3877
    %4642 = vmatprep.subr.bf16.mxu0 %v3862
    %4643 = vmatpush2.bf16.msra.mxu0 %v3861
    %4644 = vmatprep.subr.bf16.mxu0 %v3846
    %4645 = vmatpush2.bf16.msra.mxu0 %v3845
    %4646 = vmatprep.subr.bf16.mxu0 %v3830
    %4647 = vmatpush2.bf16.msra.mxu0 %v3829
    %4648 = vmatprep.subr.bf16.mxu0 %v3814
    %4649 = vmatpush2.bf16.msra.mxu0 %v3813
    %4650 = vmatprep.subr.bf16.mxu0 %v3798
    %4651 = vmatpush2.bf16.msra.mxu0 %v3797
    %4652 = vmatprep.subr.bf16.mxu0 %v3782
    %4653 = vmatpush2.bf16.msra.mxu0 %v3781
    %4654 = vmatprep.mubr.bf16.mxu0 %v1260
    %4655 = vmatmul.mubr.bf16.gmra.mxu0 %v1259
    %v4656 = vpop.f32.mrf.mxu0
    %v4657 = vadd.f32 %v4616, %v4656
    %v4658 = vpop.f32.mrf.mxu0
    %v4659 = vadd.f32 %v4618, %v4658
    %v4660 = vpop.f32.mrf.mxu0
    %v4661 = vpop.f32.mrf.mxu0
    %4662 = vdwg.mxu0
    %4663 = vmatprep.subr.bf16.mxu0 %v3512
    %4664 = vmatpush1.bf16.msra.mxu0 %v3511
    %4665 = vmatprep.subr.bf16.mxu0 %v3496
    %4666 = vmatpush1.bf16.msra.mxu0 %v3495
    %4667 = vmatprep.subr.bf16.mxu0 %v3480
    %4668 = vmatpush1.bf16.msra.mxu0 %v3479
    %4669 = vmatprep.subr.bf16.mxu0 %v3464
    %4670 = vmatpush1.bf16.msra.mxu0 %v3463
    %4671 = vmatprep.subr.bf16.mxu0 %v3448
    %4672 = vmatpush1.bf16.msra.mxu0 %v3447
    %4673 = vmatprep.subr.bf16.mxu0 %v3432
    %4674 = vmatpush1.bf16.msra.mxu0 %v3431
    %4675 = vmatprep.subr.bf16.mxu0 %v3416
    %4676 = vmatpush1.bf16.msra.mxu0 %v3415
    %4677 = vmatprep.subr.bf16.mxu0 %v3400
    %4678 = vmatpush1.bf16.msra.mxu0 %v3399
    %4679 = vmatprep.subr.bf16.mxu0 %v3640
    %4680 = vmatpush2.bf16.msra.mxu0 %v3639
    %4681 = vmatprep.subr.bf16.mxu0 %v3624
    %4682 = vmatpush2.bf16.msra.mxu0 %v3623
    %4683 = vmatprep.subr.bf16.mxu0 %v3608
    %4684 = vmatpush2.bf16.msra.mxu0 %v3607
    %4685 = vmatprep.subr.bf16.mxu0 %v3592
    %4686 = vmatpush2.bf16.msra.mxu0 %v3591
    %4687 = vmatprep.subr.bf16.mxu0 %v3576
    %4688 = vmatpush2.bf16.msra.mxu0 %v3575
    %4689 = vmatprep.subr.bf16.mxu0 %v3560
    %4690 = vmatpush2.bf16.msra.mxu0 %v3559
    %4691 = vmatprep.subr.bf16.mxu0 %v3544
    %4692 = vmatpush2.bf16.msra.mxu0 %v3543
    %4693 = vmatprep.subr.bf16.mxu0 %v3528
    %4694 = vmatpush2.bf16.msra.mxu0 %v3527
    %4695 = vmatprep.mubr.bf16.mxu0 %v1258
    %4696 = vmatmul.mubr.bf16.gmra.mxu0 %v1257
    %v4697 = vpop.f32.mrf.mxu0
    %v4698 = vadd.f32 %v1804, %v4697
    %v4699 = vpop.f32.mrf.mxu0
    %v4700 = vadd.f32 %v1808, %v4699
    %v4701 = vpop.f32.mrf.mxu0
    %v4702 = vpop.f32.mrf.mxu0
    %4703 = vdwg.mxu0
    %4704 = vmatprep.subr.bf16.mxu0 %v3768
    %4705 = vmatpush1.bf16.msra.mxu0 %v3767
    %4706 = vmatprep.subr.bf16.mxu0 %v3752
    %4707 = vmatpush1.bf16.msra.mxu0 %v3751
    %4708 = vmatprep.subr.bf16.mxu0 %v3736
    %4709 = vmatpush1.bf16.msra.mxu0 %v3735
    %4710 = vmatprep.subr.bf16.mxu0 %v3720
    %4711 = vmatpush1.bf16.msra.mxu0 %v3719
    %4712 = vmatprep.subr.bf16.mxu0 %v3704
    %4713 = vmatpush1.bf16.msra.mxu0 %v3703
    %4714 = vmatprep.subr.bf16.mxu0 %v3688
    %4715 = vmatpush1.bf16.msra.mxu0 %v3687
    %4716 = vmatprep.subr.bf16.mxu0 %v3672
    %4717 = vmatpush1.bf16.msra.mxu0 %v3671
    %4718 = vmatprep.subr.bf16.mxu0 %v3656
    %4719 = vmatpush1.bf16.msra.mxu0 %v3655
    %4720 = vmatprep.subr.bf16.mxu0 %v3896
    %4721 = vmatpush2.bf16.msra.mxu0 %v3895
    %4722 = vmatprep.subr.bf16.mxu0 %v3880
    %4723 = vmatpush2.bf16.msra.mxu0 %v3879
    %4724 = vmatprep.subr.bf16.mxu0 %v3864
    %4725 = vmatpush2.bf16.msra.mxu0 %v3863
    %4726 = vmatprep.subr.bf16.mxu0 %v3848
    %4727 = vmatpush2.bf16.msra.mxu0 %v3847
    %4728 = vmatprep.subr.bf16.mxu0 %v3832
    %4729 = vmatpush2.bf16.msra.mxu0 %v3831
    %4730 = vmatprep.subr.bf16.mxu0 %v3816
    %4731 = vmatpush2.bf16.msra.mxu0 %v3815
    %4732 = vmatprep.subr.bf16.mxu0 %v3800
    %4733 = vmatpush2.bf16.msra.mxu0 %v3799
    %4734 = vmatprep.subr.bf16.mxu0 %v3784
    %4735 = vmatpush2.bf16.msra.mxu0 %v3783
    %4736 = vmatprep.mubr.bf16.mxu0 %v1260
    %4737 = vmatmul.mubr.bf16.gmra.mxu0 %v1259
    %v4738 = vpop.f32.mrf.mxu0
    %v4739 = vadd.f32 %v4698, %v4738
    %v4740 = vpop.f32.mrf.mxu0
    %v4741 = vadd.f32 %v4700, %v4740
    %v4742 = vpop.f32.mrf.mxu0
    %v4743 = vpop.f32.mrf.mxu0
    %4744 = vdwg.mxu0
    %4745 = vmatprep.subr.bf16.mxu0 %v3514
    %4746 = vmatpush1.bf16.msra.mxu0 %v3513
    %4747 = vmatprep.subr.bf16.mxu0 %v3498
    %4748 = vmatpush1.bf16.msra.mxu0 %v3497
    %4749 = vmatprep.subr.bf16.mxu0 %v3482
    %4750 = vmatpush1.bf16.msra.mxu0 %v3481
    %4751 = vmatprep.subr.bf16.mxu0 %v3466
    %4752 = vmatpush1.bf16.msra.mxu0 %v3465
    %4753 = vmatprep.subr.bf16.mxu0 %v3450
    %4754 = vmatpush1.bf16.msra.mxu0 %v3449
    %4755 = vmatprep.subr.bf16.mxu0 %v3434
    %4756 = vmatpush1.bf16.msra.mxu0 %v3433
    %4757 = vmatprep.subr.bf16.mxu0 %v3418
    %4758 = vmatpush1.bf16.msra.mxu0 %v3417
    %4759 = vmatprep.subr.bf16.mxu0 %v3402
    %4760 = vmatpush1.bf16.msra.mxu0 %v3401
    %4761 = vmatprep.subr.bf16.mxu0 %v3642
    %4762 = vmatpush2.bf16.msra.mxu0 %v3641
    %4763 = vmatprep.subr.bf16.mxu0 %v3626
    %4764 = vmatpush2.bf16.msra.mxu0 %v3625
    %4765 = vmatprep.subr.bf16.mxu0 %v3610
    %4766 = vmatpush2.bf16.msra.mxu0 %v3609
    %4767 = vmatprep.subr.bf16.mxu0 %v3594
    %4768 = vmatpush2.bf16.msra.mxu0 %v3593
    %4769 = vmatprep.subr.bf16.mxu0 %v3578
    %4770 = vmatpush2.bf16.msra.mxu0 %v3577
    %4771 = vmatprep.subr.bf16.mxu0 %v3562
    %4772 = vmatpush2.bf16.msra.mxu0 %v3561
    %4773 = vmatprep.subr.bf16.mxu0 %v3546
    %4774 = vmatpush2.bf16.msra.mxu0 %v3545
    %4775 = vmatprep.subr.bf16.mxu0 %v3530
    %4776 = vmatpush2.bf16.msra.mxu0 %v3529
    %4777 = vmatprep.mubr.bf16.mxu0 %v1258
    %4778 = vmatmul.mubr.bf16.gmra.mxu0 %v1257
    %v4779 = vpop.f32.mrf.mxu0
    %v4780 = vadd.f32 %v1812, %v4779
    %v4781 = vpop.f32.mrf.mxu0
    %v4782 = vadd.f32 %v1816, %v4781
    %v4783 = vpop.f32.mrf.mxu0
    %v4784 = vpop.f32.mrf.mxu0
    %4785 = vdwg.mxu0
    %4786 = vmatprep.subr.bf16.mxu0 %v3770
    %4787 = vmatpush1.bf16.msra.mxu0 %v3769
    %4788 = vmatprep.subr.bf16.mxu0 %v3754
    %4789 = vmatpush1.bf16.msra.mxu0 %v3753
    %4790 = vmatprep.subr.bf16.mxu0 %v3738
    %4791 = vmatpush1.bf16.msra.mxu0 %v3737
    %4792 = vmatprep.subr.bf16.mxu0 %v3722
    %4793 = vmatpush1.bf16.msra.mxu0 %v3721
    %4794 = vmatprep.subr.bf16.mxu0 %v3706
    %4795 = vmatpush1.bf16.msra.mxu0 %v3705
    %4796 = vmatprep.subr.bf16.mxu0 %v3690
    %4797 = vmatpush1.bf16.msra.mxu0 %v3689
    %4798 = vmatprep.subr.bf16.mxu0 %v3674
    %4799 = vmatpush1.bf16.msra.mxu0 %v3673
    %4800 = vmatprep.subr.bf16.mxu0 %v3658
    %4801 = vmatpush1.bf16.msra.mxu0 %v3657
    %4802 = vmatprep.subr.bf16.mxu0 %v3898
    %4803 = vmatpush2.bf16.msra.mxu0 %v3897
    %4804 = vmatprep.subr.bf16.mxu0 %v3882
    %4805 = vmatpush2.bf16.msra.mxu0 %v3881
    %4806 = vmatprep.subr.bf16.mxu0 %v3866
    %4807 = vmatpush2.bf16.msra.mxu0 %v3865
    %4808 = vmatprep.subr.bf16.mxu0 %v3850
    %4809 = vmatpush2.bf16.msra.mxu0 %v3849
    %4810 = vmatprep.subr.bf16.mxu0 %v3834
    %4811 = vmatpush2.bf16.msra.mxu0 %v3833
    %4812 = vmatprep.subr.bf16.mxu0 %v3818
    %4813 = vmatpush2.bf16.msra.mxu0 %v3817
    %4814 = vmatprep.subr.bf16.mxu0 %v3802
    %4815 = vmatpush2.bf16.msra.mxu0 %v3801
    %4816 = vmatprep.subr.bf16.mxu0 %v3786
    %4817 = vmatpush2.bf16.msra.mxu0 %v3785
    %4818 = vmatprep.mubr.bf16.mxu0 %v1260
    %4819 = vmatmul.mubr.bf16.gmra.mxu0 %v1259
    %v4820 = vpop.f32.mrf.mxu0
    %v4821 = vadd.f32 %v4780, %v4820
    %v4822 = vpop.f32.mrf.mxu0
    %v4823 = vadd.f32 %v4782, %v4822
    %v4824 = vpop.f32.mrf.mxu0
    %v4825 = vpop.f32.mrf.mxu0
    %4826 = vdwg.mxu0
    %4827 = vmatprep.subr.bf16.mxu0 %v3516
    %4828 = vmatpush1.bf16.msra.mxu0 %v3515
    %4829 = vmatprep.subr.bf16.mxu0 %v3500
    %4830 = vmatpush1.bf16.msra.mxu0 %v3499
    %4831 = vmatprep.subr.bf16.mxu0 %v3484
    %4832 = vmatpush1.bf16.msra.mxu0 %v3483
    %4833 = vmatprep.subr.bf16.mxu0 %v3468
    %4834 = vmatpush1.bf16.msra.mxu0 %v3467
    %4835 = vmatprep.subr.bf16.mxu0 %v3452
    %4836 = vmatpush1.bf16.msra.mxu0 %v3451
    %4837 = vmatprep.subr.bf16.mxu0 %v3436
    %4838 = vmatpush1.bf16.msra.mxu0 %v3435
    %4839 = vmatprep.subr.bf16.mxu0 %v3420
    %4840 = vmatpush1.bf16.msra.mxu0 %v3419
    %4841 = vmatprep.subr.bf16.mxu0 %v3404
    %4842 = vmatpush1.bf16.msra.mxu0 %v3403
    %4843 = vmatprep.subr.bf16.mxu0 %v3644
    %4844 = vmatpush2.bf16.msra.mxu0 %v3643
    %4845 = vmatprep.subr.bf16.mxu0 %v3628
    %4846 = vmatpush2.bf16.msra.mxu0 %v3627
    %4847 = vmatprep.subr.bf16.mxu0 %v3612
    %4848 = vmatpush2.bf16.msra.mxu0 %v3611
    %4849 = vmatprep.subr.bf16.mxu0 %v3596
    %4850 = vmatpush2.bf16.msra.mxu0 %v3595
    %4851 = vmatprep.subr.bf16.mxu0 %v3580
    %4852 = vmatpush2.bf16.msra.mxu0 %v3579
    %4853 = vmatprep.subr.bf16.mxu0 %v3564
    %4854 = vmatpush2.bf16.msra.mxu0 %v3563
    %4855 = vmatprep.subr.bf16.mxu0 %v3548
    %4856 = vmatpush2.bf16.msra.mxu0 %v3547
    %4857 = vmatprep.subr.bf16.mxu0 %v3532
    %4858 = vmatpush2.bf16.msra.mxu0 %v3531
    %4859 = vmatprep.mubr.bf16.mxu0 %v1258
    %4860 = vmatmul.mubr.bf16.gmra.mxu0 %v1257
    %v4861 = vpop.f32.mrf.mxu0
    %v4862 = vadd.f32 %v1820, %v4861
    %v4863 = vpop.f32.mrf.mxu0
    %v4864 = vadd.f32 %v1824, %v4863
    %v4865 = vpop.f32.mrf.mxu0
    %v4866 = vpop.f32.mrf.mxu0
    %4867 = vdwg.mxu0
    %4868 = vmatprep.subr.bf16.mxu0 %v3772
    %4869 = vmatpush1.bf16.msra.mxu0 %v3771
    %4870 = vmatprep.subr.bf16.mxu0 %v3756
    %4871 = vmatpush1.bf16.msra.mxu0 %v3755
    %4872 = vmatprep.subr.bf16.mxu0 %v3740
    %4873 = vmatpush1.bf16.msra.mxu0 %v3739
    %4874 = vmatprep.subr.bf16.mxu0 %v3724
    %4875 = vmatpush1.bf16.msra.mxu0 %v3723
    %4876 = vmatprep.subr.bf16.mxu0 %v3708
    %4877 = vmatpush1.bf16.msra.mxu0 %v3707
    %4878 = vmatprep.subr.bf16.mxu0 %v3692
    %4879 = vmatpush1.bf16.msra.mxu0 %v3691
    %4880 = vmatprep.subr.bf16.mxu0 %v3676
    %4881 = vmatpush1.bf16.msra.mxu0 %v3675
    %4882 = vmatprep.subr.bf16.mxu0 %v3660
    %4883 = vmatpush1.bf16.msra.mxu0 %v3659
    %4884 = vmatprep.subr.bf16.mxu0 %v3900
    %4885 = vmatpush2.bf16.msra.mxu0 %v3899
    %4886 = vmatprep.subr.bf16.mxu0 %v3884
    %4887 = vmatpush2.bf16.msra.mxu0 %v3883
    %4888 = vmatprep.subr.bf16.mxu0 %v3868
    %4889 = vmatpush2.bf16.msra.mxu0 %v3867
    %4890 = vmatprep.subr.bf16.mxu0 %v3852
    %4891 = vmatpush2.bf16.msra.mxu0 %v3851
    %4892 = vmatprep.subr.bf16.mxu0 %v3836
    %4893 = vmatpush2.bf16.msra.mxu0 %v3835
    %4894 = vmatprep.subr.bf16.mxu0 %v3820
    %4895 = vmatpush2.bf16.msra.mxu0 %v3819
    %4896 = vmatprep.subr.bf16.mxu0 %v3804
    %4897 = vmatpush2.bf16.msra.mxu0 %v3803
    %4898 = vmatprep.subr.bf16.mxu0 %v3788
    %4899 = vmatpush2.bf16.msra.mxu0 %v3787
    %4900 = vmatprep.mubr.bf16.mxu0 %v1260
    %4901 = vmatmul.mubr.bf16.gmra.mxu0 %v1259
    %v4902 = vpop.f32.mrf.mxu0
    %v4903 = vadd.f32 %v4862, %v4902
    %v4904 = vpop.f32.mrf.mxu0
    %v4905 = vadd.f32 %v4864, %v4904
    %v4906 = vpop.f32.mrf.mxu0
    %v4907 = vpop.f32.mrf.mxu0
    %4908 = vdwg.mxu0
    %4909 = vmatprep.subr.bf16.mxu0 %v3518
    %4910 = vmatpush1.bf16.msra.mxu0 %v3517
    %4911 = vmatprep.subr.bf16.mxu0 %v3502
    %4912 = vmatpush1.bf16.msra.mxu0 %v3501
    %4913 = vmatprep.subr.bf16.mxu0 %v3486
    %4914 = vmatpush1.bf16.msra.mxu0 %v3485
    %4915 = vmatprep.subr.bf16.mxu0 %v3470
    %4916 = vmatpush1.bf16.msra.mxu0 %v3469
    %4917 = vmatprep.subr.bf16.mxu0 %v3454
    %4918 = vmatpush1.bf16.msra.mxu0 %v3453
    %4919 = vmatprep.subr.bf16.mxu0 %v3438
    %4920 = vmatpush1.bf16.msra.mxu0 %v3437
    %4921 = vmatprep.subr.bf16.mxu0 %v3422
    %4922 = vmatpush1.bf16.msra.mxu0 %v3421
    %4923 = vmatprep.subr.bf16.mxu0 %v3406
    %4924 = vmatpush1.bf16.msra.mxu0 %v3405
    %4925 = vmatprep.subr.bf16.mxu0 %v3646
    %4926 = vmatpush2.bf16.msra.mxu0 %v3645
    %4927 = vmatprep.subr.bf16.mxu0 %v3630
    %4928 = vmatpush2.bf16.msra.mxu0 %v3629
    %4929 = vmatprep.subr.bf16.mxu0 %v3614
    %4930 = vmatpush2.bf16.msra.mxu0 %v3613
    %4931 = vmatprep.subr.bf16.mxu0 %v3598
    %4932 = vmatpush2.bf16.msra.mxu0 %v3597
    %4933 = vmatprep.subr.bf16.mxu0 %v3582
    %4934 = vmatpush2.bf16.msra.mxu0 %v3581
    %4935 = vmatprep.subr.bf16.mxu0 %v3566
    %4936 = vmatpush2.bf16.msra.mxu0 %v3565
    %4937 = vmatprep.subr.bf16.mxu0 %v3550
    %4938 = vmatpush2.bf16.msra.mxu0 %v3549
    %4939 = vmatprep.subr.bf16.mxu0 %v3534
    %4940 = vmatpush2.bf16.msra.mxu0 %v3533
    %4941 = vmatprep.mubr.bf16.mxu0 %v1258
    %4942 = vmatmul.mubr.bf16.gmra.mxu0 %v1257
    %v4943 = vpop.f32.mrf.mxu0
    %v4944 = vadd.f32 %v1828, %v4943
    %v4945 = vpop.f32.mrf.mxu0
    %v4946 = vadd.f32 %v1832, %v4945
    %v4947 = vpop.f32.mrf.mxu0
    %v4948 = vpop.f32.mrf.mxu0
    %4949 = vdwg.mxu0
    %4950 = vmatprep.subr.bf16.mxu0 %v3774
    %4951 = vmatpush1.bf16.msra.mxu0 %v3773
    %4952 = vmatprep.subr.bf16.mxu0 %v3758
    %4953 = vmatpush1.bf16.msra.mxu0 %v3757
    %4954 = vmatprep.subr.bf16.mxu0 %v3742
    %4955 = vmatpush1.bf16.msra.mxu0 %v3741
    %4956 = vmatprep.subr.bf16.mxu0 %v3726
    %4957 = vmatpush1.bf16.msra.mxu0 %v3725
    %4958 = vmatprep.subr.bf16.mxu0 %v3710
    %4959 = vmatpush1.bf16.msra.mxu0 %v3709
    %4960 = vmatprep.subr.bf16.mxu0 %v3694
    %4961 = vmatpush1.bf16.msra.mxu0 %v3693
    %4962 = vmatprep.subr.bf16.mxu0 %v3678
    %4963 = vmatpush1.bf16.msra.mxu0 %v3677
    %4964 = vmatprep.subr.bf16.mxu0 %v3662
    %4965 = vmatpush1.bf16.msra.mxu0 %v3661
    %4966 = vmatprep.subr.bf16.mxu0 %v3902
    %4967 = vmatpush2.bf16.msra.mxu0 %v3901
    %4968 = vmatprep.subr.bf16.mxu0 %v3886
    %4969 = vmatpush2.bf16.msra.mxu0 %v3885
    %4970 = vmatprep.subr.bf16.mxu0 %v3870
    %4971 = vmatpush2.bf16.msra.mxu0 %v3869
    %4972 = vmatprep.subr.bf16.mxu0 %v3854
    %4973 = vmatpush2.bf16.msra.mxu0 %v3853
    %4974 = vmatprep.subr.bf16.mxu0 %v3838
    %4975 = vmatpush2.bf16.msra.mxu0 %v3837
    %4976 = vmatprep.subr.bf16.mxu0 %v3822
    %4977 = vmatpush2.bf16.msra.mxu0 %v3821
    %4978 = vmatprep.subr.bf16.mxu0 %v3806
    %4979 = vmatpush2.bf16.msra.mxu0 %v3805
    %4980 = vmatprep.subr.bf16.mxu0 %v3790
    %4981 = vmatpush2.bf16.msra.mxu0 %v3789
    %4982 = vmatprep.mubr.bf16.mxu0 %v1260
    %4983 = vmatmul.mubr.bf16.gmra.mxu0 %v1259
    %v4984 = vpop.f32.mrf.mxu0
    %v4985 = vadd.f32 %v4944, %v4984
    %v4986 = vpop.f32.mrf.mxu0
    %v4987 = vadd.f32 %v4946, %v4986
    %v4988 = vpop.f32.mrf.mxu0
    %v4989 = vpop.f32.mrf.mxu0
    %4990 = vdwg.mxu0
    %4991 = vmatprep.subr.bf16.mxu0 %v3520
    %4992 = vmatpush1.bf16.msra.mxu0 %v3519
    %4993 = vmatprep.subr.bf16.mxu0 %v3504
    %4994 = vmatpush1.bf16.msra.mxu0 %v3503
    %4995 = vmatprep.subr.bf16.mxu0 %v3488
    %4996 = vmatpush1.bf16.msra.mxu0 %v3487
    %4997 = vmatprep.subr.bf16.mxu0 %v3472
    %4998 = vmatpush1.bf16.msra.mxu0 %v3471
    %4999 = vmatprep.subr.bf16.mxu0 %v3456
    %5000 = vmatpush1.bf16.msra.mxu0 %v3455
    %5001 = vmatprep.subr.bf16.mxu0 %v3440
    %5002 = vmatpush1.bf16.msra.mxu0 %v3439
    %5003 = vmatprep.subr.bf16.mxu0 %v3424
    %5004 = vmatpush1.bf16.msra.mxu0 %v3423
    %5005 = vmatprep.subr.bf16.mxu0 %v3408
    %5006 = vmatpush1.bf16.msra.mxu0 %v3407
    %5007 = vmatprep.subr.bf16.mxu0 %v3648
    %5008 = vmatpush2.bf16.msra.mxu0 %v3647
    %5009 = vmatprep.subr.bf16.mxu0 %v3632
    %5010 = vmatpush2.bf16.msra.mxu0 %v3631
    %5011 = vmatprep.subr.bf16.mxu0 %v3616
    %5012 = vmatpush2.bf16.msra.mxu0 %v3615
    %5013 = vmatprep.subr.bf16.mxu0 %v3600
    %5014 = vmatpush2.bf16.msra.mxu0 %v3599
    %5015 = vmatprep.subr.bf16.mxu0 %v3584
    %5016 = vmatpush2.bf16.msra.mxu0 %v3583
    %5017 = vmatprep.subr.bf16.mxu0 %v3568
    %5018 = vmatpush2.bf16.msra.mxu0 %v3567
    %5019 = vmatprep.subr.bf16.mxu0 %v3552
    %5020 = vmatpush2.bf16.msra.mxu0 %v3551
    %5021 = vmatprep.subr.bf16.mxu0 %v3536
    %5022 = vmatpush2.bf16.msra.mxu0 %v3535
    %5023 = vmatprep.mubr.bf16.mxu0 %v1258
    %5024 = vmatmul.mubr.bf16.gmra.mxu0 %v1257
    %v5025 = vpop.f32.mrf.mxu0
    %v5026 = vadd.f32 %v1836, %v5025
    %v5027 = vpop.f32.mrf.mxu0
    %v5028 = vadd.f32 %v1840, %v5027
    %v5029 = vpop.f32.mrf.mxu0
    %v5030 = vpop.f32.mrf.mxu0
    %5031 = vdwg.mxu0
    %5032 = vmatprep.subr.bf16.mxu0 %v3776
    %5033 = vmatpush1.bf16.msra.mxu0 %v3775
    %5034 = vmatprep.subr.bf16.mxu0 %v3760
    %5035 = vmatpush1.bf16.msra.mxu0 %v3759
    %5036 = vmatprep.subr.bf16.mxu0 %v3744
    %5037 = vmatpush1.bf16.msra.mxu0 %v3743
    %5038 = vmatprep.subr.bf16.mxu0 %v3728
    %5039 = vmatpush1.bf16.msra.mxu0 %v3727
    %5040 = vmatprep.subr.bf16.mxu0 %v3712
    %5041 = vmatpush1.bf16.msra.mxu0 %v3711
    %5042 = vmatprep.subr.bf16.mxu0 %v3696
    %5043 = vmatpush1.bf16.msra.mxu0 %v3695
    %5044 = vmatprep.subr.bf16.mxu0 %v3680
    %5045 = vmatpush1.bf16.msra.mxu0 %v3679
    %5046 = vmatprep.subr.bf16.mxu0 %v3664
    %5047 = vmatpush1.bf16.msra.mxu0 %v3663
    %5048 = vmatprep.subr.bf16.mxu0 %v3904
    %5049 = vmatpush2.bf16.msra.mxu0 %v3903
    %5050 = vmatprep.subr.bf16.mxu0 %v3888
    %5051 = vmatpush2.bf16.msra.mxu0 %v3887
    %5052 = vmatprep.subr.bf16.mxu0 %v3872
    %5053 = vmatpush2.bf16.msra.mxu0 %v3871
    %5054 = vmatprep.subr.bf16.mxu0 %v3856
    %5055 = vmatpush2.bf16.msra.mxu0 %v3855
    %5056 = vmatprep.subr.bf16.mxu0 %v3840
    %5057 = vmatpush2.bf16.msra.mxu0 %v3839
    %5058 = vmatprep.subr.bf16.mxu0 %v3824
    %5059 = vmatpush2.bf16.msra.mxu0 %v3823
    %5060 = vmatprep.subr.bf16.mxu0 %v3808
    %5061 = vmatpush2.bf16.msra.mxu0 %v3807
    %5062 = vmatprep.subr.bf16.mxu0 %v3792
    %5063 = vmatpush2.bf16.msra.mxu0 %v3791
    %5064 = vmatprep.mubr.bf16.mxu0 %v1260
    %5065 = vmatmul.mubr.bf16.gmra.mxu0 %v1259
    %v5066 = vpop.f32.mrf.mxu0
    %v5067 = vadd.f32 %v5026, %v5066
    %v5068 = vpop.f32.mrf.mxu0
    %v5069 = vadd.f32 %v5028, %v5068
    %v5070 = vpop.f32.mrf.mxu0
    %v5071 = vpop.f32.mrf.mxu0
    %5072 = vdwg.mxu0
    %v5073 = vmax.f32 %v4493, 0.0
    %v5074 = vmax.f32 %v4495, 0.0
    %v5075 = vmax.f32 %v4575, 0.0
    %v5076 = vmax.f32 %v4577, 0.0
    %v5077 = vmax.f32 %v4657, 0.0
    %v5078 = vmax.f32 %v4659, 0.0
    %v5079 = vmax.f32 %v4739, 0.0
    %v5080 = vmax.f32 %v4741, 0.0
    %v5081 = vmax.f32 %v4821, 0.0
    %v5082 = vmax.f32 %v4823, 0.0
    %v5083 = vmax.f32 %v4903, 0.0
    %v5084 = vmax.f32 %v4905, 0.0
    %v5085 = vmax.f32 %v4985, 0.0
    %v5086 = vmax.f32 %v4987, 0.0
    %v5087 = vmax.f32 %v5067, 0.0
    %v5088 = vmax.f32 %v5069, 0.0
    %v5089 = vpack.c.bf16 %v5073, %v5073
    %v5090 = vpack.c.bf16 %v5074, %v5074
    %v5091 = vpack.c.bf16 %v5075, %v5075
    %v5092 = vpack.c.bf16 %v5076, %v5076
    %v5093 = vpack.c.bf16 %v5077, %v5077
    %v5094 = vpack.c.bf16 %v5078, %v5078
    %v5095 = vpack.c.bf16 %v5079, %v5079
    %v5096 = vpack.c.bf16 %v5080, %v5080
    %v5097 = vpack.c.bf16 %v5081, %v5081
    %v5098 = vpack.c.bf16 %v5082, %v5082
    %v5099 = vpack.c.bf16 %v5083, %v5083
    %v5100 = vpack.c.bf16 %v5084, %v5084
    %v5101 = vpack.c.bf16 %v5085, %v5085
    %v5102 = vpack.c.bf16 %v5086, %v5086
    %v5103 = vpack.c.bf16 %v5087, %v5087
    %v5104 = vpack.c.bf16 %v5088, %v5088
    %v5105 = vld [vmem:[#allocation12] sm:$0xf]
    %v5106 = vld [vmem:[#allocation12 + $0x4] sm:$0xf]
    %v5107 = vld [vmem:[#allocation12 + $0x8] sm:$0xf]
    %v5108 = vld [vmem:[#allocation12 + $0xc] sm:$0xf]
    %v5109 = vld [vmem:[#allocation12 + $0x10] sm:$0xf]
    %v5110 = vld [vmem:[#allocation12 + $0x14] sm:$0xf]
    %v5111 = vld [vmem:[#allocation12 + $0x18] sm:$0xf]
    %v5112 = vld [vmem:[#allocation12 + $0x1c] sm:$0xf]
    %v5113 = vld [vmem:[#allocation12 + $0x20] sm:$0xf]
    %v5114 = vld [vmem:[#allocation12 + $0x24] sm:$0xf]
    %v5115 = vld [vmem:[#allocation12 + $0x28] sm:$0xf]
    %v5116 = vld [vmem:[#allocation12 + $0x2c] sm:$0xf]
    %v5117 = vld [vmem:[#allocation12 + $0x30] sm:$0xf]
    %v5118 = vld [vmem:[#allocation12 + $0x34] sm:$0xf]
    %v5119 = vld [vmem:[#allocation12 + $0x38] sm:$0xf]
    %v5120 = vld [vmem:[#allocation12 + $0x3c] sm:$0xf]
    %v5121 = vld [vmem:[#allocation12 + $0x40] sm:$0xf]
    %v5122 = vld [vmem:[#allocation12 + $0x44] sm:$0xf]
    %v5123 = vld [vmem:[#allocation12 + $0x48] sm:$0xf]
    %v5124 = vld [vmem:[#allocation12 + $0x4c] sm:$0xf]
    %v5125 = vld [vmem:[#allocation12 + $0x50] sm:$0xf]
    %v5126 = vld [vmem:[#allocation12 + $0x54] sm:$0xf]
    %v5127 = vld [vmem:[#allocation12 + $0x58] sm:$0xf]
    %v5128 = vld [vmem:[#allocation12 + $0x5c] sm:$0xf]
    %v5129 = vld [vmem:[#allocation12 + $0x60] sm:$0xf]
    %v5130 = vld [vmem:[#allocation12 + $0x64] sm:$0xf]
    %v5131 = vld [vmem:[#allocation12 + $0x68] sm:$0xf]
    %v5132 = vld [vmem:[#allocation12 + $0x6c] sm:$0xf]
    %v5133 = vld [vmem:[#allocation12 + $0x70] sm:$0xf]
    %v5134 = vld [vmem:[#allocation12 + $0x74] sm:$0xf]
    %v5135 = vld [vmem:[#allocation12 + $0x78] sm:$0xf]
    %v5136 = vld [vmem:[#allocation12 + $0x7c] sm:$0xf]
    %v5137 = vld [vmem:[#allocation12 + $0x80] sm:$0xf]
    %v5138 = vld [vmem:[#allocation12 + $0x84] sm:$0xf]
    %v5139 = vld [vmem:[#allocation12 + $0x88] sm:$0xf]
    %v5140 = vld [vmem:[#allocation12 + $0x8c] sm:$0xf]
    %v5141 = vld [vmem:[#allocation12 + $0x90] sm:$0xf]
    %v5142 = vld [vmem:[#allocation12 + $0x94] sm:$0xf]
    %v5143 = vld [vmem:[#allocation12 + $0x98] sm:$0xf]
    %v5144 = vld [vmem:[#allocation12 + $0x9c] sm:$0xf]
    %v5145 = vld [vmem:[#allocation12 + $0xa0] sm:$0xf]
    %v5146 = vld [vmem:[#allocation12 + $0xa4] sm:$0xf]
    %v5147 = vld [vmem:[#allocation12 + $0xa8] sm:$0xf]
    %v5148 = vld [vmem:[#allocation12 + $0xac] sm:$0xf]
    %v5149 = vld [vmem:[#allocation12 + $0xb0] sm:$0xf]
    %v5150 = vld [vmem:[#allocation12 + $0xb4] sm:$0xf]
    %v5151 = vld [vmem:[#allocation12 + $0xb8] sm:$0xf]
    %v5152 = vld [vmem:[#allocation12 + $0xbc] sm:$0xf]
    %v5153 = vld [vmem:[#allocation12 + $0xc0] sm:$0xf]
    %v5154 = vld [vmem:[#allocation12 + $0xc4] sm:$0xf]
    %v5155 = vld [vmem:[#allocation12 + $0xc8] sm:$0xf]
    %v5156 = vld [vmem:[#allocation12 + $0xcc] sm:$0xf]
    %v5157 = vld [vmem:[#allocation12 + $0xd0] sm:$0xf]
    %v5158 = vld [vmem:[#allocation12 + $0xd4] sm:$0xf]
    %v5159 = vld [vmem:[#allocation12 + $0xd8] sm:$0xf]
    %v5160 = vld [vmem:[#allocation12 + $0xdc] sm:$0xf]
    %v5161 = vld [vmem:[#allocation12 + $0xe0] sm:$0xf]
    %v5162 = vld [vmem:[#allocation12 + $0xe4] sm:$0xf]
    %v5163 = vld [vmem:[#allocation12 + $0xe8] sm:$0xf]
    %v5164 = vld [vmem:[#allocation12 + $0xec] sm:$0xf]
    %v5165 = vld [vmem:[#allocation12 + $0xf0] sm:$0xf]
    %v5166 = vld [vmem:[#allocation12 + $0xf4] sm:$0xf]
    %v5167 = vld [vmem:[#allocation12 + $0xf8] sm:$0xf]
    %v5168 = vld [vmem:[#allocation12 + $0xfc] sm:$0xf]
    %v5169 = vld [vmem:[#allocation12 + $0x100] sm:$0xf]
    %v5170 = vld [vmem:[#allocation12 + $0x104] sm:$0xf]
    %v5171 = vld [vmem:[#allocation12 + $0x108] sm:$0xf]
    %v5172 = vld [vmem:[#allocation12 + $0x10c] sm:$0xf]
    %v5173 = vld [vmem:[#allocation12 + $0x110] sm:$0xf]
    %v5174 = vld [vmem:[#allocation12 + $0x114] sm:$0xf]
    %v5175 = vld [vmem:[#allocation12 + $0x118] sm:$0xf]
    %v5176 = vld [vmem:[#allocation12 + $0x11c] sm:$0xf]
    %v5177 = vld [vmem:[#allocation12 + $0x120] sm:$0xf]
    %v5178 = vld [vmem:[#allocation12 + $0x124] sm:$0xf]
    %v5179 = vld [vmem:[#allocation12 + $0x128] sm:$0xf]
    %v5180 = vld [vmem:[#allocation12 + $0x12c] sm:$0xf]
    %v5181 = vld [vmem:[#allocation12 + $0x130] sm:$0xf]
    %v5182 = vld [vmem:[#allocation12 + $0x134] sm:$0xf]
    %v5183 = vld [vmem:[#allocation12 + $0x138] sm:$0xf]
    %v5184 = vld [vmem:[#allocation12 + $0x13c] sm:$0xf]
    %v5185 = vld [vmem:[#allocation12 + $0x140] sm:$0xf]
    %v5186 = vld [vmem:[#allocation12 + $0x144] sm:$0xf]
    %v5187 = vld [vmem:[#allocation12 + $0x148] sm:$0xf]
    %v5188 = vld [vmem:[#allocation12 + $0x14c] sm:$0xf]
    %v5189 = vld [vmem:[#allocation12 + $0x150] sm:$0xf]
    %v5190 = vld [vmem:[#allocation12 + $0x154] sm:$0xf]
    %v5191 = vld [vmem:[#allocation12 + $0x158] sm:$0xf]
    %v5192 = vld [vmem:[#allocation12 + $0x15c] sm:$0xf]
    %v5193 = vld [vmem:[#allocation12 + $0x160] sm:$0xf]
    %v5194 = vld [vmem:[#allocation12 + $0x164] sm:$0xf]
    %v5195 = vld [vmem:[#allocation12 + $0x168] sm:$0xf]
    %v5196 = vld [vmem:[#allocation12 + $0x16c] sm:$0xf]
    %v5197 = vld [vmem:[#allocation12 + $0x170] sm:$0xf]
    %v5198 = vld [vmem:[#allocation12 + $0x174] sm:$0xf]
    %v5199 = vld [vmem:[#allocation12 + $0x178] sm:$0xf]
    %v5200 = vld [vmem:[#allocation12 + $0x17c] sm:$0xf]
    %v5201 = vld [vmem:[#allocation12 + $0x180] sm:$0xf]
    %v5202 = vld [vmem:[#allocation12 + $0x184] sm:$0xf]
    %v5203 = vld [vmem:[#allocation12 + $0x188] sm:$0xf]
    %v5204 = vld [vmem:[#allocation12 + $0x18c] sm:$0xf]
    %v5205 = vld [vmem:[#allocation12 + $0x190] sm:$0xf]
    %v5206 = vld [vmem:[#allocation12 + $0x194] sm:$0xf]
    %v5207 = vld [vmem:[#allocation12 + $0x198] sm:$0xf]
    %v5208 = vld [vmem:[#allocation12 + $0x19c] sm:$0xf]
    %v5209 = vld [vmem:[#allocation12 + $0x1a0] sm:$0xf]
    %v5210 = vld [vmem:[#allocation12 + $0x1a4] sm:$0xf]
    %v5211 = vld [vmem:[#allocation12 + $0x1a8] sm:$0xf]
    %v5212 = vld [vmem:[#allocation12 + $0x1ac] sm:$0xf]
    %v5213 = vld [vmem:[#allocation12 + $0x1b0] sm:$0xf]
    %v5214 = vld [vmem:[#allocation12 + $0x1b4] sm:$0xf]
    %v5215 = vld [vmem:[#allocation12 + $0x1b8] sm:$0xf]
    %v5216 = vld [vmem:[#allocation12 + $0x1bc] sm:$0xf]
    %v5217 = vld [vmem:[#allocation12 + $0x1c0] sm:$0xf]
    %v5218 = vld [vmem:[#allocation12 + $0x1c4] sm:$0xf]
    %v5219 = vld [vmem:[#allocation12 + $0x1c8] sm:$0xf]
    %v5220 = vld [vmem:[#allocation12 + $0x1cc] sm:$0xf]
    %v5221 = vld [vmem:[#allocation12 + $0x1d0] sm:$0xf]
    %v5222 = vld [vmem:[#allocation12 + $0x1d4] sm:$0xf]
    %v5223 = vld [vmem:[#allocation12 + $0x1d8] sm:$0xf]
    %v5224 = vld [vmem:[#allocation12 + $0x1dc] sm:$0xf]
    %v5225 = vld [vmem:[#allocation12 + $0x1e0] sm:$0xf]
    %v5226 = vld [vmem:[#allocation12 + $0x1e4] sm:$0xf]
    %v5227 = vld [vmem:[#allocation12 + $0x1e8] sm:$0xf]
    %v5228 = vld [vmem:[#allocation12 + $0x1ec] sm:$0xf]
    %v5229 = vld [vmem:[#allocation12 + $0x1f0] sm:$0xf]
    %v5230 = vld [vmem:[#allocation12 + $0x1f4] sm:$0xf]
    %v5231 = vld [vmem:[#allocation12 + $0x1f8] sm:$0xf]
    %v5232 = vld [vmem:[#allocation12 + $0x1fc] sm:$0xf]
    %v5233 = vld [vmem:[#allocation12 + $0x200] sm:$0xf]
    %v5234 = vld [vmem:[#allocation12 + $0x204] sm:$0xf]
    %v5235 = vld [vmem:[#allocation12 + $0x208] sm:$0xf]
    %v5236 = vld [vmem:[#allocation12 + $0x20c] sm:$0xf]
    %v5237 = vld [vmem:[#allocation12 + $0x210] sm:$0xf]
    %v5238 = vld [vmem:[#allocation12 + $0x214] sm:$0xf]
    %v5239 = vld [vmem:[#allocation12 + $0x218] sm:$0xf]
    %v5240 = vld [vmem:[#allocation12 + $0x21c] sm:$0xf]
    %v5241 = vld [vmem:[#allocation12 + $0x220] sm:$0xf]
    %v5242 = vld [vmem:[#allocation12 + $0x224] sm:$0xf]
    %v5243 = vld [vmem:[#allocation12 + $0x228] sm:$0xf]
    %v5244 = vld [vmem:[#allocation12 + $0x22c] sm:$0xf]
    %v5245 = vld [vmem:[#allocation12 + $0x230] sm:$0xf]
    %v5246 = vld [vmem:[#allocation12 + $0x234] sm:$0xf]
    %v5247 = vld [vmem:[#allocation12 + $0x238] sm:$0xf]
    %v5248 = vld [vmem:[#allocation12 + $0x23c] sm:$0xf]
    %v5249 = vld [vmem:[#allocation12 + $0x240] sm:$0xf]
    %v5250 = vld [vmem:[#allocation12 + $0x244] sm:$0xf]
    %v5251 = vld [vmem:[#allocation12 + $0x248] sm:$0xf]
    %v5252 = vld [vmem:[#allocation12 + $0x24c] sm:$0xf]
    %v5253 = vld [vmem:[#allocation12 + $0x250] sm:$0xf]
    %v5254 = vld [vmem:[#allocation12 + $0x254] sm:$0xf]
    %v5255 = vld [vmem:[#allocation12 + $0x258] sm:$0xf]
    %v5256 = vld [vmem:[#allocation12 + $0x25c] sm:$0xf]
    %v5257 = vld [vmem:[#allocation12 + $0x260] sm:$0xf]
    %v5258 = vld [vmem:[#allocation12 + $0x264] sm:$0xf]
    %v5259 = vld [vmem:[#allocation12 + $0x268] sm:$0xf]
    %v5260 = vld [vmem:[#allocation12 + $0x26c] sm:$0xf]
    %v5261 = vld [vmem:[#allocation12 + $0x270] sm:$0xf]
    %v5262 = vld [vmem:[#allocation12 + $0x274] sm:$0xf]
    %v5263 = vld [vmem:[#allocation12 + $0x278] sm:$0xf]
    %v5264 = vld [vmem:[#allocation12 + $0x27c] sm:$0xf]
    %v5265 = vld [vmem:[#allocation12 + $0x280] sm:$0xf]
    %v5266 = vld [vmem:[#allocation12 + $0x284] sm:$0xf]
    %v5267 = vld [vmem:[#allocation12 + $0x288] sm:$0xf]
    %v5268 = vld [vmem:[#allocation12 + $0x28c] sm:$0xf]
    %v5269 = vld [vmem:[#allocation12 + $0x290] sm:$0xf]
    %v5270 = vld [vmem:[#allocation12 + $0x294] sm:$0xf]
    %v5271 = vld [vmem:[#allocation12 + $0x298] sm:$0xf]
    %v5272 = vld [vmem:[#allocation12 + $0x29c] sm:$0xf]
    %v5273 = vld [vmem:[#allocation12 + $0x2a0] sm:$0xf]
    %v5274 = vld [vmem:[#allocation12 + $0x2a4] sm:$0xf]
    %v5275 = vld [vmem:[#allocation12 + $0x2a8] sm:$0xf]
    %v5276 = vld [vmem:[#allocation12 + $0x2ac] sm:$0xf]
    %v5277 = vld [vmem:[#allocation12 + $0x2b0] sm:$0xf]
    %v5278 = vld [vmem:[#allocation12 + $0x2b4] sm:$0xf]
    %v5279 = vld [vmem:[#allocation12 + $0x2b8] sm:$0xf]
    %v5280 = vld [vmem:[#allocation12 + $0x2bc] sm:$0xf]
    %v5281 = vld [vmem:[#allocation12 + $0x2c0] sm:$0xf]
    %v5282 = vld [vmem:[#allocation12 + $0x2c4] sm:$0xf]
    %v5283 = vld [vmem:[#allocation12 + $0x2c8] sm:$0xf]
    %v5284 = vld [vmem:[#allocation12 + $0x2cc] sm:$0xf]
    %v5285 = vld [vmem:[#allocation12 + $0x2d0] sm:$0xf]
    %v5286 = vld [vmem:[#allocation12 + $0x2d4] sm:$0xf]
    %v5287 = vld [vmem:[#allocation12 + $0x2d8] sm:$0xf]
    %v5288 = vld [vmem:[#allocation12 + $0x2dc] sm:$0xf]
    %v5289 = vld [vmem:[#allocation12 + $0x2e0] sm:$0xf]
    %v5290 = vld [vmem:[#allocation12 + $0x2e4] sm:$0xf]
    %v5291 = vld [vmem:[#allocation12 + $0x2e8] sm:$0xf]
    %v5292 = vld [vmem:[#allocation12 + $0x2ec] sm:$0xf]
    %v5293 = vld [vmem:[#allocation12 + $0x2f0] sm:$0xf]
    %v5294 = vld [vmem:[#allocation12 + $0x2f4] sm:$0xf]
    %v5295 = vld [vmem:[#allocation12 + $0x2f8] sm:$0xf]
    %v5296 = vld [vmem:[#allocation12 + $0x2fc] sm:$0xf]
    %v5297 = vld [vmem:[#allocation12 + $0x300] sm:$0xf]
    %v5298 = vld [vmem:[#allocation12 + $0x304] sm:$0xf]
    %v5299 = vld [vmem:[#allocation12 + $0x308] sm:$0xf]
    %v5300 = vld [vmem:[#allocation12 + $0x30c] sm:$0xf]
    %v5301 = vld [vmem:[#allocation12 + $0x310] sm:$0xf]
    %v5302 = vld [vmem:[#allocation12 + $0x314] sm:$0xf]
    %v5303 = vld [vmem:[#allocation12 + $0x318] sm:$0xf]
    %v5304 = vld [vmem:[#allocation12 + $0x31c] sm:$0xf]
    %v5305 = vld [vmem:[#allocation12 + $0x320] sm:$0xf]
    %v5306 = vld [vmem:[#allocation12 + $0x324] sm:$0xf]
    %v5307 = vld [vmem:[#allocation12 + $0x328] sm:$0xf]
    %v5308 = vld [vmem:[#allocation12 + $0x32c] sm:$0xf]
    %v5309 = vld [vmem:[#allocation12 + $0x330] sm:$0xf]
    %v5310 = vld [vmem:[#allocation12 + $0x334] sm:$0xf]
    %v5311 = vld [vmem:[#allocation12 + $0x338] sm:$0xf]
    %v5312 = vld [vmem:[#allocation12 + $0x33c] sm:$0xf]
    %v5313 = vld [vmem:[#allocation12 + $0x340] sm:$0xf]
    %v5314 = vld [vmem:[#allocation12 + $0x344] sm:$0xf]
    %v5315 = vld [vmem:[#allocation12 + $0x348] sm:$0xf]
    %v5316 = vld [vmem:[#allocation12 + $0x34c] sm:$0xf]
    %v5317 = vld [vmem:[#allocation12 + $0x350] sm:$0xf]
    %v5318 = vld [vmem:[#allocation12 + $0x354] sm:$0xf]
    %v5319 = vld [vmem:[#allocation12 + $0x358] sm:$0xf]
    %v5320 = vld [vmem:[#allocation12 + $0x35c] sm:$0xf]
    %v5321 = vld [vmem:[#allocation12 + $0x360] sm:$0xf]
    %v5322 = vld [vmem:[#allocation12 + $0x364] sm:$0xf]
    %v5323 = vld [vmem:[#allocation12 + $0x368] sm:$0xf]
    %v5324 = vld [vmem:[#allocation12 + $0x36c] sm:$0xf]
    %v5325 = vld [vmem:[#allocation12 + $0x370] sm:$0xf]
    %v5326 = vld [vmem:[#allocation12 + $0x374] sm:$0xf]
    %v5327 = vld [vmem:[#allocation12 + $0x378] sm:$0xf]
    %v5328 = vld [vmem:[#allocation12 + $0x37c] sm:$0xf]
    %v5329 = vld [vmem:[#allocation12 + $0x380] sm:$0xf]
    %v5330 = vld [vmem:[#allocation12 + $0x384] sm:$0xf]
    %v5331 = vld [vmem:[#allocation12 + $0x388] sm:$0xf]
    %v5332 = vld [vmem:[#allocation12 + $0x38c] sm:$0xf]
    %v5333 = vld [vmem:[#allocation12 + $0x390] sm:$0xf]
    %v5334 = vld [vmem:[#allocation12 + $0x394] sm:$0xf]
    %v5335 = vld [vmem:[#allocation12 + $0x398] sm:$0xf]
    %v5336 = vld [vmem:[#allocation12 + $0x39c] sm:$0xf]
    %v5337 = vld [vmem:[#allocation12 + $0x3a0] sm:$0xf]
    %v5338 = vld [vmem:[#allocation12 + $0x3a4] sm:$0xf]
    %v5339 = vld [vmem:[#allocation12 + $0x3a8] sm:$0xf]
    %v5340 = vld [vmem:[#allocation12 + $0x3ac] sm:$0xf]
    %v5341 = vld [vmem:[#allocation12 + $0x3b0] sm:$0xf]
    %v5342 = vld [vmem:[#allocation12 + $0x3b4] sm:$0xf]
    %v5343 = vld [vmem:[#allocation12 + $0x3b8] sm:$0xf]
    %v5344 = vld [vmem:[#allocation12 + $0x3bc] sm:$0xf]
    %v5345 = vld [vmem:[#allocation12 + $0x3c0] sm:$0xf]
    %v5346 = vld [vmem:[#allocation12 + $0x3c4] sm:$0xf]
    %v5347 = vld [vmem:[#allocation12 + $0x3c8] sm:$0xf]
    %v5348 = vld [vmem:[#allocation12 + $0x3cc] sm:$0xf]
    %v5349 = vld [vmem:[#allocation12 + $0x3d0] sm:$0xf]
    %v5350 = vld [vmem:[#allocation12 + $0x3d4] sm:$0xf]
    %v5351 = vld [vmem:[#allocation12 + $0x3d8] sm:$0xf]
    %v5352 = vld [vmem:[#allocation12 + $0x3dc] sm:$0xf]
    %v5353 = vld [vmem:[#allocation12 + $0x3e0] sm:$0xf]
    %v5354 = vld [vmem:[#allocation12 + $0x3e4] sm:$0xf]
    %v5355 = vld [vmem:[#allocation12 + $0x3e8] sm:$0xf]
    %v5356 = vld [vmem:[#allocation12 + $0x3ec] sm:$0xf]
    %v5357 = vld [vmem:[#allocation12 + $0x3f0] sm:$0xf]
    %v5358 = vld [vmem:[#allocation12 + $0x3f4] sm:$0xf]
    %v5359 = vld [vmem:[#allocation12 + $0x3f8] sm:$0xf]
    %v5360 = vld [vmem:[#allocation12 + $0x3fc] sm:$0xf]
    %v5361 = vld [vmem:[#allocation13] sm:$0x1]
    %v5363 = vlaneseq
    %v5364 = vshrl.u32 %v5363, 7
    %v5365 = vsub.s32 0, %v5364
    %v5366 = vrot.slane %v5361, %v5365
    %v5624 = vunpack.c.l.b16 %v5105
    %v5625 = vunpack.c.l.b16 %v5106
    %v5626 = vunpack.c.l.b16 %v5107
    %v5627 = vunpack.c.l.b16 %v5108
    %v5628 = vunpack.c.l.b16 %v5109
    %v5629 = vunpack.c.l.b16 %v5110
    %v5630 = vunpack.c.l.b16 %v5111
    %v5631 = vunpack.c.l.b16 %v5112
    %v5632 = vunpack.c.l.b16 %v5113
    %v5633 = vunpack.c.l.b16 %v5114
    %v5634 = vunpack.c.l.b16 %v5115
    %v5635 = vunpack.c.l.b16 %v5116
    %v5636 = vunpack.c.l.b16 %v5117
    %v5637 = vunpack.c.l.b16 %v5118
    %v5638 = vunpack.c.l.b16 %v5119
    %v5639 = vunpack.c.l.b16 %v5120
    %v5640 = vunpack.c.l.b16 %v5121
    %v5641 = vunpack.c.l.b16 %v5122
    %v5642 = vunpack.c.l.b16 %v5123
    %v5643 = vunpack.c.l.b16 %v5124
    %v5644 = vunpack.c.l.b16 %v5125
    %v5645 = vunpack.c.l.b16 %v5126
    %v5646 = vunpack.c.l.b16 %v5127
    %v5647 = vunpack.c.l.b16 %v5128
    %v5648 = vunpack.c.l.b16 %v5129
    %v5649 = vunpack.c.l.b16 %v5130
    %v5650 = vunpack.c.l.b16 %v5131
    %v5651 = vunpack.c.l.b16 %v5132
    %v5652 = vunpack.c.l.b16 %v5133
    %v5653 = vunpack.c.l.b16 %v5134
    %v5654 = vunpack.c.l.b16 %v5135
    %v5655 = vunpack.c.l.b16 %v5136
    %v5656 = vunpack.c.l.b16 %v5137
    %v5657 = vunpack.c.l.b16 %v5138
    %v5658 = vunpack.c.l.b16 %v5139
    %v5659 = vunpack.c.l.b16 %v5140
    %v5660 = vunpack.c.l.b16 %v5141
    %v5661 = vunpack.c.l.b16 %v5142
    %v5662 = vunpack.c.l.b16 %v5143
    %v5663 = vunpack.c.l.b16 %v5144
    %v5664 = vunpack.c.l.b16 %v5145
    %v5665 = vunpack.c.l.b16 %v5146
    %v5666 = vunpack.c.l.b16 %v5147
    %v5667 = vunpack.c.l.b16 %v5148
    %v5668 = vunpack.c.l.b16 %v5149
    %v5669 = vunpack.c.l.b16 %v5150
    %v5670 = vunpack.c.l.b16 %v5151
    %v5671 = vunpack.c.l.b16 %v5152
    %v5672 = vunpack.c.l.b16 %v5153
    %v5673 = vunpack.c.l.b16 %v5154
    %v5674 = vunpack.c.l.b16 %v5155
    %v5675 = vunpack.c.l.b16 %v5156
    %v5676 = vunpack.c.l.b16 %v5157
    %v5677 = vunpack.c.l.b16 %v5158
    %v5678 = vunpack.c.l.b16 %v5159
    %v5679 = vunpack.c.l.b16 %v5160
    %v5680 = vunpack.c.l.b16 %v5161
    %v5681 = vunpack.c.l.b16 %v5162
    %v5682 = vunpack.c.l.b16 %v5163
    %v5683 = vunpack.c.l.b16 %v5164
    %v5684 = vunpack.c.l.b16 %v5165
    %v5685 = vunpack.c.l.b16 %v5166
    %v5686 = vunpack.c.l.b16 %v5167
    %v5687 = vunpack.c.l.b16 %v5168
    %v5688 = vunpack.c.l.b16 %v5169
    %v5689 = vunpack.c.l.b16 %v5170
    %v5690 = vunpack.c.l.b16 %v5171
    %v5691 = vunpack.c.l.b16 %v5172
    %v5692 = vunpack.c.l.b16 %v5173
    %v5693 = vunpack.c.l.b16 %v5174
    %v5694 = vunpack.c.l.b16 %v5175
    %v5695 = vunpack.c.l.b16 %v5176
    %v5696 = vunpack.c.l.b16 %v5177
    %v5697 = vunpack.c.l.b16 %v5178
    %v5698 = vunpack.c.l.b16 %v5179
    %v5699 = vunpack.c.l.b16 %v5180
    %v5700 = vunpack.c.l.b16 %v5181
    %v5701 = vunpack.c.l.b16 %v5182
    %v5702 = vunpack.c.l.b16 %v5183
    %v5703 = vunpack.c.l.b16 %v5184
    %v5704 = vunpack.c.l.b16 %v5185
    %v5705 = vunpack.c.l.b16 %v5186
    %v5706 = vunpack.c.l.b16 %v5187
    %v5707 = vunpack.c.l.b16 %v5188
    %v5708 = vunpack.c.l.b16 %v5189
    %v5709 = vunpack.c.l.b16 %v5190
    %v5710 = vunpack.c.l.b16 %v5191
    %v5711 = vunpack.c.l.b16 %v5192
    %v5712 = vunpack.c.l.b16 %v5193
    %v5713 = vunpack.c.l.b16 %v5194
    %v5714 = vunpack.c.l.b16 %v5195
    %v5715 = vunpack.c.l.b16 %v5196
    %v5716 = vunpack.c.l.b16 %v5197
    %v5717 = vunpack.c.l.b16 %v5198
    %v5718 = vunpack.c.l.b16 %v5199
    %v5719 = vunpack.c.l.b16 %v5200
    %v5720 = vunpack.c.l.b16 %v5201
    %v5721 = vunpack.c.l.b16 %v5202
    %v5722 = vunpack.c.l.b16 %v5203
    %v5723 = vunpack.c.l.b16 %v5204
    %v5724 = vunpack.c.l.b16 %v5205
    %v5725 = vunpack.c.l.b16 %v5206
    %v5726 = vunpack.c.l.b16 %v5207
    %v5727 = vunpack.c.l.b16 %v5208
    %v5728 = vunpack.c.l.b16 %v5209
    %v5729 = vunpack.c.l.b16 %v5210
    %v5730 = vunpack.c.l.b16 %v5211
    %v5731 = vunpack.c.l.b16 %v5212
    %v5732 = vunpack.c.l.b16 %v5213
    %v5733 = vunpack.c.l.b16 %v5214
    %v5734 = vunpack.c.l.b16 %v5215
    %v5735 = vunpack.c.l.b16 %v5216
    %v5736 = vunpack.c.l.b16 %v5217
    %v5737 = vunpack.c.l.b16 %v5218
    %v5738 = vunpack.c.l.b16 %v5219
    %v5739 = vunpack.c.l.b16 %v5220
    %v5740 = vunpack.c.l.b16 %v5221
    %v5741 = vunpack.c.l.b16 %v5222
    %v5742 = vunpack.c.l.b16 %v5223
    %v5743 = vunpack.c.l.b16 %v5224
    %v5744 = vunpack.c.l.b16 %v5225
    %v5745 = vunpack.c.l.b16 %v5226
    %v5746 = vunpack.c.l.b16 %v5227
    %v5747 = vunpack.c.l.b16 %v5228
    %v5748 = vunpack.c.l.b16 %v5229
    %v5749 = vunpack.c.l.b16 %v5230
    %v5750 = vunpack.c.l.b16 %v5231
    %v5751 = vunpack.c.l.b16 %v5232
    %v5752 = vunpack.c.l.b16 %v5233
    %v5753 = vunpack.c.l.b16 %v5234
    %v5754 = vunpack.c.l.b16 %v5235
    %v5755 = vunpack.c.l.b16 %v5236
    %v5756 = vunpack.c.l.b16 %v5237
    %v5757 = vunpack.c.l.b16 %v5238
    %v5758 = vunpack.c.l.b16 %v5239
    %v5759 = vunpack.c.l.b16 %v5240
    %v5760 = vunpack.c.l.b16 %v5241
    %v5761 = vunpack.c.l.b16 %v5242
    %v5762 = vunpack.c.l.b16 %v5243
    %v5763 = vunpack.c.l.b16 %v5244
    %v5764 = vunpack.c.l.b16 %v5245
    %v5765 = vunpack.c.l.b16 %v5246
    %v5766 = vunpack.c.l.b16 %v5247
    %v5767 = vunpack.c.l.b16 %v5248
    %v5768 = vunpack.c.l.b16 %v5249
    %v5769 = vunpack.c.l.b16 %v5250
    %v5770 = vunpack.c.l.b16 %v5251
    %v5771 = vunpack.c.l.b16 %v5252
    %v5772 = vunpack.c.l.b16 %v5253
    %v5773 = vunpack.c.l.b16 %v5254
    %v5774 = vunpack.c.l.b16 %v5255
    %v5775 = vunpack.c.l.b16 %v5256
    %v5776 = vunpack.c.l.b16 %v5257
    %v5777 = vunpack.c.l.b16 %v5258
    %v5778 = vunpack.c.l.b16 %v5259
    %v5779 = vunpack.c.l.b16 %v5260
    %v5780 = vunpack.c.l.b16 %v5261
    %v5781 = vunpack.c.l.b16 %v5262
    %v5782 = vunpack.c.l.b16 %v5263
    %v5783 = vunpack.c.l.b16 %v5264
    %v5784 = vunpack.c.l.b16 %v5265
    %v5785 = vunpack.c.l.b16 %v5266
    %v5786 = vunpack.c.l.b16 %v5267
    %v5787 = vunpack.c.l.b16 %v5268
    %v5788 = vunpack.c.l.b16 %v5269
    %v5789 = vunpack.c.l.b16 %v5270
    %v5790 = vunpack.c.l.b16 %v5271
    %v5791 = vunpack.c.l.b16 %v5272
    %v5792 = vunpack.c.l.b16 %v5273
    %v5793 = vunpack.c.l.b16 %v5274
    %v5794 = vunpack.c.l.b16 %v5275
    %v5795 = vunpack.c.l.b16 %v5276
    %v5796 = vunpack.c.l.b16 %v5277
    %v5797 = vunpack.c.l.b16 %v5278
    %v5798 = vunpack.c.l.b16 %v5279
    %v5799 = vunpack.c.l.b16 %v5280
    %v5800 = vunpack.c.l.b16 %v5281
    %v5801 = vunpack.c.l.b16 %v5282
    %v5802 = vunpack.c.l.b16 %v5283
    %v5803 = vunpack.c.l.b16 %v5284
    %v5804 = vunpack.c.l.b16 %v5285
    %v5805 = vunpack.c.l.b16 %v5286
    %v5806 = vunpack.c.l.b16 %v5287
    %v5807 = vunpack.c.l.b16 %v5288
    %v5808 = vunpack.c.l.b16 %v5289
    %v5809 = vunpack.c.l.b16 %v5290
    %v5810 = vunpack.c.l.b16 %v5291
    %v5811 = vunpack.c.l.b16 %v5292
    %v5812 = vunpack.c.l.b16 %v5293
    %v5813 = vunpack.c.l.b16 %v5294
    %v5814 = vunpack.c.l.b16 %v5295
    %v5815 = vunpack.c.l.b16 %v5296
    %v5816 = vunpack.c.l.b16 %v5297
    %v5817 = vunpack.c.l.b16 %v5298
    %v5818 = vunpack.c.l.b16 %v5299
    %v5819 = vunpack.c.l.b16 %v5300
    %v5820 = vunpack.c.l.b16 %v5301
    %v5821 = vunpack.c.l.b16 %v5302
    %v5822 = vunpack.c.l.b16 %v5303
    %v5823 = vunpack.c.l.b16 %v5304
    %v5824 = vunpack.c.l.b16 %v5305
    %v5825 = vunpack.c.l.b16 %v5306
    %v5826 = vunpack.c.l.b16 %v5307
    %v5827 = vunpack.c.l.b16 %v5308
    %v5828 = vunpack.c.l.b16 %v5309
    %v5829 = vunpack.c.l.b16 %v5310
    %v5830 = vunpack.c.l.b16 %v5311
    %v5831 = vunpack.c.l.b16 %v5312
    %v5832 = vunpack.c.l.b16 %v5313
    %v5833 = vunpack.c.l.b16 %v5314
    %v5834 = vunpack.c.l.b16 %v5315
    %v5835 = vunpack.c.l.b16 %v5316
    %v5836 = vunpack.c.l.b16 %v5317
    %v5837 = vunpack.c.l.b16 %v5318
    %v5838 = vunpack.c.l.b16 %v5319
    %v5839 = vunpack.c.l.b16 %v5320
    %v5840 = vunpack.c.l.b16 %v5321
    %v5841 = vunpack.c.l.b16 %v5322
    %v5842 = vunpack.c.l.b16 %v5323
    %v5843 = vunpack.c.l.b16 %v5324
    %v5844 = vunpack.c.l.b16 %v5325
    %v5845 = vunpack.c.l.b16 %v5326
    %v5846 = vunpack.c.l.b16 %v5327
    %v5847 = vunpack.c.l.b16 %v5328
    %v5848 = vunpack.c.l.b16 %v5329
    %v5849 = vunpack.c.l.b16 %v5330
    %v5850 = vunpack.c.l.b16 %v5331
    %v5851 = vunpack.c.l.b16 %v5332
    %v5852 = vunpack.c.l.b16 %v5333
    %v5853 = vunpack.c.l.b16 %v5334
    %v5854 = vunpack.c.l.b16 %v5335
    %v5855 = vunpack.c.l.b16 %v5336
    %v5856 = vunpack.c.l.b16 %v5337
    %v5857 = vunpack.c.l.b16 %v5338
    %v5858 = vunpack.c.l.b16 %v5339
    %v5859 = vunpack.c.l.b16 %v5340
    %v5860 = vunpack.c.l.b16 %v5341
    %v5861 = vunpack.c.l.b16 %v5342
    %v5862 = vunpack.c.l.b16 %v5343
    %v5863 = vunpack.c.l.b16 %v5344
    %v5864 = vunpack.c.l.b16 %v5345
    %v5865 = vunpack.c.l.b16 %v5346
    %v5866 = vunpack.c.l.b16 %v5347
    %v5867 = vunpack.c.l.b16 %v5348
    %v5868 = vunpack.c.l.b16 %v5349
    %v5869 = vunpack.c.l.b16 %v5350
    %v5870 = vunpack.c.l.b16 %v5351
    %v5871 = vunpack.c.l.b16 %v5352
    %v5872 = vunpack.c.l.b16 %v5353
    %v5873 = vunpack.c.l.b16 %v5354
    %v5874 = vunpack.c.l.b16 %v5355
    %v5875 = vunpack.c.l.b16 %v5356
    %v5876 = vunpack.c.l.b16 %v5357
    %v5877 = vunpack.c.l.b16 %v5358
    %v5878 = vunpack.c.l.b16 %v5359
    %v5879 = vunpack.c.l.b16 %v5360
    %v5880 = vpack.c.b16 %v5625, %v5624
    %v5881 = vpack.c.b16 %v5627, %v5626
    %v5882 = vpack.c.b16 %v5629, %v5628
    %v5883 = vpack.c.b16 %v5631, %v5630
    %v5884 = vpack.c.b16 %v5633, %v5632
    %v5885 = vpack.c.b16 %v5635, %v5634
    %v5886 = vpack.c.b16 %v5637, %v5636
    %v5887 = vpack.c.b16 %v5639, %v5638
    %v5888 = vpack.c.b16 %v5641, %v5640
    %v5889 = vpack.c.b16 %v5643, %v5642
    %v5890 = vpack.c.b16 %v5645, %v5644
    %v5891 = vpack.c.b16 %v5647, %v5646
    %v5892 = vpack.c.b16 %v5649, %v5648
    %v5893 = vpack.c.b16 %v5651, %v5650
    %v5894 = vpack.c.b16 %v5653, %v5652
    %v5895 = vpack.c.b16 %v5655, %v5654
    %v5896 = vpack.c.b16 %v5657, %v5656
    %v5897 = vpack.c.b16 %v5659, %v5658
    %v5898 = vpack.c.b16 %v5661, %v5660
    %v5899 = vpack.c.b16 %v5663, %v5662
    %v5900 = vpack.c.b16 %v5665, %v5664
    %v5901 = vpack.c.b16 %v5667, %v5666
    %v5902 = vpack.c.b16 %v5669, %v5668
    %v5903 = vpack.c.b16 %v5671, %v5670
    %v5904 = vpack.c.b16 %v5673, %v5672
    %v5905 = vpack.c.b16 %v5675, %v5674
    %v5906 = vpack.c.b16 %v5677, %v5676
    %v5907 = vpack.c.b16 %v5679, %v5678
    %v5908 = vpack.c.b16 %v5681, %v5680
    %v5909 = vpack.c.b16 %v5683, %v5682
    %v5910 = vpack.c.b16 %v5685, %v5684
    %v5911 = vpack.c.b16 %v5687, %v5686
    %v5912 = vpack.c.b16 %v5689, %v5688
    %v5913 = vpack.c.b16 %v5691, %v5690
    %v5914 = vpack.c.b16 %v5693, %v5692
    %v5915 = vpack.c.b16 %v5695, %v5694
    %v5916 = vpack.c.b16 %v5697, %v5696
    %v5917 = vpack.c.b16 %v5699, %v5698
    %v5918 = vpack.c.b16 %v5701, %v5700
    %v5919 = vpack.c.b16 %v5703, %v5702
    %v5920 = vpack.c.b16 %v5705, %v5704
    %v5921 = vpack.c.b16 %v5707, %v5706
    %v5922 = vpack.c.b16 %v5709, %v5708
    %v5923 = vpack.c.b16 %v5711, %v5710
    %v5924 = vpack.c.b16 %v5713, %v5712
    %v5925 = vpack.c.b16 %v5715, %v5714
    %v5926 = vpack.c.b16 %v5717, %v5716
    %v5927 = vpack.c.b16 %v5719, %v5718
    %v5928 = vpack.c.b16 %v5721, %v5720
    %v5929 = vpack.c.b16 %v5723, %v5722
    %v5930 = vpack.c.b16 %v5725, %v5724
    %v5931 = vpack.c.b16 %v5727, %v5726
    %v5932 = vpack.c.b16 %v5729, %v5728
    %v5933 = vpack.c.b16 %v5731, %v5730
    %v5934 = vpack.c.b16 %v5733, %v5732
    %v5935 = vpack.c.b16 %v5735, %v5734
    %v5936 = vpack.c.b16 %v5737, %v5736
    %v5937 = vpack.c.b16 %v5739, %v5738
    %v5938 = vpack.c.b16 %v5741, %v5740
    %v5939 = vpack.c.b16 %v5743, %v5742
    %v5940 = vpack.c.b16 %v5745, %v5744
    %v5941 = vpack.c.b16 %v5747, %v5746
    %v5942 = vpack.c.b16 %v5749, %v5748
    %v5943 = vpack.c.b16 %v5751, %v5750
    %v5944 = vpack.c.b16 %v5753, %v5752
    %v5945 = vpack.c.b16 %v5755, %v5754
    %v5946 = vpack.c.b16 %v5757, %v5756
    %v5947 = vpack.c.b16 %v5759, %v5758
    %v5948 = vpack.c.b16 %v5761, %v5760
    %v5949 = vpack.c.b16 %v5763, %v5762
    %v5950 = vpack.c.b16 %v5765, %v5764
    %v5951 = vpack.c.b16 %v5767, %v5766
    %v5952 = vpack.c.b16 %v5769, %v5768
    %v5953 = vpack.c.b16 %v5771, %v5770
    %v5954 = vpack.c.b16 %v5773, %v5772
    %v5955 = vpack.c.b16 %v5775, %v5774
    %v5956 = vpack.c.b16 %v5777, %v5776
    %v5957 = vpack.c.b16 %v5779, %v5778
    %v5958 = vpack.c.b16 %v5781, %v5780
    %v5959 = vpack.c.b16 %v5783, %v5782
    %v5960 = vpack.c.b16 %v5785, %v5784
    %v5961 = vpack.c.b16 %v5787, %v5786
    %v5962 = vpack.c.b16 %v5789, %v5788
    %v5963 = vpack.c.b16 %v5791, %v5790
    %v5964 = vpack.c.b16 %v5793, %v5792
    %v5965 = vpack.c.b16 %v5795, %v5794
    %v5966 = vpack.c.b16 %v5797, %v5796
    %v5967 = vpack.c.b16 %v5799, %v5798
    %v5968 = vpack.c.b16 %v5801, %v5800
    %v5969 = vpack.c.b16 %v5803, %v5802
    %v5970 = vpack.c.b16 %v5805, %v5804
    %v5971 = vpack.c.b16 %v5807, %v5806
    %v5972 = vpack.c.b16 %v5809, %v5808
    %v5973 = vpack.c.b16 %v5811, %v5810
    %v5974 = vpack.c.b16 %v5813, %v5812
    %v5975 = vpack.c.b16 %v5815, %v5814
    %v5976 = vpack.c.b16 %v5817, %v5816
    %v5977 = vpack.c.b16 %v5819, %v5818
    %v5978 = vpack.c.b16 %v5821, %v5820
    %v5979 = vpack.c.b16 %v5823, %v5822
    %v5980 = vpack.c.b16 %v5825, %v5824
    %v5981 = vpack.c.b16 %v5827, %v5826
    %v5982 = vpack.c.b16 %v5829, %v5828
    %v5983 = vpack.c.b16 %v5831, %v5830
    %v5984 = vpack.c.b16 %v5833, %v5832
    %v5985 = vpack.c.b16 %v5835, %v5834
    %v5986 = vpack.c.b16 %v5837, %v5836
    %v5987 = vpack.c.b16 %v5839, %v5838
    %v5988 = vpack.c.b16 %v5841, %v5840
    %v5989 = vpack.c.b16 %v5843, %v5842
    %v5990 = vpack.c.b16 %v5845, %v5844
    %v5991 = vpack.c.b16 %v5847, %v5846
    %v5992 = vpack.c.b16 %v5849, %v5848
    %v5993 = vpack.c.b16 %v5851, %v5850
    %v5994 = vpack.c.b16 %v5853, %v5852
    %v5995 = vpack.c.b16 %v5855, %v5854
    %v5996 = vpack.c.b16 %v5857, %v5856
    %v5997 = vpack.c.b16 %v5859, %v5858
    %v5998 = vpack.c.b16 %v5861, %v5860
    %v5999 = vpack.c.b16 %v5863, %v5862
    %v6000 = vpack.c.b16 %v5865, %v5864
    %v6001 = vpack.c.b16 %v5867, %v5866
    %v6002 = vpack.c.b16 %v5869, %v5868
    %v6003 = vpack.c.b16 %v5871, %v5870
    %v6004 = vpack.c.b16 %v5873, %v5872
    %v6005 = vpack.c.b16 %v5875, %v5874
    %v6006 = vpack.c.b16 %v5877, %v5876
    %v6007 = vpack.c.b16 %v5879, %v5878
    %6136 = vmatprep.subr.bf16.mxu0 0
    %6137 = vmatpush1.bf16.msra.mxu0 %v5887
    %6138 = vmatprep.subr.bf16.mxu0 0
    %6139 = vmatpush1.bf16.msra.mxu0 %v5886
    %6140 = vmatprep.subr.bf16.mxu0 0
    %6141 = vmatpush1.bf16.msra.mxu0 %v5885
    %6142 = vmatprep.subr.bf16.mxu0 0
    %6143 = vmatpush1.bf16.msra.mxu0 %v5884
    %6144 = vmatprep.subr.bf16.mxu0 0
    %6145 = vmatpush1.bf16.msra.mxu0 %v5883
    %6146 = vmatprep.subr.bf16.mxu0 0
    %6147 = vmatpush1.bf16.msra.mxu0 %v5882
    %6148 = vmatprep.subr.bf16.mxu0 0
    %6149 = vmatpush1.bf16.msra.mxu0 %v5881
    %6150 = vmatprep.subr.bf16.mxu0 0
    %6151 = vmatpush1.bf16.msra.mxu0 %v5880
    %6152 = vmatprep.subr.bf16.mxu0 0
    %6153 = vmatpush2.bf16.msra.mxu0 %v5895
    %6154 = vmatprep.subr.bf16.mxu0 0
    %6155 = vmatpush2.bf16.msra.mxu0 %v5894
    %6156 = vmatprep.subr.bf16.mxu0 0
    %6157 = vmatpush2.bf16.msra.mxu0 %v5893
    %6158 = vmatprep.subr.bf16.mxu0 0
    %6159 = vmatpush2.bf16.msra.mxu0 %v5892
    %6160 = vmatprep.subr.bf16.mxu0 0
    %6161 = vmatpush2.bf16.msra.mxu0 %v5891
    %6162 = vmatprep.subr.bf16.mxu0 0
    %6163 = vmatpush2.bf16.msra.mxu0 %v5890
    %6164 = vmatprep.subr.bf16.mxu0 0
    %6165 = vmatpush2.bf16.msra.mxu0 %v5889
    %6166 = vmatprep.subr.bf16.mxu0 0
    %6167 = vmatpush2.bf16.msra.mxu0 %v5888
    %6168 = vmatprep.mubr.bf16.mxu0 %v5090
    %6169 = vmatmul.mubr.bf16.gmra.mxu0 %v5089
    %v6170 = vpop.f32.mrf.mxu0
    %v6171 = vadd.f32 %v5366, %v6170
    %v6172 = vpop.f32.mrf.mxu0
    %v6173 = vpop.f32.mrf.mxu0
    %v6174 = vpop.f32.mrf.mxu0
    %6175 = vdwg.mxu0
    %6176 = vmatprep.subr.bf16.mxu0 0
    %6177 = vmatpush1.bf16.msra.mxu0 %v5903
    %6178 = vmatprep.subr.bf16.mxu0 0
    %6179 = vmatpush1.bf16.msra.mxu0 %v5902
    %6180 = vmatprep.subr.bf16.mxu0 0
    %6181 = vmatpush1.bf16.msra.mxu0 %v5901
    %6182 = vmatprep.subr.bf16.mxu0 0
    %6183 = vmatpush1.bf16.msra.mxu0 %v5900
    %6184 = vmatprep.subr.bf16.mxu0 0
    %6185 = vmatpush1.bf16.msra.mxu0 %v5899
    %6186 = vmatprep.subr.bf16.mxu0 0
    %6187 = vmatpush1.bf16.msra.mxu0 %v5898
    %6188 = vmatprep.subr.bf16.mxu0 0
    %6189 = vmatpush1.bf16.msra.mxu0 %v5897
    %6190 = vmatprep.subr.bf16.mxu0 0
    %6191 = vmatpush1.bf16.msra.mxu0 %v5896
    %6192 = vmatprep.subr.bf16.mxu0 0
    %6193 = vmatpush2.bf16.msra.mxu0 %v5911
    %6194 = vmatprep.subr.bf16.mxu0 0
    %6195 = vmatpush2.bf16.msra.mxu0 %v5910
    %6196 = vmatprep.subr.bf16.mxu0 0
    %6197 = vmatpush2.bf16.msra.mxu0 %v5909
    %6198 = vmatprep.subr.bf16.mxu0 0
    %6199 = vmatpush2.bf16.msra.mxu0 %v5908
    %6200 = vmatprep.subr.bf16.mxu0 0
    %6201 = vmatpush2.bf16.msra.mxu0 %v5907
    %6202 = vmatprep.subr.bf16.mxu0 0
    %6203 = vmatpush2.bf16.msra.mxu0 %v5906
    %6204 = vmatprep.subr.bf16.mxu0 0
    %6205 = vmatpush2.bf16.msra.mxu0 %v5905
    %6206 = vmatprep.subr.bf16.mxu0 0
    %6207 = vmatpush2.bf16.msra.mxu0 %v5904
    %6208 = vmatprep.mubr.bf16.mxu0 %v5092
    %6209 = vmatmul.mubr.bf16.gmra.mxu0 %v5091
    %v6210 = vpop.f32.mrf.mxu0
    %v6211 = vadd.f32 %v6171, %v6210
    %v6212 = vpop.f32.mrf.mxu0
    %v6213 = vpop.f32.mrf.mxu0
    %v6214 = vpop.f32.mrf.mxu0
    %6215 = vdwg.mxu0
    %6216 = vmatprep.subr.bf16.mxu0 0
    %6217 = vmatpush1.bf16.msra.mxu0 %v5919
    %6218 = vmatprep.subr.bf16.mxu0 0
    %6219 = vmatpush1.bf16.msra.mxu0 %v5918
    %6220 = vmatprep.subr.bf16.mxu0 0
    %6221 = vmatpush1.bf16.msra.mxu0 %v5917
    %6222 = vmatprep.subr.bf16.mxu0 0
    %6223 = vmatpush1.bf16.msra.mxu0 %v5916
    %6224 = vmatprep.subr.bf16.mxu0 0
    %6225 = vmatpush1.bf16.msra.mxu0 %v5915
    %6226 = vmatprep.subr.bf16.mxu0 0
    %6227 = vmatpush1.bf16.msra.mxu0 %v5914
    %6228 = vmatprep.subr.bf16.mxu0 0
    %6229 = vmatpush1.bf16.msra.mxu0 %v5913
    %6230 = vmatprep.subr.bf16.mxu0 0
    %6231 = vmatpush1.bf16.msra.mxu0 %v5912
    %6232 = vmatprep.subr.bf16.mxu0 0
    %6233 = vmatpush2.bf16.msra.mxu0 %v5927
    %6234 = vmatprep.subr.bf16.mxu0 0
    %6235 = vmatpush2.bf16.msra.mxu0 %v5926
    %6236 = vmatprep.subr.bf16.mxu0 0
    %6237 = vmatpush2.bf16.msra.mxu0 %v5925
    %6238 = vmatprep.subr.bf16.mxu0 0
    %6239 = vmatpush2.bf16.msra.mxu0 %v5924
    %6240 = vmatprep.subr.bf16.mxu0 0
    %6241 = vmatpush2.bf16.msra.mxu0 %v5923
    %6242 = vmatprep.subr.bf16.mxu0 0
    %6243 = vmatpush2.bf16.msra.mxu0 %v5922
    %6244 = vmatprep.subr.bf16.mxu0 0
    %6245 = vmatpush2.bf16.msra.mxu0 %v5921
    %6246 = vmatprep.subr.bf16.mxu0 0
    %6247 = vmatpush2.bf16.msra.mxu0 %v5920
    %6248 = vmatprep.mubr.bf16.mxu0 %v5094
    %6249 = vmatmul.mubr.bf16.gmra.mxu0 %v5093
    %v6250 = vpop.f32.mrf.mxu0
    %v6251 = vadd.f32 %v6211, %v6250
    %v6252 = vpop.f32.mrf.mxu0
    %v6253 = vpop.f32.mrf.mxu0
    %v6254 = vpop.f32.mrf.mxu0
    %6255 = vdwg.mxu0
    %6256 = vmatprep.subr.bf16.mxu0 0
    %6257 = vmatpush1.bf16.msra.mxu0 %v5935
    %6258 = vmatprep.subr.bf16.mxu0 0
    %6259 = vmatpush1.bf16.msra.mxu0 %v5934
    %6260 = vmatprep.subr.bf16.mxu0 0
    %6261 = vmatpush1.bf16.msra.mxu0 %v5933
    %6262 = vmatprep.subr.bf16.mxu0 0
    %6263 = vmatpush1.bf16.msra.mxu0 %v5932
    %6264 = vmatprep.subr.bf16.mxu0 0
    %6265 = vmatpush1.bf16.msra.mxu0 %v5931
    %6266 = vmatprep.subr.bf16.mxu0 0
    %6267 = vmatpush1.bf16.msra.mxu0 %v5930
    %6268 = vmatprep.subr.bf16.mxu0 0
    %6269 = vmatpush1.bf16.msra.mxu0 %v5929
    %6270 = vmatprep.subr.bf16.mxu0 0
    %6271 = vmatpush1.bf16.msra.mxu0 %v5928
    %6272 = vmatprep.subr.bf16.mxu0 0
    %6273 = vmatpush2.bf16.msra.mxu0 %v5943
    %6274 = vmatprep.subr.bf16.mxu0 0
    %6275 = vmatpush2.bf16.msra.mxu0 %v5942
    %6276 = vmatprep.subr.bf16.mxu0 0
    %6277 = vmatpush2.bf16.msra.mxu0 %v5941
    %6278 = vmatprep.subr.bf16.mxu0 0
    %6279 = vmatpush2.bf16.msra.mxu0 %v5940
    %6280 = vmatprep.subr.bf16.mxu0 0
    %6281 = vmatpush2.bf16.msra.mxu0 %v5939
    %6282 = vmatprep.subr.bf16.mxu0 0
    %6283 = vmatpush2.bf16.msra.mxu0 %v5938
    %6284 = vmatprep.subr.bf16.mxu0 0
    %6285 = vmatpush2.bf16.msra.mxu0 %v5937
    %6286 = vmatprep.subr.bf16.mxu0 0
    %6287 = vmatpush2.bf16.msra.mxu0 %v5936
    %6288 = vmatprep.mubr.bf16.mxu0 %v5096
    %6289 = vmatmul.mubr.bf16.gmra.mxu0 %v5095
    %v6290 = vpop.f32.mrf.mxu0
    %v6291 = vadd.f32 %v6251, %v6290
    %v6292 = vpop.f32.mrf.mxu0
    %v6293 = vpop.f32.mrf.mxu0
    %v6294 = vpop.f32.mrf.mxu0
    %6295 = vdwg.mxu0
    %6296 = vmatprep.subr.bf16.mxu0 0
    %6297 = vmatpush1.bf16.msra.mxu0 %v5951
    %6298 = vmatprep.subr.bf16.mxu0 0
    %6299 = vmatpush1.bf16.msra.mxu0 %v5950
    %6300 = vmatprep.subr.bf16.mxu0 0
    %6301 = vmatpush1.bf16.msra.mxu0 %v5949
    %6302 = vmatprep.subr.bf16.mxu0 0
    %6303 = vmatpush1.bf16.msra.mxu0 %v5948
    %6304 = vmatprep.subr.bf16.mxu0 0
    %6305 = vmatpush1.bf16.msra.mxu0 %v5947
    %6306 = vmatprep.subr.bf16.mxu0 0
    %6307 = vmatpush1.bf16.msra.mxu0 %v5946
    %6308 = vmatprep.subr.bf16.mxu0 0
    %6309 = vmatpush1.bf16.msra.mxu0 %v5945
    %6310 = vmatprep.subr.bf16.mxu0 0
    %6311 = vmatpush1.bf16.msra.mxu0 %v5944
    %6312 = vmatprep.subr.bf16.mxu0 0
    %6313 = vmatpush2.bf16.msra.mxu0 %v5959
    %6314 = vmatprep.subr.bf16.mxu0 0
    %6315 = vmatpush2.bf16.msra.mxu0 %v5958
    %6316 = vmatprep.subr.bf16.mxu0 0
    %6317 = vmatpush2.bf16.msra.mxu0 %v5957
    %6318 = vmatprep.subr.bf16.mxu0 0
    %6319 = vmatpush2.bf16.msra.mxu0 %v5956
    %6320 = vmatprep.subr.bf16.mxu0 0
    %6321 = vmatpush2.bf16.msra.mxu0 %v5955
    %6322 = vmatprep.subr.bf16.mxu0 0
    %6323 = vmatpush2.bf16.msra.mxu0 %v5954
    %6324 = vmatprep.subr.bf16.mxu0 0
    %6325 = vmatpush2.bf16.msra.mxu0 %v5953
    %6326 = vmatprep.subr.bf16.mxu0 0
    %6327 = vmatpush2.bf16.msra.mxu0 %v5952
    %6328 = vmatprep.mubr.bf16.mxu0 %v5098
    %6329 = vmatmul.mubr.bf16.gmra.mxu0 %v5097
    %v6330 = vpop.f32.mrf.mxu0
    %v6331 = vadd.f32 %v6291, %v6330
    %v6332 = vpop.f32.mrf.mxu0
    %v6333 = vpop.f32.mrf.mxu0
    %v6334 = vpop.f32.mrf.mxu0
    %6335 = vdwg.mxu0
    %6336 = vmatprep.subr.bf16.mxu0 0
    %6337 = vmatpush1.bf16.msra.mxu0 %v5967
    %6338 = vmatprep.subr.bf16.mxu0 0
    %6339 = vmatpush1.bf16.msra.mxu0 %v5966
    %6340 = vmatprep.subr.bf16.mxu0 0
    %6341 = vmatpush1.bf16.msra.mxu0 %v5965
    %6342 = vmatprep.subr.bf16.mxu0 0
    %6343 = vmatpush1.bf16.msra.mxu0 %v5964
    %6344 = vmatprep.subr.bf16.mxu0 0
    %6345 = vmatpush1.bf16.msra.mxu0 %v5963
    %6346 = vmatprep.subr.bf16.mxu0 0
    %6347 = vmatpush1.bf16.msra.mxu0 %v5962
    %6348 = vmatprep.subr.bf16.mxu0 0
    %6349 = vmatpush1.bf16.msra.mxu0 %v5961
    %6350 = vmatprep.subr.bf16.mxu0 0
    %6351 = vmatpush1.bf16.msra.mxu0 %v5960
    %6352 = vmatprep.subr.bf16.mxu0 0
    %6353 = vmatpush2.bf16.msra.mxu0 %v5975
    %6354 = vmatprep.subr.bf16.mxu0 0
    %6355 = vmatpush2.bf16.msra.mxu0 %v5974
    %6356 = vmatprep.subr.bf16.mxu0 0
    %6357 = vmatpush2.bf16.msra.mxu0 %v5973
    %6358 = vmatprep.subr.bf16.mxu0 0
    %6359 = vmatpush2.bf16.msra.mxu0 %v5972
    %6360 = vmatprep.subr.bf16.mxu0 0
    %6361 = vmatpush2.bf16.msra.mxu0 %v5971
    %6362 = vmatprep.subr.bf16.mxu0 0
    %6363 = vmatpush2.bf16.msra.mxu0 %v5970
    %6364 = vmatprep.subr.bf16.mxu0 0
    %6365 = vmatpush2.bf16.msra.mxu0 %v5969
    %6366 = vmatprep.subr.bf16.mxu0 0
    %6367 = vmatpush2.bf16.msra.mxu0 %v5968
    %6368 = vmatprep.mubr.bf16.mxu0 %v5100
    %6369 = vmatmul.mubr.bf16.gmra.mxu0 %v5099
    %v6370 = vpop.f32.mrf.mxu0
    %v6371 = vadd.f32 %v6331, %v6370
    %v6372 = vpop.f32.mrf.mxu0
    %v6373 = vpop.f32.mrf.mxu0
    %v6374 = vpop.f32.mrf.mxu0
    %6375 = vdwg.mxu0
    %6376 = vmatprep.subr.bf16.mxu0 0
    %6377 = vmatpush1.bf16.msra.mxu0 %v5983
    %6378 = vmatprep.subr.bf16.mxu0 0
    %6379 = vmatpush1.bf16.msra.mxu0 %v5982
    %6380 = vmatprep.subr.bf16.mxu0 0
    %6381 = vmatpush1.bf16.msra.mxu0 %v5981
    %6382 = vmatprep.subr.bf16.mxu0 0
    %6383 = vmatpush1.bf16.msra.mxu0 %v5980
    %6384 = vmatprep.subr.bf16.mxu0 0
    %6385 = vmatpush1.bf16.msra.mxu0 %v5979
    %6386 = vmatprep.subr.bf16.mxu0 0
    %6387 = vmatpush1.bf16.msra.mxu0 %v5978
    %6388 = vmatprep.subr.bf16.mxu0 0
    %6389 = vmatpush1.bf16.msra.mxu0 %v5977
    %6390 = vmatprep.subr.bf16.mxu0 0
    %6391 = vmatpush1.bf16.msra.mxu0 %v5976
    %6392 = vmatprep.subr.bf16.mxu0 0
    %6393 = vmatpush2.bf16.msra.mxu0 %v5991
    %6394 = vmatprep.subr.bf16.mxu0 0
    %6395 = vmatpush2.bf16.msra.mxu0 %v5990
    %6396 = vmatprep.subr.bf16.mxu0 0
    %6397 = vmatpush2.bf16.msra.mxu0 %v5989
    %6398 = vmatprep.subr.bf16.mxu0 0
    %6399 = vmatpush2.bf16.msra.mxu0 %v5988
    %6400 = vmatprep.subr.bf16.mxu0 0
    %6401 = vmatpush2.bf16.msra.mxu0 %v5987
    %6402 = vmatprep.subr.bf16.mxu0 0
    %6403 = vmatpush2.bf16.msra.mxu0 %v5986
    %6404 = vmatprep.subr.bf16.mxu0 0
    %6405 = vmatpush2.bf16.msra.mxu0 %v5985
    %6406 = vmatprep.subr.bf16.mxu0 0
    %6407 = vmatpush2.bf16.msra.mxu0 %v5984
    %6408 = vmatprep.mubr.bf16.mxu0 %v5102
    %6409 = vmatmul.mubr.bf16.gmra.mxu0 %v5101
    %v6410 = vpop.f32.mrf.mxu0
    %v6411 = vadd.f32 %v6371, %v6410
    %v6412 = vpop.f32.mrf.mxu0
    %v6413 = vpop.f32.mrf.mxu0
    %v6414 = vpop.f32.mrf.mxu0
    %6415 = vdwg.mxu0
    %6416 = vmatprep.subr.bf16.mxu0 0
    %6417 = vmatpush1.bf16.msra.mxu0 %v5999
    %6418 = vmatprep.subr.bf16.mxu0 0
    %6419 = vmatpush1.bf16.msra.mxu0 %v5998
    %6420 = vmatprep.subr.bf16.mxu0 0
    %6421 = vmatpush1.bf16.msra.mxu0 %v5997
    %6422 = vmatprep.subr.bf16.mxu0 0
    %6423 = vmatpush1.bf16.msra.mxu0 %v5996
    %6424 = vmatprep.subr.bf16.mxu0 0
    %6425 = vmatpush1.bf16.msra.mxu0 %v5995
    %6426 = vmatprep.subr.bf16.mxu0 0
    %6427 = vmatpush1.bf16.msra.mxu0 %v5994
    %6428 = vmatprep.subr.bf16.mxu0 0
    %6429 = vmatpush1.bf16.msra.mxu0 %v5993
    %6430 = vmatprep.subr.bf16.mxu0 0
    %6431 = vmatpush1.bf16.msra.mxu0 %v5992
    %6432 = vmatprep.subr.bf16.mxu0 0
    %6433 = vmatpush2.bf16.msra.mxu0 %v6007
    %6434 = vmatprep.subr.bf16.mxu0 0
    %6435 = vmatpush2.bf16.msra.mxu0 %v6006
    %6436 = vmatprep.subr.bf16.mxu0 0
    %6437 = vmatpush2.bf16.msra.mxu0 %v6005
    %6438 = vmatprep.subr.bf16.mxu0 0
    %6439 = vmatpush2.bf16.msra.mxu0 %v6004
    %6440 = vmatprep.subr.bf16.mxu0 0
    %6441 = vmatpush2.bf16.msra.mxu0 %v6003
    %6442 = vmatprep.subr.bf16.mxu0 0
    %6443 = vmatpush2.bf16.msra.mxu0 %v6002
    %6444 = vmatprep.subr.bf16.mxu0 0
    %6445 = vmatpush2.bf16.msra.mxu0 %v6001
    %6446 = vmatprep.subr.bf16.mxu0 0
    %6447 = vmatpush2.bf16.msra.mxu0 %v6000
    %6448 = vmatprep.mubr.bf16.mxu0 %v5104
    %6449 = vmatmul.mubr.bf16.gmra.mxu0 %v5103
    %v6450 = vpop.f32.mrf.mxu0
    %v6451 = vadd.f32 %v6411, %v6450
    %v6452 = vpop.f32.mrf.mxu0
    %v6453 = vpop.f32.mrf.mxu0
    %v6454 = vpop.f32.mrf.mxu0
    %6455 = vdwg.mxu0
    %6456 = vst [vmem:[%s9] sm:$0xff] %v6451
    // Predicated region
    $region70: #{salakhnet_forward.1} parent=1 // pred_check
      _
    $region71: #{salakhnet_forward.1} parent=1 // pred_check_branch
      %6458 = sbr.rel (0) target = $region73
    $region72: #{salakhnet_forward.1} parent=1 // pred_region
      _
    $region73: #{salakhnet_forward.1} parent=1 // pred_fallthru
      _
    // Predicated region
    $region74: #{salakhnet_forward.1} parent=1 // pred_check
      _
    $region75: #{salakhnet_forward.1} parent=1 // pred_check_branch
      %6460 = sbr.rel (0) target = $region77
    $region76: #{salakhnet_forward.1} parent=1 // pred_region
      _
    $region77: #{salakhnet_forward.1} parent=1 // pred_fallthru
      _
    %6461 = vsyncpa [#allocation3], 1
    %6462 = vsyncpa [#allocation5], 1
    %6463 = vsyncpa [#allocation8], 1
    %6464 = vsyncpa [#allocation11], 1
    %6465 = vsyncpa [#allocation14], 1

</llo_original>
